<compile_context>
chip_gen: v7x
topology: tpu7x:2x2x1
jax: 0.10.0
libtpu: 0.0.40
codegen_flags: <defaults>
</compile_context>

<pallas_src>
import functools

import numpy as np
import jax
import jax.numpy as jnp
from jax.experimental import pallas as pl
from jax.experimental.pallas import tpu as pltpu

NEG = -1e30          # "minus infinity" used to mask columns out of the top-K search
VALID_MIN = -1e29    # any real cosine similarity is far above this threshold


def _matching_kernel(s_ref, q_ref, mask_ref, fg_ref, bg_ref, sim_ref, *, K, RB):
    TM = s_ref.shape[0]
    hw = q_ref.shape[1]          # un-padded number of query pixels
    R2 = 2 * RB                  # fused fg+bg rows per chunk

    # --- per-tile support normalization + one bf16 MXU pass ------------------
    # F.normalize(x, dim=1, p=2) == x * rsqrt(max(sum(x^2), eps^2)); rsqrt -> EUP.
    s = s_ref[...]
    s_n = s * jax.lax.rsqrt(jnp.maximum(jnp.sum(s * s, axis=-1, keepdims=True), 1e-24))
    # q_ref is the pre-normalized, pre-transposed (C, hw) bf16 query (hoisted to
    # the wrapper so it is NOT recomputed every grid step).
    sim_ref[...] = jnp.dot(s_n.astype(jnp.bfloat16), q_ref[...],
                           preferred_element_type=jnp.float32)

    # --- loop-invariant values (hoisted out of the chunk / K loops) ----------
    m = mask_ref[...]                                        # (1, hw), 1.0 == fg pixel
    fg_add = jnp.where(m > 0.5, 0.0, NEG)                    # additive column masks;
    bg_add = jnp.where(m > 0.5, NEG, 0.0)                    # NEG + sim == NEG in f32
    addmask = jnp.concatenate([jnp.broadcast_to(fg_add, (RB, hw)),
                               jnp.broadcast_to(bg_add, (RB, hw))], axis=0)  # (2RB, hw)
    acc0 = jnp.zeros((R2, 128), jnp.float32)                 # lane-replicated carries
    cnt0 = jnp.zeros((R2, 128), jnp.float32)
    rem0 = jnp.full((R2, 128), float(K), jnp.float32)
    ones_rhs = jnp.ones((hw, 128), jnp.bfloat16)             # MXU RHS for tie counting
    # Rows of the last tile beyond hw are padding: skip their (expensive) K-loop.
    n_valid = jnp.minimum(TM, hw - pl.program_id(0) * TM)

    def topk_round(w, acc, cnt, rem):
        # One extraction round with exact torch.sort()[:, :K] tie semantics:
        # take min(#entries equal to the row max, remaining budget) copies of the
        # max, then knock out all tied entries at once.  The tie count runs on
        # the otherwise-idle MXU so the XLU only does the max reduce per round.
        mx = jnp.max(w, axis=1, keepdims=True)               # (2RB, 1)   XLU
        valid = mx > VALID_MIN
        eq = w == mx                                         # VPU
        eq_bf = jnp.where(eq, 1.0, 0.0).astype(jnp.bfloat16)
        n_eq = jnp.dot(eq_bf, ones_rhs,                      # (2RB, 128) MXU, exact
                       preferred_element_type=jnp.float32)
        take = jnp.where(valid, jnp.minimum(n_eq, rem), 0.0)
        acc = acc + take * jnp.where(valid, mx, 0.0)
        cnt = cnt + take
        rem = rem - take
        w = jnp.where(eq, NEG, w)
        return w, acc, cnt, rem

    def chunk_body(c, carry):
        r0 = pl.multiple_of(c * RB, RB)

        @pl.when(r0 < n_valid)                               # skip padded tail chunks
        def _():
            chunk = sim_ref[pl.ds(r0, RB), :]                # (RB, hw), register resident
            # Fused work array: rows 0..RB-1 = fg stream, rows RB..2RB-1 = bg stream.
            w0 = jnp.concatenate([chunk, chunk], axis=0) + addmask

            st = jax.lax.fori_loop(0, K, lambda _, st: topk_round(*st),
                                   (w0, acc0, cnt0, rem0), unroll=True)
            _, acc, cnt, _ = st
            acc_c = acc[:, 0:1]
            cnt_c = cnt[:, 0:1]
            # empty collection (nelement() == 0 in torch) -> score 0
            score = jnp.where(cnt_c > 0.0, acc_c / cnt_c, 0.0)   # (2RB, 1)
            fg_ref[pl.ds(r0, RB), :] = score[:RB]
            bg_ref[pl.ds(r0, RB), :] = score[RB:]

        return carry

    jax.lax.fori_loop(0, TM // RB, chunk_body, 0)


def _nearest_resize(mask, out_hw):
    # TODO(synk): the original uses skimage-style `resize` (anti-aliased float
    # interpolation) followed by a uint8 cast; nearest-neighbor is used here.
    H, W = mask.shape
    h, w = out_hw
    ri = (jnp.arange(h) * H) // h
    ci = (jnp.arange(w) * W) // w
    return mask[ri][:, ci]


def matching_layer_forward(query_label, color, q_feat, s_feat, object_index=0, K=20):
    # q_feat, s_feat: NCHW (1, C, h, w) exactly like the PyTorch module.
    # TODO(synk): the per-object fg/bg model caching dict (keyed by object_index) is
    # host-side mutable state; the fg/bg collections are recomputed on every call.
    del object_index
    C, h, w = q_feat.shape[1], q_feat.shape[2], q_feat.shape[3]
    hw = h * w

    mask = jnp.all(query_label == color, axis=-1)            # (H, W) bool
    sub_mask = _nearest_resize(mask, (h, w))                 # (h, w) bool

    # Grid-invariant query side: normalize, transpose to (C, hw), cast to bf16
    # ONCE here instead of re-doing it on every grid step inside the kernel.
    q_flat = jnp.transpose(q_feat[0], (1, 2, 0)).reshape(hw, C).astype(jnp.float32)
    q_n = q_flat * jax.lax.rsqrt(
        jnp.maximum(jnp.sum(q_flat * q_flat, axis=1, keepdims=True), 1e-24))
    q_t = q_n.T.astype(jnp.bfloat16)                          # (C, hw)

    s_flat = jnp.transpose(s_feat[0], (1, 2, 0)).reshape(hw, C)
    mask_flat = sub_mask.reshape(1, hw).astype(jnp.float32)

    # Tile the support rows: TM rows per grid step, fused 2*RB-row chunks.
    # TM=128 keeps >=2 grid steps for v7x's two TensorCores; on single-TC chips
    # a larger TM would only trade away pipelining granularity.
    TM, RB = 128, 16
    pad = (-hw) % TM
    if pad:   # padded rows are gated off inside the kernel (no wasted K-loop work)
        s_flat = jnp.concatenate([s_flat, jnp.zeros((pad, C), s_flat.dtype)], axis=0)
    n_tiles = (hw + pad) // TM

    # VMEM budget: sim tile + double-buffered input/output blocks.  Set the scoped
    # limit explicitly (v5e default is only 16 MiB), capped at 64 MiB for v7x.
    est = TM * hw * 4 + 2 * (TM * C * 4 + C * hw * 2 + hw * 4 + 2 * TM * 4)
    vmem_limit = int(min(max(2 * est + (2 << 20), 32 << 20), 64 << 20))

    kernel = functools.partial(_matching_kernel, K=K, RB=RB)
    fg, bg = pl.pallas_call(
        kernel,
        out_shape=(jax.ShapeDtypeStruct((n_tiles * TM, 1), jnp.float32),
                   jax.ShapeDtypeStruct((n_tiles * TM, 1), jnp.float32)),
        grid=(n_tiles,),
        in_specs=[pl.BlockSpec((TM, C), lambda i: (i, 0)),    # support rows (tiled)
                  pl.BlockSpec((C, hw), lambda i: (0, 0)),    # pre-normalized bf16 query
                  pl.BlockSpec((1, hw), lambda i: (0, 0))],   # fg column mask
        out_specs=(pl.BlockSpec((TM, 1), lambda i: (i, 0)),
                   pl.BlockSpec((TM, 1), lambda i: (i, 0))),
        scratch_shapes=[pltpu.VMEM((TM, hw), jnp.float32)],   # similarity tile
        compiler_params=pltpu.CompilerParams(
            dimension_semantics=("parallel",),
            vmem_limit_bytes=vmem_limit),
    )(s_flat, q_t, mask_flat)

    fg = fg[:hw, 0].reshape(h, w)
    bg = bg[:hw, 0].reshape(h, w)
    return fg, bg, sub_mask


def _reference_np(q_feat, s_feat, sub_mask, K):
    # Faithful (f32) numpy port of the PyTorch forward, given the resized mask.
    C, h, w = q_feat.shape[1], q_feat.shape[2], q_feat.shape[3]
    qf = np.transpose(np.asarray(q_feat, dtype=np.float32)[0], (1, 2, 0))
    sm = np.asarray(sub_mask).astype(bool)
    fg_coll = qf[sm]
    bg_coll = qf[~sm]
    s2 = np.transpose(np.asarray(s_feat, dtype=np.float32)[0], (1, 2, 0)).reshape(-1, C)
    s_n = s2 / np.maximum(np.linalg.norm(s2, axis=1, keepdims=True), 1e-12)

    def score(coll):
        if coll.size == 0:
            return np.zeros((h, w), np.float32)
        cn = coll / np.maximum(np.linalg.norm(coll, axis=1, keepdims=True), 1e-12)
        sim = s_n @ cn.T
        sim = -np.sort(-sim, axis=1)[:, :K]
        return sim.mean(axis=1).reshape(h, w)

    return score(fg_coll), score(bg_coll)


if __name__ == "__main__":
    key = jax.random.PRNGKey(0)
    k_q, k_s = jax.random.split(key)

    H_img, W_img = 64, 64
    C, h, w = 32, 16, 16
    K = 20

    # deterministic query label image: a rectangular object with color [1,2,3]
    yy, xx = jnp.meshgrid(jnp.arange(H_img), jnp.arange(W_img), indexing="ij")
    region = (yy >= 16) & (yy < 40) & (xx >= 8) & (xx < 32)
    color = jnp.array([1, 2, 3], dtype=jnp.uint8)
    query_label = jnp.where(region[..., None], color,
                            jnp.zeros((3,), dtype=jnp.uint8))

    q_feat = jax.random.normal(k_q, (1, C, h, w), dtype=jnp.float32)
    s_feat = jax.random.normal(k_s, (1, C, h, w), dtype=jnp.float32)

    fg_score, bg_score, sub_mask = matching_layer_forward(
        query_label, color, q_feat, s_feat, K=K)
    jax.block_until_ready((fg_score, bg_score))

    # Tolerance accounts for the intentional single bf16 MXU pass (f32 accumulation)
    # in the similarity matmul; the reference runs fully in f32.
    fg_ref, bg_ref = _reference_np(q_feat, s_feat, sub_mask, K)
    np.testing.assert_allclose(np.asarray(fg_score), fg_ref, rtol=2e-3, atol=4e-3)
    np.testing.assert_allclose(np.asarray(bg_score), bg_ref, rtol=2e-3, atol=4e-3)

    print("KERNEL_OK")
</pallas_src>

<mosaic_0001>
module attributes {stable_mosaic.version = 11 : i64} {
  func.func @_matching_kernel(%arg0: i32, %arg1: memref<128x32xf32, #tpu.memory_space<vmem>>, %arg2: memref<32x256xbf16, #tpu.memory_space<vmem>>, %arg3: memref<1x256xf32, #tpu.memory_space<vmem>>, %arg4: memref<128x1xf32, #tpu.memory_space<vmem>>, %arg5: memref<128x1xf32, #tpu.memory_space<vmem>>, %arg6: memref<128x256xf32, #tpu.memory_space<vmem>>) attributes {dimension_semantics = [#tpu.dimension_semantics<parallel>], iteration_bounds = array<i64: 2>, scalar_prefetch = 0 : i64, scratch_operands = 1 : i64, tpu.core_type = #tpu.core_type<tc>, window_params = [{transform_indices = @transform_0, window_bounds = array<i64: 128, 32>}, {pipeline_mode = #tpu.pipeline_mode<synchronous>, transform_indices = @transform_1, window_bounds = array<i64: 32, 256>}, {pipeline_mode = #tpu.pipeline_mode<synchronous>, transform_indices = @transform_2, window_bounds = array<i64: 1, 256>}, {transform_indices = @transform_3, window_bounds = array<i64: 128, 1>}, {transform_indices = @transform_4, window_bounds = array<i64: 128, 1>}]} {
    %c0 = arith.constant 0 : index
    %c0_0 = arith.constant 0 : index
    %0 = vector.load %arg1[%c0, %c0_0] : memref<128x32xf32, #tpu.memory_space<vmem>>, vector<128x32xf32>
    %1 = arith.mulf %0, %0 : vector<128x32xf32>
    %cst = arith.constant dense<0.000000e+00> : vector<128xf32>
    %2 = vector.multi_reduction <add>, %1, %cst [1] : vector<128x32xf32> to vector<128xf32>
    %3 = vector.shape_cast %2 : vector<128xf32> to vector<128x1xf32>
    %cst_1 = arith.constant 1.000000e-24 : f32
    %4 = vector.broadcast %cst_1 : f32 to vector<128x1xf32>
    %5 = arith.maximumf %3, %4 : vector<128x1xf32>
    %6 = math.rsqrt %5 : vector<128x1xf32>
    %7 = vector.broadcast %6 : vector<128x1xf32> to vector<128x32xf32>
    %8 = arith.mulf %0, %7 : vector<128x32xf32>
    %9 = arith.truncf %8 : vector<128x32xf32> to vector<128x32xbf16>
    %c0_2 = arith.constant 0 : index
    %c0_3 = arith.constant 0 : index
    %10 = vector.load %arg2[%c0_2, %c0_3] : memref<32x256xbf16, #tpu.memory_space<vmem>>, vector<32x256xbf16>
    %cst_4 = arith.constant dense<0.000000e+00> : vector<128x256xf32>
    %11 = tpu.matmul %9, %10, %cst_4 {dimension_numbers = #tpu.dot_dimension_numbers<[1], [0], [0], [1], [0, 0, 1, 1], [], []>} : vector<128x32xbf16>, vector<32x256xbf16>, vector<128x256xf32> -> vector<128x256xf32>
    %c0_5 = arith.constant 0 : index
    %c0_6 = arith.constant 0 : index
    %12 = vector.load %arg6[%c0_5, %c0_6] : memref<128x256xf32, #tpu.memory_space<vmem>>, vector<128x256xf32>
    tpu.vector_store %arg6[%c0_5, %c0_6], %11 {strides = array<i32>} : memref<128x256xf32, #tpu.memory_space<vmem>>, vector<128x256xf32>,
    %c0_7 = arith.constant 0 : index
    %c0_8 = arith.constant 0 : index
    %13 = vector.load %arg3[%c0_7, %c0_8] : memref<1x256xf32, #tpu.memory_space<vmem>>, vector<1x256xf32>
    %cst_9 = arith.constant 5.000000e-01 : f32
    %14 = vector.broadcast %cst_9 : f32 to vector<1x256xf32>
    %15 = arith.cmpf ogt, %13, %14 : vector<1x256xf32>
    %cst_10 = arith.constant 0.000000e+00 : f32
    %cst_11 = arith.constant -1.000000e+30 : f32
    %16 = vector.broadcast %cst_10 : f32 to vector<1x256xf32>
    %17 = vector.broadcast %cst_11 : f32 to vector<1x256xf32>
    %18 = arith.select %15, %16, %17 : vector<1x256xi1>, vector<1x256xf32>
    %cst_12 = arith.constant 5.000000e-01 : f32
    %19 = vector.broadcast %cst_12 : f32 to vector<1x256xf32>
    %20 = arith.cmpf ogt, %13, %19 : vector<1x256xf32>
    %cst_13 = arith.constant -1.000000e+30 : f32
    %cst_14 = arith.constant 0.000000e+00 : f32
    %21 = vector.broadcast %cst_13 : f32 to vector<1x256xf32>
    %22 = vector.broadcast %cst_14 : f32 to vector<1x256xf32>
    %23 = arith.select %20, %21, %22 : vector<1x256xi1>, vector<1x256xf32>
    %24 = vector.shape_cast %18 : vector<1x256xf32> to vector<1x256xf32>
    %25 = vector.broadcast %24 : vector<1x256xf32> to vector<16x256xf32>
    %26 = vector.shape_cast %23 : vector<1x256xf32> to vector<1x256xf32>
    %27 = vector.broadcast %26 : vector<1x256xf32> to vector<16x256xf32>
    %28 = tpu.concatenate %25, %27 in 0 : vector<16x256xf32>, vector<16x256xf32> -> vector<32x256xf32>
    %cst_15 = arith.constant 0.000000e+00 : f32
    %29 = vector.broadcast %cst_15 : f32 to vector<32x128xf32>
    %cst_16 = arith.constant 0.000000e+00 : f32
    %30 = vector.broadcast %cst_16 : f32 to vector<32x128xf32>
    %cst_17 = arith.constant 2.000000e+01 : f32
    %31 = vector.broadcast %cst_17 : f32 to vector<32x128xf32>
    %cst_18 = arith.constant 1.000000e+00 : bf16
    %32 = vector.broadcast %cst_18 : bf16 to vector<256x128xbf16>
    %c128_i32 = arith.constant 128 : i32
    %33 = arith.muli %arg0, %c128_i32 : i32
    %c256_i32 = arith.constant 256 : i32
    %34 = arith.subi %c256_i32, %33 : i32
    %c128_i32_19 = arith.constant 128 : i32
    %35 = arith.minsi %c128_i32_19, %34 : i32
    %c0_i32 = arith.constant 0 : i32
    %c8_i32 = arith.constant 8 : i32
    %36 = arith.addi %c0_i32, %c8_i32 : i32
    %c1_i32 = arith.constant 1 : i32
    scf.for %arg7 = %c0_i32 to %36 step %c1_i32  : i32 {
      %c16_i32 = arith.constant 16 : i32
      %37 = arith.muli %arg7, %c16_i32 : i32
      %38 = tpu.assume_multiple %37, 16 : i32
      %39 = arith.cmpi slt, %38, %35 : i32
      %40 = arith.extui %39 : i1 to i32
      %c0_i32_21 = arith.constant 0 : i32
      %41 = arith.cmpi ne, %40, %c0_i32_21 : i32
      scf.if %41 {
        %42 = arith.index_cast %38 : i32 to index
        %c0_22 = arith.constant 0 : index
        %43 = vector.load %arg6[%42, %c0_22] : memref<128x256xf32, #tpu.memory_space<vmem>>, vector<16x256xf32>
        %44 = tpu.concatenate %43, %43 in 0 : vector<16x256xf32>, vector<16x256xf32> -> vector<32x256xf32>
        %45 = arith.addf %44, %28 : vector<32x256xf32>
        %c0_i32_23 = arith.constant 0 : i32
        %cst_24 = arith.constant dense<0xFF800000> : vector<32xf32>
        %46 = vector.multi_reduction <maximumf>, %45, %cst_24 [1] : vector<32x256xf32> to vector<32xf32>
        %47 = vector.shape_cast %46 : vector<32xf32> to vector<32x1xf32>
        %cst_25 = arith.constant -1.000000e+29 : f32
        %48 = vector.broadcast %cst_25 : f32 to vector<32x1xf32>
        %49 = arith.cmpf ogt, %47, %48 : vector<32x1xf32>
        %50 = vector.broadcast %47 : vector<32x1xf32> to vector<32x256xf32>
        %51 = arith.cmpf oeq, %45, %50 : vector<32x256xf32>
        %cst_26 = arith.constant 1.000000e+00 : f32
        %cst_27 = arith.constant 0.000000e+00 : f32
        %52 = vector.broadcast %cst_26 : f32 to vector<32x256xf32>
        %53 = vector.broadcast %cst_27 : f32 to vector<32x256xf32>
        %54 = arith.select %51, %52, %53 : vector<32x256xi1>, vector<32x256xf32>
        %55 = arith.truncf %54 : vector<32x256xf32> to vector<32x256xbf16>
        %cst_28 = arith.constant dense<0.000000e+00> : vector<32x128xf32>
        %56 = tpu.matmul %55, %32, %cst_28 {dimension_numbers = #tpu.dot_dimension_numbers<[1], [0], [0], [1], [0, 0, 1, 1], [], []>} : vector<32x256xbf16>, vector<256x128xbf16>, vector<32x128xf32> -> vector<32x128xf32>
        %57 = arith.minimumf %56, %31 : vector<32x128xf32>
        %cst_29 = arith.constant 0.000000e+00 : f32
        %58 = vector.shape_cast %49 : vector<32x1xi1> to vector<32x1xi1>
        %59 = vector.broadcast %58 : vector<32x1xi1> to vector<32x128xi1>
        %60 = vector.broadcast %cst_29 : f32 to vector<32x128xf32>
        %61 = arith.select %59, %57, %60 : vector<32x128xi1>, vector<32x128xf32>
        %cst_30 = arith.constant 0.000000e+00 : f32
        %62 = vector.broadcast %cst_30 : f32 to vector<32x1xf32>
        %63 = arith.select %49, %47, %62 : vector<32x1xi1>, vector<32x1xf32>
        %64 = vector.broadcast %63 : vector<32x1xf32> to vector<32x128xf32>
        %65 = arith.mulf %61, %64 : vector<32x128xf32>
        %66 = arith.addf %29, %65 : vector<32x128xf32>
        %67 = arith.addf %30, %61 : vector<32x128xf32>
        %68 = arith.subf %31, %61 : vector<32x128xf32>
        %cst_31 = arith.constant -1.000000e+30 : f32
        %69 = vector.broadcast %cst_31 : f32 to vector<32x256xf32>
        %70 = arith.select %51, %69, %45 : vector<32x256xi1>, vector<32x256xf32>
        %c1_i32_32 = arith.constant 1 : i32
        %cst_33 = arith.constant dense<0xFF800000> : vector<32xf32>
        %71 = vector.multi_reduction <maximumf>, %70, %cst_33 [1] : vector<32x256xf32> to vector<32xf32>
        %72 = vector.shape_cast %71 : vector<32xf32> to vector<32x1xf32>
        %cst_34 = arith.constant -1.000000e+29 : f32
        %73 = vector.broadcast %cst_34 : f32 to vector<32x1xf32>
        %74 = arith.cmpf ogt, %72, %73 : vector<32x1xf32>
        %75 = vector.broadcast %72 : vector<32x1xf32> to vector<32x256xf32>
        %76 = arith.cmpf oeq, %70, %75 : vector<32x256xf32>
        %cst_35 = arith.constant 1.000000e+00 : f32
        %cst_36 = arith.constant 0.000000e+00 : f32
        %77 = vector.broadcast %cst_35 : f32 to vector<32x256xf32>
        %78 = vector.broadcast %cst_36 : f32 to vector<32x256xf32>
        %79 = arith.select %76, %77, %78 : vector<32x256xi1>, vector<32x256xf32>
        %80 = arith.truncf %79 : vector<32x256xf32> to vector<32x256xbf16>
        %cst_37 = arith.constant dense<0.000000e+00> : vector<32x128xf32>
        %81 = tpu.matmul %80, %32, %cst_37 {dimension_numbers = #tpu.dot_dimension_numbers<[1], [0], [0], [1], [0, 0, 1, 1], [], []>} : vector<32x256xbf16>, vector<256x128xbf16>, vector<32x128xf32> -> vector<32x128xf32>
        %82 = arith.minimumf %81, %68 : vector<32x128xf32>
        %cst_38 = arith.constant 0.000000e+00 : f32
        %83 = vector.shape_cast %74 : vector<32x1xi1> to vector<32x1xi1>
        %84 = vector.broadcast %83 : vector<32x1xi1> to vector<32x128xi1>
        %85 = vector.broadcast %cst_38 : f32 to vector<32x128xf32>
        %86 = arith.select %84, %82, %85 : vector<32x128xi1>, vector<32x128xf32>
        %cst_39 = arith.constant 0.000000e+00 : f32
        %87 = vector.broadcast %cst_39 : f32 to vector<32x1xf32>
        %88 = arith.select %74, %72, %87 : vector<32x1xi1>, vector<32x1xf32>
        %89 = vector.broadcast %88 : vector<32x1xf32> to vector<32x128xf32>
        %90 = arith.mulf %86, %89 : vector<32x128xf32>
        %91 = arith.addf %66, %90 : vector<32x128xf32>
        %92 = arith.addf %67, %86 : vector<32x128xf32>
        %93 = arith.subf %68, %86 : vector<32x128xf32>
        %cst_40 = arith.constant -1.000000e+30 : f32
        %94 = vector.broadcast %cst_40 : f32 to vector<32x256xf32>
        %95 = arith.select %76, %94, %70 : vector<32x256xi1>, vector<32x256xf32>
        %c2_i32 = arith.constant 2 : i32
        %cst_41 = arith.constant dense<0xFF800000> : vector<32xf32>
        %96 = vector.multi_reduction <maximumf>, %95, %cst_41 [1] : vector<32x256xf32> to vector<32xf32>
        %97 = vector.shape_cast %96 : vector<32xf32> to vector<32x1xf32>
        %cst_42 = arith.constant -1.000000e+29 : f32
        %98 = vector.broadcast %cst_42 : f32 to vector<32x1xf32>
        %99 = arith.cmpf ogt, %97, %98 : vector<32x1xf32>
        %100 = vector.broadcast %97 : vector<32x1xf32> to vector<32x256xf32>
        %101 = arith.cmpf oeq, %95, %100 : vector<32x256xf32>
        %cst_43 = arith.constant 1.000000e+00 : f32
        %cst_44 = arith.constant 0.000000e+00 : f32
        %102 = vector.broadcast %cst_43 : f32 to vector<32x256xf32>
        %103 = vector.broadcast %cst_44 : f32 to vector<32x256xf32>
        %104 = arith.select %101, %102, %103 : vector<32x256xi1>, vector<32x256xf32>
        %105 = arith.truncf %104 : vector<32x256xf32> to vector<32x256xbf16>
        %cst_45 = arith.constant dense<0.000000e+00> : vector<32x128xf32>
        %106 = tpu.matmul %105, %32, %cst_45 {dimension_numbers = #tpu.dot_dimension_numbers<[1], [0], [0], [1], [0, 0, 1, 1], [], []>} : vector<32x256xbf16>, vector<256x128xbf16>, vector<32x128xf32> -> vector<32x128xf32>
        %107 = arith.minimumf %106, %93 : vector<32x128xf32>
        %cst_46 = arith.constant 0.000000e+00 : f32
        %108 = vector.shape_cast %99 : vector<32x1xi1> to vector<32x1xi1>
        %109 = vector.broadcast %108 : vector<32x1xi1> to vector<32x128xi1>
        %110 = vector.broadcast %cst_46 : f32 to vector<32x128xf32>
        %111 = arith.select %109, %107, %110 : vector<32x128xi1>, vector<32x128xf32>
        %cst_47 = arith.constant 0.000000e+00 : f32
        %112 = vector.broadcast %cst_47 : f32 to vector<32x1xf32>
        %113 = arith.select %99, %97, %112 : vector<32x1xi1>, vector<32x1xf32>
        %114 = vector.broadcast %113 : vector<32x1xf32> to vector<32x128xf32>
        %115 = arith.mulf %111, %114 : vector<32x128xf32>
        %116 = arith.addf %91, %115 : vector<32x128xf32>
        %117 = arith.addf %92, %111 : vector<32x128xf32>
        %118 = arith.subf %93, %111 : vector<32x128xf32>
        %cst_48 = arith.constant -1.000000e+30 : f32
        %119 = vector.broadcast %cst_48 : f32 to vector<32x256xf32>
        %120 = arith.select %101, %119, %95 : vector<32x256xi1>, vector<32x256xf32>
        %c3_i32 = arith.constant 3 : i32
        %cst_49 = arith.constant dense<0xFF800000> : vector<32xf32>
        %121 = vector.multi_reduction <maximumf>, %120, %cst_49 [1] : vector<32x256xf32> to vector<32xf32>
        %122 = vector.shape_cast %121 : vector<32xf32> to vector<32x1xf32>
        %cst_50 = arith.constant -1.000000e+29 : f32
        %123 = vector.broadcast %cst_50 : f32 to vector<32x1xf32>
        %124 = arith.cmpf ogt, %122, %123 : vector<32x1xf32>
        %125 = vector.broadcast %122 : vector<32x1xf32> to vector<32x256xf32>
        %126 = arith.cmpf oeq, %120, %125 : vector<32x256xf32>
        %cst_51 = arith.constant 1.000000e+00 : f32
        %cst_52 = arith.constant 0.000000e+00 : f32
        %127 = vector.broadcast %cst_51 : f32 to vector<32x256xf32>
        %128 = vector.broadcast %cst_52 : f32 to vector<32x256xf32>
        %129 = arith.select %126, %127, %128 : vector<32x256xi1>, vector<32x256xf32>
        %130 = arith.truncf %129 : vector<32x256xf32> to vector<32x256xbf16>
        %cst_53 = arith.constant dense<0.000000e+00> : vector<32x128xf32>
        %131 = tpu.matmul %130, %32, %cst_53 {dimension_numbers = #tpu.dot_dimension_numbers<[1], [0], [0], [1], [0, 0, 1, 1], [], []>} : vector<32x256xbf16>, vector<256x128xbf16>, vector<32x128xf32> -> vector<32x128xf32>
        %132 = arith.minimumf %131, %118 : vector<32x128xf32>
        %cst_54 = arith.constant 0.000000e+00 : f32
        %133 = vector.shape_cast %124 : vector<32x1xi1> to vector<32x1xi1>
        %134 = vector.broadcast %133 : vector<32x1xi1> to vector<32x128xi1>
        %135 = vector.broadcast %cst_54 : f32 to vector<32x128xf32>
        %136 = arith.select %134, %132, %135 : vector<32x128xi1>, vector<32x128xf32>
        %cst_55 = arith.constant 0.000000e+00 : f32
        %137 = vector.broadcast %cst_55 : f32 to vector<32x1xf32>
        %138 = arith.select %124, %122, %137 : vector<32x1xi1>, vector<32x1xf32>
        %139 = vector.broadcast %138 : vector<32x1xf32> to vector<32x128xf32>
        %140 = arith.mulf %136, %139 : vector<32x128xf32>
        %141 = arith.addf %116, %140 : vector<32x128xf32>
        %142 = arith.addf %117, %136 : vector<32x128xf32>
        %143 = arith.subf %118, %136 : vector<32x128xf32>
        %cst_56 = arith.constant -1.000000e+30 : f32
        %144 = vector.broadcast %cst_56 : f32 to vector<32x256xf32>
        %145 = arith.select %126, %144, %120 : vector<32x256xi1>, vector<32x256xf32>
        %c4_i32 = arith.constant 4 : i32
        %cst_57 = arith.constant dense<0xFF800000> : vector<32xf32>
        %146 = vector.multi_reduction <maximumf>, %145, %cst_57 [1] : vector<32x256xf32> to vector<32xf32>
        %147 = vector.shape_cast %146 : vector<32xf32> to vector<32x1xf32>
        %cst_58 = arith.constant -1.000000e+29 : f32
        %148 = vector.broadcast %cst_58 : f32 to vector<32x1xf32>
        %149 = arith.cmpf ogt, %147, %148 : vector<32x1xf32>
        %150 = vector.broadcast %147 : vector<32x1xf32> to vector<32x256xf32>
        %151 = arith.cmpf oeq, %145, %150 : vector<32x256xf32>
        %cst_59 = arith.constant 1.000000e+00 : f32
        %cst_60 = arith.constant 0.000000e+00 : f32
        %152 = vector.broadcast %cst_59 : f32 to vector<32x256xf32>
        %153 = vector.broadcast %cst_60 : f32 to vector<32x256xf32>
        %154 = arith.select %151, %152, %153 : vector<32x256xi1>, vector<32x256xf32>
        %155 = arith.truncf %154 : vector<32x256xf32> to vector<32x256xbf16>
        %cst_61 = arith.constant dense<0.000000e+00> : vector<32x128xf32>
        %156 = tpu.matmul %155, %32, %cst_61 {dimension_numbers = #tpu.dot_dimension_numbers<[1], [0], [0], [1], [0, 0, 1, 1], [], []>} : vector<32x256xbf16>, vector<256x128xbf16>, vector<32x128xf32> -> vector<32x128xf32>
        %157 = arith.minimumf %156, %143 : vector<32x128xf32>
        %cst_62 = arith.constant 0.000000e+00 : f32
        %158 = vector.shape_cast %149 : vector<32x1xi1> to vector<32x1xi1>
        %159 = vector.broadcast %158 : vector<32x1xi1> to vector<32x128xi1>
        %160 = vector.broadcast %cst_62 : f32 to vector<32x128xf32>
        %161 = arith.select %159, %157, %160 : vector<32x128xi1>, vector<32x128xf32>
        %cst_63 = arith.constant 0.000000e+00 : f32
        %162 = vector.broadcast %cst_63 : f32 to vector<32x1xf32>
        %163 = arith.select %149, %147, %162 : vector<32x1xi1>, vector<32x1xf32>
        %164 = vector.broadcast %163 : vector<32x1xf32> to vector<32x128xf32>
        %165 = arith.mulf %161, %164 : vector<32x128xf32>
        %166 = arith.addf %141, %165 : vector<32x128xf32>
        %167 = arith.addf %142, %161 : vector<32x128xf32>
        %168 = arith.subf %143, %161 : vector<32x128xf32>
        %cst_64 = arith.constant -1.000000e+30 : f32
        %169 = vector.broadcast %cst_64 : f32 to vector<32x256xf32>
        %170 = arith.select %151, %169, %145 : vector<32x256xi1>, vector<32x256xf32>
        %c5_i32 = arith.constant 5 : i32
        %cst_65 = arith.constant dense<0xFF800000> : vector<32xf32>
        %171 = vector.multi_reduction <maximumf>, %170, %cst_65 [1] : vector<32x256xf32> to vector<32xf32>
        %172 = vector.shape_cast %171 : vector<32xf32> to vector<32x1xf32>
        %cst_66 = arith.constant -1.000000e+29 : f32
        %173 = vector.broadcast %cst_66 : f32 to vector<32x1xf32>
        %174 = arith.cmpf ogt, %172, %173 : vector<32x1xf32>
        %175 = vector.broadcast %172 : vector<32x1xf32> to vector<32x256xf32>
        %176 = arith.cmpf oeq, %170, %175 : vector<32x256xf32>
        %cst_67 = arith.constant 1.000000e+00 : f32
        %cst_68 = arith.constant 0.000000e+00 : f32
        %177 = vector.broadcast %cst_67 : f32 to vector<32x256xf32>
        %178 = vector.broadcast %cst_68 : f32 to vector<32x256xf32>
        %179 = arith.select %176, %177, %178 : vector<32x256xi1>, vector<32x256xf32>
        %180 = arith.truncf %179 : vector<32x256xf32> to vector<32x256xbf16>
        %cst_69 = arith.constant dense<0.000000e+00> : vector<32x128xf32>
        %181 = tpu.matmul %180, %32, %cst_69 {dimension_numbers = #tpu.dot_dimension_numbers<[1], [0], [0], [1], [0, 0, 1, 1], [], []>} : vector<32x256xbf16>, vector<256x128xbf16>, vector<32x128xf32> -> vector<32x128xf32>
        %182 = arith.minimumf %181, %168 : vector<32x128xf32>
        %cst_70 = arith.constant 0.000000e+00 : f32
        %183 = vector.shape_cast %174 : vector<32x1xi1> to vector<32x1xi1>
        %184 = vector.broadcast %183 : vector<32x1xi1> to vector<32x128xi1>
        %185 = vector.broadcast %cst_70 : f32 to vector<32x128xf32>
        %186 = arith.select %184, %182, %185 : vector<32x128xi1>, vector<32x128xf32>
        %cst_71 = arith.constant 0.000000e+00 : f32
        %187 = vector.broadcast %cst_71 : f32 to vector<32x1xf32>
        %188 = arith.select %174, %172, %187 : vector<32x1xi1>, vector<32x1xf32>
        %189 = vector.broadcast %188 : vector<32x1xf32> to vector<32x128xf32>
        %190 = arith.mulf %186, %189 : vector<32x128xf32>
        %191 = arith.addf %166, %190 : vector<32x128xf32>
        %192 = arith.addf %167, %186 : vector<32x128xf32>
        %193 = arith.subf %168, %186 : vector<32x128xf32>
        %cst_72 = arith.constant -1.000000e+30 : f32
        %194 = vector.broadcast %cst_72 : f32 to vector<32x256xf32>
        %195 = arith.select %176, %194, %170 : vector<32x256xi1>, vector<32x256xf32>
        %c6_i32 = arith.constant 6 : i32
        %cst_73 = arith.constant dense<0xFF800000> : vector<32xf32>
        %196 = vector.multi_reduction <maximumf>, %195, %cst_73 [1] : vector<32x256xf32> to vector<32xf32>
        %197 = vector.shape_cast %196 : vector<32xf32> to vector<32x1xf32>
        %cst_74 = arith.constant -1.000000e+29 : f32
        %198 = vector.broadcast %cst_74 : f32 to vector<32x1xf32>
        %199 = arith.cmpf ogt, %197, %198 : vector<32x1xf32>
        %200 = vector.broadcast %197 : vector<32x1xf32> to vector<32x256xf32>
        %201 = arith.cmpf oeq, %195, %200 : vector<32x256xf32>
        %cst_75 = arith.constant 1.000000e+00 : f32
        %cst_76 = arith.constant 0.000000e+00 : f32
        %202 = vector.broadcast %cst_75 : f32 to vector<32x256xf32>
        %203 = vector.broadcast %cst_76 : f32 to vector<32x256xf32>
        %204 = arith.select %201, %202, %203 : vector<32x256xi1>, vector<32x256xf32>
        %205 = arith.truncf %204 : vector<32x256xf32> to vector<32x256xbf16>
        %cst_77 = arith.constant dense<0.000000e+00> : vector<32x128xf32>
        %206 = tpu.matmul %205, %32, %cst_77 {dimension_numbers = #tpu.dot_dimension_numbers<[1], [0], [0], [1], [0, 0, 1, 1], [], []>} : vector<32x256xbf16>, vector<256x128xbf16>, vector<32x128xf32> -> vector<32x128xf32>
        %207 = arith.minimumf %206, %193 : vector<32x128xf32>
        %cst_78 = arith.constant 0.000000e+00 : f32
        %208 = vector.shape_cast %199 : vector<32x1xi1> to vector<32x1xi1>
        %209 = vector.broadcast %208 : vector<32x1xi1> to vector<32x128xi1>
        %210 = vector.broadcast %cst_78 : f32 to vector<32x128xf32>
        %211 = arith.select %209, %207, %210 : vector<32x128xi1>, vector<32x128xf32>
        %cst_79 = arith.constant 0.000000e+00 : f32
        %212 = vector.broadcast %cst_79 : f32 to vector<32x1xf32>
        %213 = arith.select %199, %197, %212 : vector<32x1xi1>, vector<32x1xf32>
        %214 = vector.broadcast %213 : vector<32x1xf32> to vector<32x128xf32>
        %215 = arith.mulf %211, %214 : vector<32x128xf32>
        %216 = arith.addf %191, %215 : vector<32x128xf32>
        %217 = arith.addf %192, %211 : vector<32x128xf32>
        %218 = arith.subf %193, %211 : vector<32x128xf32>
        %cst_80 = arith.constant -1.000000e+30 : f32
        %219 = vector.broadcast %cst_80 : f32 to vector<32x256xf32>
        %220 = arith.select %201, %219, %195 : vector<32x256xi1>, vector<32x256xf32>
        %c7_i32 = arith.constant 7 : i32
        %cst_81 = arith.constant dense<0xFF800000> : vector<32xf32>
        %221 = vector.multi_reduction <maximumf>, %220, %cst_81 [1] : vector<32x256xf32> to vector<32xf32>
        %222 = vector.shape_cast %221 : vector<32xf32> to vector<32x1xf32>
        %cst_82 = arith.constant -1.000000e+29 : f32
        %223 = vector.broadcast %cst_82 : f32 to vector<32x1xf32>
        %224 = arith.cmpf ogt, %222, %223 : vector<32x1xf32>
        %225 = vector.broadcast %222 : vector<32x1xf32> to vector<32x256xf32>
        %226 = arith.cmpf oeq, %220, %225 : vector<32x256xf32>
        %cst_83 = arith.constant 1.000000e+00 : f32
        %cst_84 = arith.constant 0.000000e+00 : f32
        %227 = vector.broadcast %cst_83 : f32 to vector<32x256xf32>
        %228 = vector.broadcast %cst_84 : f32 to vector<32x256xf32>
        %229 = arith.select %226, %227, %228 : vector<32x256xi1>, vector<32x256xf32>
        %230 = arith.truncf %229 : vector<32x256xf32> to vector<32x256xbf16>
        %cst_85 = arith.constant dense<0.000000e+00> : vector<32x128xf32>
        %231 = tpu.matmul %230, %32, %cst_85 {dimension_numbers = #tpu.dot_dimension_numbers<[1], [0], [0], [1], [0, 0, 1, 1], [], []>} : vector<32x256xbf16>, vector<256x128xbf16>, vector<32x128xf32> -> vector<32x128xf32>
        %232 = arith.minimumf %231, %218 : vector<32x128xf32>
        %cst_86 = arith.constant 0.000000e+00 : f32
        %233 = vector.shape_cast %224 : vector<32x1xi1> to vector<32x1xi1>
        %234 = vector.broadcast %233 : vector<32x1xi1> to vector<32x128xi1>
        %235 = vector.broadcast %cst_86 : f32 to vector<32x128xf32>
        %236 = arith.select %234, %232, %235 : vector<32x128xi1>, vector<32x128xf32>
        %cst_87 = arith.constant 0.000000e+00 : f32
        %237 = vector.broadcast %cst_87 : f32 to vector<32x1xf32>
        %238 = arith.select %224, %222, %237 : vector<32x1xi1>, vector<32x1xf32>
        %239 = vector.broadcast %238 : vector<32x1xf32> to vector<32x128xf32>
        %240 = arith.mulf %236, %239 : vector<32x128xf32>
        %241 = arith.addf %216, %240 : vector<32x128xf32>
        %242 = arith.addf %217, %236 : vector<32x128xf32>
        %243 = arith.subf %218, %236 : vector<32x128xf32>
        %cst_88 = arith.constant -1.000000e+30 : f32
        %244 = vector.broadcast %cst_88 : f32 to vector<32x256xf32>
        %245 = arith.select %226, %244, %220 : vector<32x256xi1>, vector<32x256xf32>
        %c8_i32_89 = arith.constant 8 : i32
        %cst_90 = arith.constant dense<0xFF800000> : vector<32xf32>
        %246 = vector.multi_reduction <maximumf>, %245, %cst_90 [1] : vector<32x256xf32> to vector<32xf32>
        %247 = vector.shape_cast %246 : vector<32xf32> to vector<32x1xf32>
        %cst_91 = arith.constant -1.000000e+29 : f32
        %248 = vector.broadcast %cst_91 : f32 to vector<32x1xf32>
        %249 = arith.cmpf ogt, %247, %248 : vector<32x1xf32>
        %250 = vector.broadcast %247 : vector<32x1xf32> to vector<32x256xf32>
        %251 = arith.cmpf oeq, %245, %250 : vector<32x256xf32>
        %cst_92 = arith.constant 1.000000e+00 : f32
        %cst_93 = arith.constant 0.000000e+00 : f32
        %252 = vector.broadcast %cst_92 : f32 to vector<32x256xf32>
        %253 = vector.broadcast %cst_93 : f32 to vector<32x256xf32>
        %254 = arith.select %251, %252, %253 : vector<32x256xi1>, vector<32x256xf32>
        %255 = arith.truncf %254 : vector<32x256xf32> to vector<32x256xbf16>
        %cst_94 = arith.constant dense<0.000000e+00> : vector<32x128xf32>
        %256 = tpu.matmul %255, %32, %cst_94 {dimension_numbers = #tpu.dot_dimension_numbers<[1], [0], [0], [1], [0, 0, 1, 1], [], []>} : vector<32x256xbf16>, vector<256x128xbf16>, vector<32x128xf32> -> vector<32x128xf32>
        %257 = arith.minimumf %256, %243 : vector<32x128xf32>
        %cst_95 = arith.constant 0.000000e+00 : f32
        %258 = vector.shape_cast %249 : vector<32x1xi1> to vector<32x1xi1>
        %259 = vector.broadcast %258 : vector<32x1xi1> to vector<32x128xi1>
        %260 = vector.broadcast %cst_95 : f32 to vector<32x128xf32>
        %261 = arith.select %259, %257, %260 : vector<32x128xi1>, vector<32x128xf32>
        %cst_96 = arith.constant 0.000000e+00 : f32
        %262 = vector.broadcast %cst_96 : f32 to vector<32x1xf32>
        %263 = arith.select %249, %247, %262 : vector<32x1xi1>, vector<32x1xf32>
        %264 = vector.broadcast %263 : vector<32x1xf32> to vector<32x128xf32>
        %265 = arith.mulf %261, %264 : vector<32x128xf32>
        %266 = arith.addf %241, %265 : vector<32x128xf32>
        %267 = arith.addf %242, %261 : vector<32x128xf32>
        %268 = arith.subf %243, %261 : vector<32x128xf32>
        %cst_97 = arith.constant -1.000000e+30 : f32
        %269 = vector.broadcast %cst_97 : f32 to vector<32x256xf32>
        %270 = arith.select %251, %269, %245 : vector<32x256xi1>, vector<32x256xf32>
        %c9_i32 = arith.constant 9 : i32
        %cst_98 = arith.constant dense<0xFF800000> : vector<32xf32>
        %271 = vector.multi_reduction <maximumf>, %270, %cst_98 [1] : vector<32x256xf32> to vector<32xf32>
        %272 = vector.shape_cast %271 : vector<32xf32> to vector<32x1xf32>
        %cst_99 = arith.constant -1.000000e+29 : f32
        %273 = vector.broadcast %cst_99 : f32 to vector<32x1xf32>
        %274 = arith.cmpf ogt, %272, %273 : vector<32x1xf32>
        %275 = vector.broadcast %272 : vector<32x1xf32> to vector<32x256xf32>
        %276 = arith.cmpf oeq, %270, %275 : vector<32x256xf32>
        %cst_100 = arith.constant 1.000000e+00 : f32
        %cst_101 = arith.constant 0.000000e+00 : f32
        %277 = vector.broadcast %cst_100 : f32 to vector<32x256xf32>
        %278 = vector.broadcast %cst_101 : f32 to vector<32x256xf32>
        %279 = arith.select %276, %277, %278 : vector<32x256xi1>, vector<32x256xf32>
        %280 = arith.truncf %279 : vector<32x256xf32> to vector<32x256xbf16>
        %cst_102 = arith.constant dense<0.000000e+00> : vector<32x128xf32>
        %281 = tpu.matmul %280, %32, %cst_102 {dimension_numbers = #tpu.dot_dimension_numbers<[1], [0], [0], [1], [0, 0, 1, 1], [], []>} : vector<32x256xbf16>, vector<256x128xbf16>, vector<32x128xf32> -> vector<32x128xf32>
        %282 = arith.minimumf %281, %268 : vector<32x128xf32>
        %cst_103 = arith.constant 0.000000e+00 : f32
        %283 = vector.shape_cast %274 : vector<32x1xi1> to vector<32x1xi1>
        %284 = vector.broadcast %283 : vector<32x1xi1> to vector<32x128xi1>
        %285 = vector.broadcast %cst_103 : f32 to vector<32x128xf32>
        %286 = arith.select %284, %282, %285 : vector<32x128xi1>, vector<32x128xf32>
        %cst_104 = arith.constant 0.000000e+00 : f32
        %287 = vector.broadcast %cst_104 : f32 to vector<32x1xf32>
        %288 = arith.select %274, %272, %287 : vector<32x1xi1>, vector<32x1xf32>
        %289 = vector.broadcast %288 : vector<32x1xf32> to vector<32x128xf32>
        %290 = arith.mulf %286, %289 : vector<32x128xf32>
        %291 = arith.addf %266, %290 : vector<32x128xf32>
        %292 = arith.addf %267, %286 : vector<32x128xf32>
        %293 = arith.subf %268, %286 : vector<32x128xf32>
        %cst_105 = arith.constant -1.000000e+30 : f32
        %294 = vector.broadcast %cst_105 : f32 to vector<32x256xf32>
        %295 = arith.select %276, %294, %270 : vector<32x256xi1>, vector<32x256xf32>
        %c10_i32 = arith.constant 10 : i32
        %cst_106 = arith.constant dense<0xFF800000> : vector<32xf32>
        %296 = vector.multi_reduction <maximumf>, %295, %cst_106 [1] : vector<32x256xf32> to vector<32xf32>
        %297 = vector.shape_cast %296 : vector<32xf32> to vector<32x1xf32>
        %cst_107 = arith.constant -1.000000e+29 : f32
        %298 = vector.broadcast %cst_107 : f32 to vector<32x1xf32>
        %299 = arith.cmpf ogt, %297, %298 : vector<32x1xf32>
        %300 = vector.broadcast %297 : vector<32x1xf32> to vector<32x256xf32>
        %301 = arith.cmpf oeq, %295, %300 : vector<32x256xf32>
        %cst_108 = arith.constant 1.000000e+00 : f32
        %cst_109 = arith.constant 0.000000e+00 : f32
        %302 = vector.broadcast %cst_108 : f32 to vector<32x256xf32>
        %303 = vector.broadcast %cst_109 : f32 to vector<32x256xf32>
        %304 = arith.select %301, %302, %303 : vector<32x256xi1>, vector<32x256xf32>
        %305 = arith.truncf %304 : vector<32x256xf32> to vector<32x256xbf16>
        %cst_110 = arith.constant dense<0.000000e+00> : vector<32x128xf32>
        %306 = tpu.matmul %305, %32, %cst_110 {dimension_numbers = #tpu.dot_dimension_numbers<[1], [0], [0], [1], [0, 0, 1, 1], [], []>} : vector<32x256xbf16>, vector<256x128xbf16>, vector<32x128xf32> -> vector<32x128xf32>
        %307 = arith.minimumf %306, %293 : vector<32x128xf32>
        %cst_111 = arith.constant 0.000000e+00 : f32
        %308 = vector.shape_cast %299 : vector<32x1xi1> to vector<32x1xi1>
        %309 = vector.broadcast %308 : vector<32x1xi1> to vector<32x128xi1>
        %310 = vector.broadcast %cst_111 : f32 to vector<32x128xf32>
        %311 = arith.select %309, %307, %310 : vector<32x128xi1>, vector<32x128xf32>
        %cst_112 = arith.constant 0.000000e+00 : f32
        %312 = vector.broadcast %cst_112 : f32 to vector<32x1xf32>
        %313 = arith.select %299, %297, %312 : vector<32x1xi1>, vector<32x1xf32>
        %314 = vector.broadcast %313 : vector<32x1xf32> to vector<32x128xf32>
        %315 = arith.mulf %311, %314 : vector<32x128xf32>
        %316 = arith.addf %291, %315 : vector<32x128xf32>
        %317 = arith.addf %292, %311 : vector<32x128xf32>
        %318 = arith.subf %293, %311 : vector<32x128xf32>
        %cst_113 = arith.constant -1.000000e+30 : f32
        %319 = vector.broadcast %cst_113 : f32 to vector<32x256xf32>
        %320 = arith.select %301, %319, %295 : vector<32x256xi1>, vector<32x256xf32>
        %c11_i32 = arith.constant 11 : i32
        %cst_114 = arith.constant dense<0xFF800000> : vector<32xf32>
        %321 = vector.multi_reduction <maximumf>, %320, %cst_114 [1] : vector<32x256xf32> to vector<32xf32>
        %322 = vector.shape_cast %321 : vector<32xf32> to vector<32x1xf32>
        %cst_115 = arith.constant -1.000000e+29 : f32
        %323 = vector.broadcast %cst_115 : f32 to vector<32x1xf32>
        %324 = arith.cmpf ogt, %322, %323 : vector<32x1xf32>
        %325 = vector.broadcast %322 : vector<32x1xf32> to vector<32x256xf32>
        %326 = arith.cmpf oeq, %320, %325 : vector<32x256xf32>
        %cst_116 = arith.constant 1.000000e+00 : f32
        %cst_117 = arith.constant 0.000000e+00 : f32
        %327 = vector.broadcast %cst_116 : f32 to vector<32x256xf32>
        %328 = vector.broadcast %cst_117 : f32 to vector<32x256xf32>
        %329 = arith.select %326, %327, %328 : vector<32x256xi1>, vector<32x256xf32>
        %330 = arith.truncf %329 : vector<32x256xf32> to vector<32x256xbf16>
        %cst_118 = arith.constant dense<0.000000e+00> : vector<32x128xf32>
        %331 = tpu.matmul %330, %32, %cst_118 {dimension_numbers = #tpu.dot_dimension_numbers<[1], [0], [0], [1], [0, 0, 1, 1], [], []>} : vector<32x256xbf16>, vector<256x128xbf16>, vector<32x128xf32> -> vector<32x128xf32>
        %332 = arith.minimumf %331, %318 : vector<32x128xf32>
        %cst_119 = arith.constant 0.000000e+00 : f32
        %333 = vector.shape_cast %324 : vector<32x1xi1> to vector<32x1xi1>
        %334 = vector.broadcast %333 : vector<32x1xi1> to vector<32x128xi1>
        %335 = vector.broadcast %cst_119 : f32 to vector<32x128xf32>
        %336 = arith.select %334, %332, %335 : vector<32x128xi1>, vector<32x128xf32>
        %cst_120 = arith.constant 0.000000e+00 : f32
        %337 = vector.broadcast %cst_120 : f32 to vector<32x1xf32>
        %338 = arith.select %324, %322, %337 : vector<32x1xi1>, vector<32x1xf32>
        %339 = vector.broadcast %338 : vector<32x1xf32> to vector<32x128xf32>
        %340 = arith.mulf %336, %339 : vector<32x128xf32>
        %341 = arith.addf %316, %340 : vector<32x128xf32>
        %342 = arith.addf %317, %336 : vector<32x128xf32>
        %343 = arith.subf %318, %336 : vector<32x128xf32>
        %cst_121 = arith.constant -1.000000e+30 : f32
        %344 = vector.broadcast %cst_121 : f32 to vector<32x256xf32>
        %345 = arith.select %326, %344, %320 : vector<32x256xi1>, vector<32x256xf32>
        %c12_i32 = arith.constant 12 : i32
        %cst_122 = arith.constant dense<0xFF800000> : vector<32xf32>
        %346 = vector.multi_reduction <maximumf>, %345, %cst_122 [1] : vector<32x256xf32> to vector<32xf32>
        %347 = vector.shape_cast %346 : vector<32xf32> to vector<32x1xf32>
        %cst_123 = arith.constant -1.000000e+29 : f32
        %348 = vector.broadcast %cst_123 : f32 to vector<32x1xf32>
        %349 = arith.cmpf ogt, %347, %348 : vector<32x1xf32>
        %350 = vector.broadcast %347 : vector<32x1xf32> to vector<32x256xf32>
        %351 = arith.cmpf oeq, %345, %350 : vector<32x256xf32>
        %cst_124 = arith.constant 1.000000e+00 : f32
        %cst_125 = arith.constant 0.000000e+00 : f32
        %352 = vector.broadcast %cst_124 : f32 to vector<32x256xf32>
        %353 = vector.broadcast %cst_125 : f32 to vector<32x256xf32>
        %354 = arith.select %351, %352, %353 : vector<32x256xi1>, vector<32x256xf32>
        %355 = arith.truncf %354 : vector<32x256xf32> to vector<32x256xbf16>
        %cst_126 = arith.constant dense<0.000000e+00> : vector<32x128xf32>
        %356 = tpu.matmul %355, %32, %cst_126 {dimension_numbers = #tpu.dot_dimension_numbers<[1], [0], [0], [1], [0, 0, 1, 1], [], []>} : vector<32x256xbf16>, vector<256x128xbf16>, vector<32x128xf32> -> vector<32x128xf32>
        %357 = arith.minimumf %356, %343 : vector<32x128xf32>
        %cst_127 = arith.constant 0.000000e+00 : f32
        %358 = vector.shape_cast %349 : vector<32x1xi1> to vector<32x1xi1>
        %359 = vector.broadcast %358 : vector<32x1xi1> to vector<32x128xi1>
        %360 = vector.broadcast %cst_127 : f32 to vector<32x128xf32>
        %361 = arith.select %359, %357, %360 : vector<32x128xi1>, vector<32x128xf32>
        %cst_128 = arith.constant 0.000000e+00 : f32
        %362 = vector.broadcast %cst_128 : f32 to vector<32x1xf32>
        %363 = arith.select %349, %347, %362 : vector<32x1xi1>, vector<32x1xf32>
        %364 = vector.broadcast %363 : vector<32x1xf32> to vector<32x128xf32>
        %365 = arith.mulf %361, %364 : vector<32x128xf32>
        %366 = arith.addf %341, %365 : vector<32x128xf32>
        %367 = arith.addf %342, %361 : vector<32x128xf32>
        %368 = arith.subf %343, %361 : vector<32x128xf32>
        %cst_129 = arith.constant -1.000000e+30 : f32
        %369 = vector.broadcast %cst_129 : f32 to vector<32x256xf32>
        %370 = arith.select %351, %369, %345 : vector<32x256xi1>, vector<32x256xf32>
        %c13_i32 = arith.constant 13 : i32
        %cst_130 = arith.constant dense<0xFF800000> : vector<32xf32>
        %371 = vector.multi_reduction <maximumf>, %370, %cst_130 [1] : vector<32x256xf32> to vector<32xf32>
        %372 = vector.shape_cast %371 : vector<32xf32> to vector<32x1xf32>
        %cst_131 = arith.constant -1.000000e+29 : f32
        %373 = vector.broadcast %cst_131 : f32 to vector<32x1xf32>
        %374 = arith.cmpf ogt, %372, %373 : vector<32x1xf32>
        %375 = vector.broadcast %372 : vector<32x1xf32> to vector<32x256xf32>
        %376 = arith.cmpf oeq, %370, %375 : vector<32x256xf32>
        %cst_132 = arith.constant 1.000000e+00 : f32
        %cst_133 = arith.constant 0.000000e+00 : f32
        %377 = vector.broadcast %cst_132 : f32 to vector<32x256xf32>
        %378 = vector.broadcast %cst_133 : f32 to vector<32x256xf32>
        %379 = arith.select %376, %377, %378 : vector<32x256xi1>, vector<32x256xf32>
        %380 = arith.truncf %379 : vector<32x256xf32> to vector<32x256xbf16>
        %cst_134 = arith.constant dense<0.000000e+00> : vector<32x128xf32>
        %381 = tpu.matmul %380, %32, %cst_134 {dimension_numbers = #tpu.dot_dimension_numbers<[1], [0], [0], [1], [0, 0, 1, 1], [], []>} : vector<32x256xbf16>, vector<256x128xbf16>, vector<32x128xf32> -> vector<32x128xf32>
        %382 = arith.minimumf %381, %368 : vector<32x128xf32>
        %cst_135 = arith.constant 0.000000e+00 : f32
        %383 = vector.shape_cast %374 : vector<32x1xi1> to vector<32x1xi1>
        %384 = vector.broadcast %383 : vector<32x1xi1> to vector<32x128xi1>
        %385 = vector.broadcast %cst_135 : f32 to vector<32x128xf32>
        %386 = arith.select %384, %382, %385 : vector<32x128xi1>, vector<32x128xf32>
        %cst_136 = arith.constant 0.000000e+00 : f32
        %387 = vector.broadcast %cst_136 : f32 to vector<32x1xf32>
        %388 = arith.select %374, %372, %387 : vector<32x1xi1>, vector<32x1xf32>
        %389 = vector.broadcast %388 : vector<32x1xf32> to vector<32x128xf32>
        %390 = arith.mulf %386, %389 : vector<32x128xf32>
        %391 = arith.addf %366, %390 : vector<32x128xf32>
        %392 = arith.addf %367, %386 : vector<32x128xf32>
        %393 = arith.subf %368, %386 : vector<32x128xf32>
        %cst_137 = arith.constant -1.000000e+30 : f32
        %394 = vector.broadcast %cst_137 : f32 to vector<32x256xf32>
        %395 = arith.select %376, %394, %370 : vector<32x256xi1>, vector<32x256xf32>
        %c14_i32 = arith.constant 14 : i32
        %cst_138 = arith.constant dense<0xFF800000> : vector<32xf32>
        %396 = vector.multi_reduction <maximumf>, %395, %cst_138 [1] : vector<32x256xf32> to vector<32xf32>
        %397 = vector.shape_cast %396 : vector<32xf32> to vector<32x1xf32>
        %cst_139 = arith.constant -1.000000e+29 : f32
        %398 = vector.broadcast %cst_139 : f32 to vector<32x1xf32>
        %399 = arith.cmpf ogt, %397, %398 : vector<32x1xf32>
        %400 = vector.broadcast %397 : vector<32x1xf32> to vector<32x256xf32>
        %401 = arith.cmpf oeq, %395, %400 : vector<32x256xf32>
        %cst_140 = arith.constant 1.000000e+00 : f32
        %cst_141 = arith.constant 0.000000e+00 : f32
        %402 = vector.broadcast %cst_140 : f32 to vector<32x256xf32>
        %403 = vector.broadcast %cst_141 : f32 to vector<32x256xf32>
        %404 = arith.select %401, %402, %403 : vector<32x256xi1>, vector<32x256xf32>
        %405 = arith.truncf %404 : vector<32x256xf32> to vector<32x256xbf16>
        %cst_142 = arith.constant dense<0.000000e+00> : vector<32x128xf32>
        %406 = tpu.matmul %405, %32, %cst_142 {dimension_numbers = #tpu.dot_dimension_numbers<[1], [0], [0], [1], [0, 0, 1, 1], [], []>} : vector<32x256xbf16>, vector<256x128xbf16>, vector<32x128xf32> -> vector<32x128xf32>
        %407 = arith.minimumf %406, %393 : vector<32x128xf32>
        %cst_143 = arith.constant 0.000000e+00 : f32
        %408 = vector.shape_cast %399 : vector<32x1xi1> to vector<32x1xi1>
        %409 = vector.broadcast %408 : vector<32x1xi1> to vector<32x128xi1>
        %410 = vector.broadcast %cst_143 : f32 to vector<32x128xf32>
        %411 = arith.select %409, %407, %410 : vector<32x128xi1>, vector<32x128xf32>
        %cst_144 = arith.constant 0.000000e+00 : f32
        %412 = vector.broadcast %cst_144 : f32 to vector<32x1xf32>
        %413 = arith.select %399, %397, %412 : vector<32x1xi1>, vector<32x1xf32>
        %414 = vector.broadcast %413 : vector<32x1xf32> to vector<32x128xf32>
        %415 = arith.mulf %411, %414 : vector<32x128xf32>
        %416 = arith.addf %391, %415 : vector<32x128xf32>
        %417 = arith.addf %392, %411 : vector<32x128xf32>
        %418 = arith.subf %393, %411 : vector<32x128xf32>
        %cst_145 = arith.constant -1.000000e+30 : f32
        %419 = vector.broadcast %cst_145 : f32 to vector<32x256xf32>
        %420 = arith.select %401, %419, %395 : vector<32x256xi1>, vector<32x256xf32>
        %c15_i32 = arith.constant 15 : i32
        %cst_146 = arith.constant dense<0xFF800000> : vector<32xf32>
        %421 = vector.multi_reduction <maximumf>, %420, %cst_146 [1] : vector<32x256xf32> to vector<32xf32>
        %422 = vector.shape_cast %421 : vector<32xf32> to vector<32x1xf32>
        %cst_147 = arith.constant -1.000000e+29 : f32
        %423 = vector.broadcast %cst_147 : f32 to vector<32x1xf32>
        %424 = arith.cmpf ogt, %422, %423 : vector<32x1xf32>
        %425 = vector.broadcast %422 : vector<32x1xf32> to vector<32x256xf32>
        %426 = arith.cmpf oeq, %420, %425 : vector<32x256xf32>
        %cst_148 = arith.constant 1.000000e+00 : f32
        %cst_149 = arith.constant 0.000000e+00 : f32
        %427 = vector.broadcast %cst_148 : f32 to vector<32x256xf32>
        %428 = vector.broadcast %cst_149 : f32 to vector<32x256xf32>
        %429 = arith.select %426, %427, %428 : vector<32x256xi1>, vector<32x256xf32>
        %430 = arith.truncf %429 : vector<32x256xf32> to vector<32x256xbf16>
        %cst_150 = arith.constant dense<0.000000e+00> : vector<32x128xf32>
        %431 = tpu.matmul %430, %32, %cst_150 {dimension_numbers = #tpu.dot_dimension_numbers<[1], [0], [0], [1], [0, 0, 1, 1], [], []>} : vector<32x256xbf16>, vector<256x128xbf16>, vector<32x128xf32> -> vector<32x128xf32>
        %432 = arith.minimumf %431, %418 : vector<32x128xf32>
        %cst_151 = arith.constant 0.000000e+00 : f32
        %433 = vector.shape_cast %424 : vector<32x1xi1> to vector<32x1xi1>
        %434 = vector.broadcast %433 : vector<32x1xi1> to vector<32x128xi1>
        %435 = vector.broadcast %cst_151 : f32 to vector<32x128xf32>
        %436 = arith.select %434, %432, %435 : vector<32x128xi1>, vector<32x128xf32>
        %cst_152 = arith.constant 0.000000e+00 : f32
        %437 = vector.broadcast %cst_152 : f32 to vector<32x1xf32>
        %438 = arith.select %424, %422, %437 : vector<32x1xi1>, vector<32x1xf32>
        %439 = vector.broadcast %438 : vector<32x1xf32> to vector<32x128xf32>
        %440 = arith.mulf %436, %439 : vector<32x128xf32>
        %441 = arith.addf %416, %440 : vector<32x128xf32>
        %442 = arith.addf %417, %436 : vector<32x128xf32>
        %443 = arith.subf %418, %436 : vector<32x128xf32>
        %cst_153 = arith.constant -1.000000e+30 : f32
        %444 = vector.broadcast %cst_153 : f32 to vector<32x256xf32>
        %445 = arith.select %426, %444, %420 : vector<32x256xi1>, vector<32x256xf32>
        %c16_i32_154 = arith.constant 16 : i32
        %cst_155 = arith.constant dense<0xFF800000> : vector<32xf32>
        %446 = vector.multi_reduction <maximumf>, %445, %cst_155 [1] : vector<32x256xf32> to vector<32xf32>
        %447 = vector.shape_cast %446 : vector<32xf32> to vector<32x1xf32>
        %cst_156 = arith.constant -1.000000e+29 : f32
        %448 = vector.broadcast %cst_156 : f32 to vector<32x1xf32>
        %449 = arith.cmpf ogt, %447, %448 : vector<32x1xf32>
        %450 = vector.broadcast %447 : vector<32x1xf32> to vector<32x256xf32>
        %451 = arith.cmpf oeq, %445, %450 : vector<32x256xf32>
        %cst_157 = arith.constant 1.000000e+00 : f32
        %cst_158 = arith.constant 0.000000e+00 : f32
        %452 = vector.broadcast %cst_157 : f32 to vector<32x256xf32>
        %453 = vector.broadcast %cst_158 : f32 to vector<32x256xf32>
        %454 = arith.select %451, %452, %453 : vector<32x256xi1>, vector<32x256xf32>
        %455 = arith.truncf %454 : vector<32x256xf32> to vector<32x256xbf16>
        %cst_159 = arith.constant dense<0.000000e+00> : vector<32x128xf32>
        %456 = tpu.matmul %455, %32, %cst_159 {dimension_numbers = #tpu.dot_dimension_numbers<[1], [0], [0], [1], [0, 0, 1, 1], [], []>} : vector<32x256xbf16>, vector<256x128xbf16>, vector<32x128xf32> -> vector<32x128xf32>
        %457 = arith.minimumf %456, %443 : vector<32x128xf32>
        %cst_160 = arith.constant 0.000000e+00 : f32
        %458 = vector.shape_cast %449 : vector<32x1xi1> to vector<32x1xi1>
        %459 = vector.broadcast %458 : vector<32x1xi1> to vector<32x128xi1>
        %460 = vector.broadcast %cst_160 : f32 to vector<32x128xf32>
        %461 = arith.select %459, %457, %460 : vector<32x128xi1>, vector<32x128xf32>
        %cst_161 = arith.constant 0.000000e+00 : f32
        %462 = vector.broadcast %cst_161 : f32 to vector<32x1xf32>
        %463 = arith.select %449, %447, %462 : vector<32x1xi1>, vector<32x1xf32>
        %464 = vector.broadcast %463 : vector<32x1xf32> to vector<32x128xf32>
        %465 = arith.mulf %461, %464 : vector<32x128xf32>
        %466 = arith.addf %441, %465 : vector<32x128xf32>
        %467 = arith.addf %442, %461 : vector<32x128xf32>
        %468 = arith.subf %443, %461 : vector<32x128xf32>
        %cst_162 = arith.constant -1.000000e+30 : f32
        %469 = vector.broadcast %cst_162 : f32 to vector<32x256xf32>
        %470 = arith.select %451, %469, %445 : vector<32x256xi1>, vector<32x256xf32>
        %c17_i32 = arith.constant 17 : i32
        %cst_163 = arith.constant dense<0xFF800000> : vector<32xf32>
        %471 = vector.multi_reduction <maximumf>, %470, %cst_163 [1] : vector<32x256xf32> to vector<32xf32>
        %472 = vector.shape_cast %471 : vector<32xf32> to vector<32x1xf32>
        %cst_164 = arith.constant -1.000000e+29 : f32
        %473 = vector.broadcast %cst_164 : f32 to vector<32x1xf32>
        %474 = arith.cmpf ogt, %472, %473 : vector<32x1xf32>
        %475 = vector.broadcast %472 : vector<32x1xf32> to vector<32x256xf32>
        %476 = arith.cmpf oeq, %470, %475 : vector<32x256xf32>
        %cst_165 = arith.constant 1.000000e+00 : f32
        %cst_166 = arith.constant 0.000000e+00 : f32
        %477 = vector.broadcast %cst_165 : f32 to vector<32x256xf32>
        %478 = vector.broadcast %cst_166 : f32 to vector<32x256xf32>
        %479 = arith.select %476, %477, %478 : vector<32x256xi1>, vector<32x256xf32>
        %480 = arith.truncf %479 : vector<32x256xf32> to vector<32x256xbf16>
        %cst_167 = arith.constant dense<0.000000e+00> : vector<32x128xf32>
        %481 = tpu.matmul %480, %32, %cst_167 {dimension_numbers = #tpu.dot_dimension_numbers<[1], [0], [0], [1], [0, 0, 1, 1], [], []>} : vector<32x256xbf16>, vector<256x128xbf16>, vector<32x128xf32> -> vector<32x128xf32>
        %482 = arith.minimumf %481, %468 : vector<32x128xf32>
        %cst_168 = arith.constant 0.000000e+00 : f32
        %483 = vector.shape_cast %474 : vector<32x1xi1> to vector<32x1xi1>
        %484 = vector.broadcast %483 : vector<32x1xi1> to vector<32x128xi1>
        %485 = vector.broadcast %cst_168 : f32 to vector<32x128xf32>
        %486 = arith.select %484, %482, %485 : vector<32x128xi1>, vector<32x128xf32>
        %cst_169 = arith.constant 0.000000e+00 : f32
        %487 = vector.broadcast %cst_169 : f32 to vector<32x1xf32>
        %488 = arith.select %474, %472, %487 : vector<32x1xi1>, vector<32x1xf32>
        %489 = vector.broadcast %488 : vector<32x1xf32> to vector<32x128xf32>
        %490 = arith.mulf %486, %489 : vector<32x128xf32>
        %491 = arith.addf %466, %490 : vector<32x128xf32>
        %492 = arith.addf %467, %486 : vector<32x128xf32>
        %493 = arith.subf %468, %486 : vector<32x128xf32>
        %cst_170 = arith.constant -1.000000e+30 : f32
        %494 = vector.broadcast %cst_170 : f32 to vector<32x256xf32>
        %495 = arith.select %476, %494, %470 : vector<32x256xi1>, vector<32x256xf32>
        %c18_i32 = arith.constant 18 : i32
        %cst_171 = arith.constant dense<0xFF800000> : vector<32xf32>
        %496 = vector.multi_reduction <maximumf>, %495, %cst_171 [1] : vector<32x256xf32> to vector<32xf32>
        %497 = vector.shape_cast %496 : vector<32xf32> to vector<32x1xf32>
        %cst_172 = arith.constant -1.000000e+29 : f32
        %498 = vector.broadcast %cst_172 : f32 to vector<32x1xf32>
        %499 = arith.cmpf ogt, %497, %498 : vector<32x1xf32>
        %500 = vector.broadcast %497 : vector<32x1xf32> to vector<32x256xf32>
        %501 = arith.cmpf oeq, %495, %500 : vector<32x256xf32>
        %cst_173 = arith.constant 1.000000e+00 : f32
        %cst_174 = arith.constant 0.000000e+00 : f32
        %502 = vector.broadcast %cst_173 : f32 to vector<32x256xf32>
        %503 = vector.broadcast %cst_174 : f32 to vector<32x256xf32>
        %504 = arith.select %501, %502, %503 : vector<32x256xi1>, vector<32x256xf32>
        %505 = arith.truncf %504 : vector<32x256xf32> to vector<32x256xbf16>
        %cst_175 = arith.constant dense<0.000000e+00> : vector<32x128xf32>
        %506 = tpu.matmul %505, %32, %cst_175 {dimension_numbers = #tpu.dot_dimension_numbers<[1], [0], [0], [1], [0, 0, 1, 1], [], []>} : vector<32x256xbf16>, vector<256x128xbf16>, vector<32x128xf32> -> vector<32x128xf32>
        %507 = arith.minimumf %506, %493 : vector<32x128xf32>
        %cst_176 = arith.constant 0.000000e+00 : f32
        %508 = vector.shape_cast %499 : vector<32x1xi1> to vector<32x1xi1>
        %509 = vector.broadcast %508 : vector<32x1xi1> to vector<32x128xi1>
        %510 = vector.broadcast %cst_176 : f32 to vector<32x128xf32>
        %511 = arith.select %509, %507, %510 : vector<32x128xi1>, vector<32x128xf32>
        %cst_177 = arith.constant 0.000000e+00 : f32
        %512 = vector.broadcast %cst_177 : f32 to vector<32x1xf32>
        %513 = arith.select %499, %497, %512 : vector<32x1xi1>, vector<32x1xf32>
        %514 = vector.broadcast %513 : vector<32x1xf32> to vector<32x128xf32>
        %515 = arith.mulf %511, %514 : vector<32x128xf32>
        %516 = arith.addf %491, %515 : vector<32x128xf32>
        %517 = arith.addf %492, %511 : vector<32x128xf32>
        %518 = arith.subf %493, %511 : vector<32x128xf32>
        %cst_178 = arith.constant -1.000000e+30 : f32
        %519 = vector.broadcast %cst_178 : f32 to vector<32x256xf32>
        %520 = arith.select %501, %519, %495 : vector<32x256xi1>, vector<32x256xf32>
        %c19_i32 = arith.constant 19 : i32
        %cst_179 = arith.constant dense<0xFF800000> : vector<32xf32>
        %521 = vector.multi_reduction <maximumf>, %520, %cst_179 [1] : vector<32x256xf32> to vector<32xf32>
        %522 = vector.shape_cast %521 : vector<32xf32> to vector<32x1xf32>
        %cst_180 = arith.constant -1.000000e+29 : f32
        %523 = vector.broadcast %cst_180 : f32 to vector<32x1xf32>
        %524 = arith.cmpf ogt, %522, %523 : vector<32x1xf32>
        %525 = vector.broadcast %522 : vector<32x1xf32> to vector<32x256xf32>
        %526 = arith.cmpf oeq, %520, %525 : vector<32x256xf32>
        %cst_181 = arith.constant 1.000000e+00 : f32
        %cst_182 = arith.constant 0.000000e+00 : f32
        %527 = vector.broadcast %cst_181 : f32 to vector<32x256xf32>
        %528 = vector.broadcast %cst_182 : f32 to vector<32x256xf32>
        %529 = arith.select %526, %527, %528 : vector<32x256xi1>, vector<32x256xf32>
        %530 = arith.truncf %529 : vector<32x256xf32> to vector<32x256xbf16>
        %cst_183 = arith.constant dense<0.000000e+00> : vector<32x128xf32>
        %531 = tpu.matmul %530, %32, %cst_183 {dimension_numbers = #tpu.dot_dimension_numbers<[1], [0], [0], [1], [0, 0, 1, 1], [], []>} : vector<32x256xbf16>, vector<256x128xbf16>, vector<32x128xf32> -> vector<32x128xf32>
        %532 = arith.minimumf %531, %518 : vector<32x128xf32>
        %cst_184 = arith.constant 0.000000e+00 : f32
        %533 = vector.shape_cast %524 : vector<32x1xi1> to vector<32x1xi1>
        %534 = vector.broadcast %533 : vector<32x1xi1> to vector<32x128xi1>
        %535 = vector.broadcast %cst_184 : f32 to vector<32x128xf32>
        %536 = arith.select %534, %532, %535 : vector<32x128xi1>, vector<32x128xf32>
        %cst_185 = arith.constant 0.000000e+00 : f32
        %537 = vector.broadcast %cst_185 : f32 to vector<32x1xf32>
        %538 = arith.select %524, %522, %537 : vector<32x1xi1>, vector<32x1xf32>
        %539 = vector.broadcast %538 : vector<32x1xf32> to vector<32x128xf32>
        %540 = arith.mulf %536, %539 : vector<32x128xf32>
        %541 = arith.addf %516, %540 : vector<32x128xf32>
        %542 = arith.addf %517, %536 : vector<32x128xf32>
        %543 = arith.subf %518, %536 : vector<32x128xf32>
        %cst_186 = arith.constant -1.000000e+30 : f32
        %544 = vector.broadcast %cst_186 : f32 to vector<32x256xf32>
        %545 = arith.select %526, %544, %520 : vector<32x256xi1>, vector<32x256xf32>
        %546 = vector.extract_strided_slice %541 {offsets = [0, 0], sizes = [32, 1], strides = [1, 1]} : vector<32x128xf32> to vector<32x1xf32>
        %547 = vector.extract_strided_slice %542 {offsets = [0, 0], sizes = [32, 1], strides = [1, 1]} : vector<32x128xf32> to vector<32x1xf32>
        %cst_187 = arith.constant 0.000000e+00 : f32
        %548 = vector.broadcast %cst_187 : f32 to vector<32x1xf32>
        %549 = arith.cmpf ogt, %547, %548 : vector<32x1xf32>
        %550 = arith.divf %546, %547 : vector<32x1xf32>
        %cst_188 = arith.constant 0.000000e+00 : f32
        %551 = vector.broadcast %cst_188 : f32 to vector<32x1xf32>
        %552 = arith.select %549, %550, %551 : vector<32x1xi1>, vector<32x1xf32>
        %553 = vector.extract_strided_slice %552 {offsets = [0, 0], sizes = [16, 1], strides = [1, 1]} : vector<32x1xf32> to vector<16x1xf32>
        %554 = arith.index_cast %38 : i32 to index
        %c0_189 = arith.constant 0 : index
        %555 = vector.load %arg4[%554, %c0_189] : memref<128x1xf32, #tpu.memory_space<vmem>>, vector<16x1xf32>
        tpu.vector_store %arg4[%554, %c0_189], %553 {strides = array<i32>} : memref<128x1xf32, #tpu.memory_space<vmem>>, vector<16x1xf32>,
        %556 = vector.extract_strided_slice %552 {offsets = [16, 0], sizes = [16, 1], strides = [1, 1]} : vector<32x1xf32> to vector<16x1xf32>
        %557 = arith.index_cast %38 : i32 to index
        %c0_190 = arith.constant 0 : index
        %558 = vector.load %arg5[%557, %c0_190] : memref<128x1xf32, #tpu.memory_space<vmem>>, vector<16x1xf32>
        tpu.vector_store %arg5[%557, %c0_190], %556 {strides = array<i32>} : memref<128x1xf32, #tpu.memory_space<vmem>>, vector<16x1xf32>,
      } else {
      }
    }
    %c8_i32_20 = arith.constant 8 : i32
    return
  }
  func.func @transform_0(%arg0: i32) -> (i32, i32) {
    %c0_i32 = arith.constant 0 : i32
    %c0_i32_0 = arith.constant 0 : i32
    return %arg0, %c0_i32 : i32, i32
  }
  func.func @transform_1(%arg0: i32) -> (i32, i32) {
    %c0_i32 = arith.constant 0 : i32
    %c0_i32_0 = arith.constant 0 : i32
    %c0_i32_1 = arith.constant 0 : i32
    return %c0_i32, %c0_i32_0 : i32, i32
  }
  func.func @transform_2(%arg0: i32) -> (i32, i32) {
    %c0_i32 = arith.constant 0 : i32
    %c0_i32_0 = arith.constant 0 : i32
    %c0_i32_1 = arith.constant 0 : i32
    return %c0_i32, %c0_i32_0 : i32, i32
  }
  func.func @transform_3(%arg0: i32) -> (i32, i32) {
    %c0_i32 = arith.constant 0 : i32
    %c0_i32_0 = arith.constant 0 : i32
    return %arg0, %c0_i32 : i32, i32
  }
  func.func @transform_4(%arg0: i32) -> (i32, i32) {
    %c0_i32 = arith.constant 0 : i32
    %c0_i32_0 = arith.constant 0 : i32
    return %arg0, %c0_i32 : i32, i32
  }
}

</mosaic_0001>

<llo_original>
// kernel: tpu_custom_call.1
$region0: #{tpu_custom_call.1}
  #allocation0 [shape = 'u32[]', space=smem, size = 0x4, offset = 0x4, fixed_abs, tag = 'smem constant byte address 0x4 - core index']
  #allocation1 [shape = 'u32[144,128]{1,0:T(1,128)}', space=vmem, size = 0x12000, scoped, tag = 'internal scratch']
  #allocation2 [shape = 'f32[128,256]{1,0:T(8,128)}', space=vmem, size = 0x20000, scoped, tag = 'scratch operand']
  %s0 = inlined_call_operand.vmem [shape: f32[256,32], index: 0, kind: input, shape index: {}]
  %s1 = inlined_call_operand.vmem [shape: bf16[32,256], index: 1, kind: input, shape index: {}]
  %s2 = inlined_call_operand.vmem [shape: f32[1,256], index: 2, kind: input, shape index: {}]
  %s3 = inlined_call_operand.vmem [shape: f32[256,1], index: 3, kind: output, shape index: {0}]
  %s4 = inlined_call_operand.vmem [shape: f32[256,1], index: 4, kind: output, shape index: {1}]
  %5 = xla_tuple %s3, %s4
  %s6 = sld [smem:[#allocation0]]
  $region64: #{tpu_custom_call.1} parent=0
    _
  %s8 = ssub.s32 1, %s6
  %s9 = scalar_select 0, %s8, %s6
  loop: start=0, step=1, limit=4
  $region2: #{tpu_custom_call.1} parent=0 // loop_pre_header
    _
  $region3: #{tpu_custom_call.1} parent=0 // loop_header
    %s11 = sphi 0, %s15
    %p12 = scmp.ge.s32.totalorder %s11, 4
    %s21 = sphi 0, %s23
    %s24 = sphi 0, %s21
    %s25 = sphi 0, %s24
    %s41 = sphi 0, %s25
    %s45 = sphi 0, %s45
    %s47 = sphi 0, %s45
    %s48 = sphi 0, %s47
    %s62 = sphi 0, %s48
    %s66 = sphi 0, %s66
    %s68 = sphi 0, %s66
    %s69 = sphi 0, %s68
    %s83 = sphi 0, %s69
    %s89 = sphi 0, %s91
    %s92 = sphi 0, %s89
    %s93 = sphi 0, %s92
    %s109 = sphi 0, %s93
    %s115 = sphi 0, %s117
    %s118 = sphi 0, %s115
    %s119 = sphi 0, %s118
    %s135 = sphi 0, %s119
  $region4: #{tpu_custom_call.1} parent=0 // loop_header_branch
    %14 = sbr.rel (%p12) target = $region8
  $region5: #{tpu_custom_call.1} parent=0 // loop_body
    %s16 = ssub.s32 %s11, 1
    %s17 = ssub.s32 %s11, 2
    %s18 = sadd.s32 %s11, 1
    %s19 = ssub.s32 %s11, %s18
    %p20 = scmp.eq.s32.totalorder %s19, 0
    %s22 = sadd.s32 %s21, 1
    %s23 = scalar_select %p20, %s21, %s22
    %p26 = pneg %p20
    %p27 = scmp.eq.s32.totalorder %s11, 1
    %p28 = por %p26, %p27
    %p29 = scmp.ne.s32.totalorder %s21, %s24
    %p30 = scmp.eq.s32.totalorder %s11, 0
    %p31 = por %p29, %p30
    %p32 = scmp.ne.s32.totalorder %s21, %s24
    %p33 = scmp.eq.s32.totalorder %s16, 1
    %p34 = por %p32, %p33
    %p35 = scmp.ne.s32.totalorder %s24, %s25
    %p36 = scmp.eq.s32.totalorder %s16, 0
    %p37 = por %p35, %p36
    %p38 = scmp.ne.s32.totalorder %s24, %s25
    %p39 = scmp.eq.s32.totalorder %s17, 1
    %p40 = por %p38, %p39
    %p42 = scmp.ne.s32.totalorder %s25, %s41
    %p43 = scmp.eq.s32.totalorder %s17, 0
    %p44 = por %p42, %p43
    %s46 = sadd.s32 %s45, 1
    %p49 = scmp.eq.s32.totalorder %s11, 1
    %p50 = scmp.ne.s32.totalorder %s45, %s47
    %p51 = scmp.eq.s32.totalorder %s11, 0
    %p52 = por %p50, %p51
    %p53 = scmp.ne.s32.totalorder %s45, %s47
    %p54 = scmp.eq.s32.totalorder %s16, 1
    %p55 = por %p53, %p54
    %p56 = scmp.ne.s32.totalorder %s47, %s48
    %p57 = scmp.eq.s32.totalorder %s16, 0
    %p58 = por %p56, %p57
    %p59 = scmp.ne.s32.totalorder %s47, %s48
    %p60 = scmp.eq.s32.totalorder %s17, 1
    %p61 = por %p59, %p60
    %p63 = scmp.ne.s32.totalorder %s48, %s62
    %p64 = scmp.eq.s32.totalorder %s17, 0
    %p65 = por %p63, %p64
    %s67 = sadd.s32 %s66, 1
    %p70 = scmp.eq.s32.totalorder %s11, 1
    %p71 = scmp.ne.s32.totalorder %s66, %s68
    %p72 = scmp.eq.s32.totalorder %s11, 0
    %p73 = por %p71, %p72
    %p74 = scmp.ne.s32.totalorder %s66, %s68
    %p75 = scmp.eq.s32.totalorder %s16, 1
    %p76 = por %p74, %p75
    %p77 = scmp.ne.s32.totalorder %s68, %s69
    %p78 = scmp.eq.s32.totalorder %s16, 0
    %p79 = por %p77, %p78
    %p80 = scmp.ne.s32.totalorder %s68, %s69
    %p81 = scmp.eq.s32.totalorder %s17, 1
    %p82 = por %p80, %p81
    %p84 = scmp.ne.s32.totalorder %s69, %s83
    %p85 = scmp.eq.s32.totalorder %s17, 0
    %p86 = por %p84, %p85
    %s87 = ssub.s32 %s11, %s18
    %p88 = scmp.eq.s32.totalorder %s87, 0
    %s90 = sadd.s32 %s89, 1
    %s91 = scalar_select %p88, %s89, %s90
    %p94 = pneg %p88
    %p95 = scmp.eq.s32.totalorder %s11, 1
    %p96 = por %p94, %p95
    %p97 = scmp.ne.s32.totalorder %s89, %s92
    %p98 = scmp.eq.s32.totalorder %s11, 0
    %p99 = por %p97, %p98
    %p100 = scmp.ne.s32.totalorder %s89, %s92
    %p101 = scmp.eq.s32.totalorder %s16, 1
    %p102 = por %p100, %p101
    %p103 = scmp.ne.s32.totalorder %s92, %s93
    %p104 = scmp.eq.s32.totalorder %s16, 0
    %p105 = por %p103, %p104
    %p106 = scmp.ne.s32.totalorder %s92, %s93
    %p107 = scmp.eq.s32.totalorder %s17, 1
    %p108 = por %p106, %p107
    %p110 = scmp.ne.s32.totalorder %s93, %s109
    %p111 = scmp.eq.s32.totalorder %s17, 0
    %p112 = por %p110, %p111
    %s113 = ssub.s32 %s11, %s18
    %p114 = scmp.eq.s32.totalorder %s113, 0
    %s116 = sadd.s32 %s115, 1
    %s117 = scalar_select %p114, %s115, %s116
    %p120 = pneg %p114
    %p121 = scmp.eq.s32.totalorder %s11, 1
    %p122 = por %p120, %p121
    %p123 = scmp.ne.s32.totalorder %s115, %s118
    %p124 = scmp.eq.s32.totalorder %s11, 0
    %p125 = por %p123, %p124
    %p126 = scmp.ne.s32.totalorder %s115, %s118
    %p127 = scmp.eq.s32.totalorder %s16, 1
    %p128 = por %p126, %p127
    %p129 = scmp.ne.s32.totalorder %s118, %s119
    %p130 = scmp.eq.s32.totalorder %s16, 0
    %p131 = por %p129, %p130
    %p132 = scmp.ne.s32.totalorder %s118, %s119
    %p133 = scmp.eq.s32.totalorder %s17, 1
    %p134 = por %p132, %p133
    %p136 = scmp.ne.s32.totalorder %s119, %s135
    %p137 = scmp.eq.s32.totalorder %s17, 0
    %p138 = por %p136, %p137
    %p139 = scmp.le.s32.totalorder 1, %s11
    %p140 = scmp.lt.s32.totalorder %s11, 3
    %p141 = pnand %p139, %p140
    %p142 = pneg %p141
    // Predicated region
    $region9: #{tpu_custom_call.1} parent=5 // pred_check
      _
    $region10: #{tpu_custom_call.1} parent=5 // pred_check_branch
      %144 = sbr.rel (%p141) target = $region12
    $region11: #{tpu_custom_call.1} parent=5 // pred_region
      %s145 = ssub.s32 %s11, 1
      // Predicated region
      $region13: #{tpu_custom_call.1} parent=11 // pred_check
        %p146 = pneg %p58
      $region14: #{tpu_custom_call.1} parent=11 // pred_check_branch
        %148 = sbr.rel (%p146) target = $region16
      $region15: #{tpu_custom_call.1} parent=11 // pred_region
        _
      $region16: #{tpu_custom_call.1} parent=11 // pred_fallthru
        _
      // Predicated region
      $region17: #{tpu_custom_call.1} parent=11 // pred_check
        %p149 = pneg %p79
      $region18: #{tpu_custom_call.1} parent=11 // pred_check_branch
        %151 = sbr.rel (%p149) target = $region20
      $region19: #{tpu_custom_call.1} parent=11 // pred_region
        _
      $region20: #{tpu_custom_call.1} parent=11 // pred_fallthru
        _
    $region12: #{tpu_custom_call.1} parent=5 // pred_fallthru
      _
    %p152 = scmp.lt.s32.totalorder %s11, 2
    // Predicated region
    $region21: #{tpu_custom_call.1} parent=5 // pred_check
      %p153 = pneg %p152
    $region22: #{tpu_custom_call.1} parent=5 // pred_check_branch
      %155 = sbr.rel (%p153) target = $region24
    $region23: #{tpu_custom_call.1} parent=5 // pred_region
      // Predicated region
      $region25: #{tpu_custom_call.1} parent=23 // pred_check
        %p156 = pneg %p31
      $region26: #{tpu_custom_call.1} parent=23 // pred_check_branch
        %158 = sbr.rel (%p156) target = $region28
      $region27: #{tpu_custom_call.1} parent=23 // pred_region
        %s159 = smul.u32 16, %s11
        %p160 = scmp.lt.s32.totalorder %s159, 31
        %s161 = scalar_select %p160, %s159, 31
        %s162 = smul.addr %s161, 8
        %s163 = scalar_lea.vmem %s0, %s162
        %s164 = smul.u32 16, %s11
      $region28: #{tpu_custom_call.1} parent=23 // pred_fallthru
        _
    $region24: #{tpu_custom_call.1} parent=5 // pred_fallthru
      _
    %p165 = scmp.le.s32.totalorder 1, %s11
    %p166 = scmp.lt.s32.totalorder %s11, 3
    %p167 = pnand %p165, %p166
    %p168 = pneg %p167
    // Predicated region
    $region29: #{tpu_custom_call.1} parent=5 // pred_check
      _
    $region30: #{tpu_custom_call.1} parent=5 // pred_check_branch
      %170 = sbr.rel (%p167) target = $region32
    $region31: #{tpu_custom_call.1} parent=5 // pred_region
      %s171 = ssub.s32 %s11, 1
      %s172 = smul.u32 16, %s16
      %p173 = scmp.lt.s32.totalorder %s172, 31
      %s174 = scalar_select %p173, %s172, 31
      %s175 = smul.addr %s174, 8
      %s176 = scalar_lea.vmem %s0, %s175
      %p177 = pneg %p37
      %p178 = pneg %p34
      %p179 = pneg %p58
      %p180 = pneg %p55
      %p181 = pneg %p79
      %p182 = pneg %p76
      %p183 = pneg %p105
      %p184 = pneg %p102
      %s185 = smul.u32 16, %s16
      %p186 = scmp.lt.s32.totalorder %s185, 31
      %s187 = scalar_select %p186, %s185, 31
      %s188 = smul.addr %s187, 8
      %s189 = scalar_lea.vmem %s3, %s188
      %p190 = pneg %p131
      %p191 = pneg %p128
      %s192 = smul.u32 16, %s16
      %p193 = scmp.lt.s32.totalorder %s192, 31
      %s194 = scalar_select %p193, %s192, 31
      %s195 = smul.addr %s194, 8
      %s196 = scalar_lea.vmem %s4, %s195
      %s197 = smul.u32 16, %s16
      %p198 = scmp.lt.s32.totalorder %s197, 31
      %s199 = scalar_select %p198, %s197, 31
      %s200 = smul.addr %s199, 8
      %s201 = scalar_lea.vmem %s0, %s200
      %s202 = smul.u32 16, %s16
      %s203 = smul.u32 16, %s16
      %p204 = scmp.lt.s32.totalorder %s203, 31
      %s205 = scalar_select %p204, %s203, 31
      %s206 = smul.addr %s205, 8
      %s207 = scalar_lea.vmem %s3, %s206
      %s208 = smul.u32 16, %s16
      %s209 = smul.u32 16, %s16
      %p210 = scmp.lt.s32.totalorder %s209, 31
      %s211 = scalar_select %p210, %s209, 31
      %s212 = smul.addr %s211, 8
      %s213 = scalar_lea.vmem %s4, %s212
      %s214 = smul.u32 16, %s16
      %v217 = vld [vmem:[%s201] sm:$0xff]
      %v218 = vld [vmem:[%s201 + $0x8] sm:$0xff]
      %v219 = vld [vmem:[%s201 + $0x10] sm:$0xff]
      %v220 = vld [vmem:[%s201 + $0x18] sm:$0xff]
      %v221 = vld [vmem:[%s201 + $0x20] sm:$0xff]
      %v222 = vld [vmem:[%s201 + $0x28] sm:$0xff]
      %v223 = vld [vmem:[%s201 + $0x30] sm:$0xff]
      %v224 = vld [vmem:[%s201 + $0x38] sm:$0xff]
      %v225 = vld [vmem:[%s201 + $0x40] sm:$0xff]
      %v226 = vld [vmem:[%s201 + $0x48] sm:$0xff]
      %v227 = vld [vmem:[%s201 + $0x50] sm:$0xff]
      %v228 = vld [vmem:[%s201 + $0x58] sm:$0xff]
      %v229 = vld [vmem:[%s201 + $0x60] sm:$0xff]
      %v230 = vld [vmem:[%s201 + $0x68] sm:$0xff]
      %v231 = vld [vmem:[%s201 + $0x70] sm:$0xff]
      %v232 = vld [vmem:[%s201 + $0x78] sm:$0xff]
      %v233 = vmul.f32 %v217, %v217
      %v234 = vmul.f32 %v218, %v218
      %v235 = vmul.f32 %v219, %v219
      %v236 = vmul.f32 %v220, %v220
      %v237 = vmul.f32 %v221, %v221
      %v238 = vmul.f32 %v222, %v222
      %v239 = vmul.f32 %v223, %v223
      %v240 = vmul.f32 %v224, %v224
      %v241 = vmul.f32 %v225, %v225
      %v242 = vmul.f32 %v226, %v226
      %v243 = vmul.f32 %v227, %v227
      %v244 = vmul.f32 %v228, %v228
      %v245 = vmul.f32 %v229, %v229
      %v246 = vmul.f32 %v230, %v230
      %v247 = vmul.f32 %v231, %v231
      %v248 = vmul.f32 %v232, %v232
      %vm249 = vcmask 261120
      %v250 = vsel %vm249, %v233, 0.0
      %251 = vadd.xlane.f32.xlu0 %v250
      %v252 = vpop.xlane.xlu0 %251
      %v253 = vsel %vm249, %v234, 0.0
      %254 = vadd.xlane.f32.xlu0 %v253
      %v255 = vpop.xlane.xlu0 %254
      %v256 = vsel %vm249, %v235, 0.0
      %257 = vadd.xlane.f32.xlu0 %v256
      %v258 = vpop.xlane.xlu0 %257
      %v259 = vsel %vm249, %v236, 0.0
      %260 = vadd.xlane.f32.xlu0 %v259
      %v261 = vpop.xlane.xlu0 %260
      %v262 = vsel %vm249, %v237, 0.0
      %263 = vadd.xlane.f32.xlu0 %v262
      %v264 = vpop.xlane.xlu0 %263
      %v265 = vsel %vm249, %v238, 0.0
      %266 = vadd.xlane.f32.xlu0 %v265
      %v267 = vpop.xlane.xlu0 %266
      %v268 = vsel %vm249, %v239, 0.0
      %269 = vadd.xlane.f32.xlu0 %v268
      %v270 = vpop.xlane.xlu0 %269
      %v271 = vsel %vm249, %v240, 0.0
      %272 = vadd.xlane.f32.xlu0 %v271
      %v273 = vpop.xlane.xlu0 %272
      %v274 = vsel %vm249, %v241, 0.0
      %275 = vadd.xlane.f32.xlu0 %v274
      %v276 = vpop.xlane.xlu0 %275
      %v277 = vsel %vm249, %v242, 0.0
      %278 = vadd.xlane.f32.xlu0 %v277
      %v279 = vpop.xlane.xlu0 %278
      %v280 = vsel %vm249, %v243, 0.0
      %281 = vadd.xlane.f32.xlu0 %v280
      %v282 = vpop.xlane.xlu0 %281
      %v283 = vsel %vm249, %v244, 0.0
      %284 = vadd.xlane.f32.xlu0 %v283
      %v285 = vpop.xlane.xlu0 %284
      %v286 = vsel %vm249, %v245, 0.0
      %287 = vadd.xlane.f32.xlu0 %v286
      %v288 = vpop.xlane.xlu0 %287
      %v289 = vsel %vm249, %v246, 0.0
      %290 = vadd.xlane.f32.xlu0 %v289
      %v291 = vpop.xlane.xlu0 %290
      %v292 = vsel %vm249, %v247, 0.0
      %293 = vadd.xlane.f32.xlu0 %v292
      %v294 = vpop.xlane.xlu0 %293
      %v295 = vsel %vm249, %v248, 0.0
      %296 = vadd.xlane.f32.xlu0 %v295
      %v297 = vpop.xlane.xlu0 %296
      %v298 = vmax.f32 %v252, 1e-24
      %v299 = vmax.f32 %v255, 1e-24
      %v300 = vmax.f32 %v258, 1e-24
      %v301 = vmax.f32 %v261, 1e-24
      %v302 = vmax.f32 %v264, 1e-24
      %v303 = vmax.f32 %v267, 1e-24
      %v304 = vmax.f32 %v270, 1e-24
      %v305 = vmax.f32 %v273, 1e-24
      %v306 = vmax.f32 %v276, 1e-24
      %v307 = vmax.f32 %v279, 1e-24
      %v308 = vmax.f32 %v282, 1e-24
      %v309 = vmax.f32 %v285, 1e-24
      %v310 = vmax.f32 %v288, 1e-24
      %v311 = vmax.f32 %v291, 1e-24
      %v312 = vmax.f32 %v294, 1e-24
      %v313 = vmax.f32 %v297, 1e-24
      %v314 = vrsqrt.pop %v298
      %v315 = vrsqrt.pop %v299
      %v316 = vrsqrt.pop %v300
      %v317 = vrsqrt.pop %v301
      %v318 = vrsqrt.pop %v302
      %v319 = vrsqrt.pop %v303
      %v320 = vrsqrt.pop %v304
      %v321 = vrsqrt.pop %v305
      %v322 = vrsqrt.pop %v306
      %v323 = vrsqrt.pop %v307
      %v324 = vrsqrt.pop %v308
      %v325 = vrsqrt.pop %v309
      %v326 = vrsqrt.pop %v310
      %v327 = vrsqrt.pop %v311
      %v328 = vrsqrt.pop %v312
      %v329 = vrsqrt.pop %v313
      %v330 = vmul.f32 %v217, %v314
      %v331 = vmul.f32 %v218, %v315
      %v332 = vmul.f32 %v219, %v316
      %v333 = vmul.f32 %v220, %v317
      %v334 = vmul.f32 %v221, %v318
      %v335 = vmul.f32 %v222, %v319
      %v336 = vmul.f32 %v223, %v320
      %v337 = vmul.f32 %v224, %v321
      %v338 = vmul.f32 %v225, %v322
      %v339 = vmul.f32 %v226, %v323
      %v340 = vmul.f32 %v227, %v324
      %v341 = vmul.f32 %v228, %v325
      %v342 = vmul.f32 %v229, %v326
      %v343 = vmul.f32 %v230, %v327
      %v344 = vmul.f32 %v231, %v328
      %v345 = vmul.f32 %v232, %v329
      %v346 = vpack.c.bf16 %v331, %v330
      %v347 = vpack.c.bf16 %v333, %v332
      %v348 = vpack.c.bf16 %v335, %v334
      %v349 = vpack.c.bf16 %v337, %v336
      %v350 = vpack.c.bf16 %v339, %v338
      %v351 = vpack.c.bf16 %v341, %v340
      %v352 = vpack.c.bf16 %v343, %v342
      %v353 = vpack.c.bf16 %v345, %v344
      %v354 = vld [vmem:[%s1] sm:$0xff]
      %v355 = vld [vmem:[%s1 + $0x8] sm:$0xff]
      %v356 = vld [vmem:[%s1 + $0x10] sm:$0xff]
      %v357 = vld [vmem:[%s1 + $0x18] sm:$0xff]
      %v362 = vunpack.c.l.b16 %v354
      %v363 = vunpack.c.h.b16 %v354
      %v364 = vunpack.c.l.b16 %v355
      %v365 = vunpack.c.h.b16 %v355
      %v366 = vunpack.c.l.b16 %v356
      %v367 = vunpack.c.h.b16 %v356
      %v368 = vunpack.c.l.b16 %v357
      %v369 = vunpack.c.h.b16 %v357
      %v370 = vpack.c.b16 %v364, %v362
      %v371 = vpack.c.b16 %v365, %v363
      %v372 = vpack.c.b16 %v368, %v366
      %v373 = vpack.c.b16 %v369, %v367
      %v379 = vsel %vm249, %v346, 0
      %v382 = vsel %vm249, %v347, 0
      %v385 = vsel %vm249, %v348, 0
      %v388 = vsel %vm249, %v349, 0
      %v391 = vsel %vm249, %v350, 0
      %v394 = vsel %vm249, %v351, 0
      %v397 = vsel %vm249, %v352, 0
      %v400 = vsel %vm249, %v353, 0
      %402 = vmatprep.subr.bf16.mxu0 %v371
      %403 = vmatpush1.bf16.msra.mxu0 %v370
      %404 = vmatprep.subr.bf16.mxu0 %v373
      %405 = vmatpush1.bf16.msra.mxu0 %v372
      %406 = vmatprep.subr.bf16.mxu0 0
      %407 = vmatpush1.bf16.msra.mxu0 0
      %408 = vmatprep.subr.bf16.mxu0 0
      %409 = vmatpush1.bf16.msra.mxu0 0
      %410 = vmatprep.subr.bf16.mxu0 0
      %411 = vmatpush1.bf16.msra.mxu0 0
      %412 = vmatprep.subr.bf16.mxu0 0
      %413 = vmatpush1.bf16.msra.mxu0 0
      %414 = vmatprep.subr.bf16.mxu0 0
      %415 = vmatpush1.bf16.msra.mxu0 0
      %416 = vmatprep.subr.bf16.mxu0 0
      %417 = vmatpush1.bf16.msra.mxu0 0
      %418 = vmatprep.subr.bf16.mxu0 0
      %419 = vmatpush1.bf16.msra.mxu0 0
      %420 = vmatprep.subr.bf16.mxu0 0
      %421 = vmatpush1.bf16.msra.mxu0 0
      %422 = vmatprep.subr.bf16.mxu0 0
      %423 = vmatpush1.bf16.msra.mxu0 0
      %424 = vmatprep.subr.bf16.mxu0 0
      %425 = vmatpush1.bf16.msra.mxu0 0
      %426 = vmatprep.subr.bf16.mxu0 0
      %427 = vmatpush1.bf16.msra.mxu0 0
      %428 = vmatprep.subr.bf16.mxu0 0
      %429 = vmatpush1.bf16.msra.mxu0 0
      %430 = vmatprep.subr.bf16.mxu0 0
      %431 = vmatpush1.bf16.msra.mxu0 0
      %432 = vmatprep.subr.bf16.mxu0 0
      %433 = vmatpush1.bf16.msra.mxu0 0
      %434 = vmatprep.mubr.bf16.mxu0 0
      %435 = vmatmul.mubr.bf16.gmra.mrb[0].mxu0 %v379
      %v436 = vpop.f32.mrb[0].mxu0
      %v437 = vadd.f32 0.0, %v436
      %v438 = vpop.f32.mrb[0].mxu0
      %v439 = vadd.f32 0.0, %v438
      %v440 = vpop.f32.mrb[0].mxu0
      %v441 = vadd.f32 0.0, %v440
      %v442 = vpop.f32.mrb[0].mxu0
      %v443 = vadd.f32 0.0, %v442
      %444 = vmatprep.mubr.bf16.mxu0 0
      %445 = vmatmul.mubr.bf16.gmra.mrb[0].mxu0 %v382
      %v446 = vpop.f32.mrb[0].mxu0
      %v447 = vadd.f32 0.0, %v446
      %v448 = vpop.f32.mrb[0].mxu0
      %v449 = vadd.f32 0.0, %v448
      %v450 = vpop.f32.mrb[0].mxu0
      %v451 = vadd.f32 0.0, %v450
      %v452 = vpop.f32.mrb[0].mxu0
      %v453 = vadd.f32 0.0, %v452
      %454 = vmatprep.mubr.bf16.mxu0 0
      %455 = vmatmul.mubr.bf16.gmra.mrb[0].mxu0 %v385
      %v456 = vpop.f32.mrb[0].mxu0
      %v457 = vadd.f32 0.0, %v456
      %v458 = vpop.f32.mrb[0].mxu0
      %v459 = vadd.f32 0.0, %v458
      %v460 = vpop.f32.mrb[0].mxu0
      %v461 = vadd.f32 0.0, %v460
      %v462 = vpop.f32.mrb[0].mxu0
      %v463 = vadd.f32 0.0, %v462
      %464 = vmatprep.mubr.bf16.mxu0 0
      %465 = vmatmul.mubr.bf16.gmra.mrb[0].mxu0 %v388
      %v466 = vpop.f32.mrb[0].mxu0
      %v467 = vadd.f32 0.0, %v466
      %v468 = vpop.f32.mrb[0].mxu0
      %v469 = vadd.f32 0.0, %v468
      %v470 = vpop.f32.mrb[0].mxu0
      %v471 = vadd.f32 0.0, %v470
      %v472 = vpop.f32.mrb[0].mxu0
      %v473 = vadd.f32 0.0, %v472
      %474 = vmatprep.mubr.bf16.mxu0 0
      %475 = vmatmul.mubr.bf16.gmra.mrb[0].mxu0 %v391
      %v476 = vpop.f32.mrb[0].mxu0
      %v477 = vadd.f32 0.0, %v476
      %v478 = vpop.f32.mrb[0].mxu0
      %v479 = vadd.f32 0.0, %v478
      %v480 = vpop.f32.mrb[0].mxu0
      %v481 = vadd.f32 0.0, %v480
      %v482 = vpop.f32.mrb[0].mxu0
      %v483 = vadd.f32 0.0, %v482
      %484 = vmatprep.mubr.bf16.mxu0 0
      %485 = vmatmul.mubr.bf16.gmra.mrb[0].mxu0 %v394
      %v486 = vpop.f32.mrb[0].mxu0
      %v487 = vadd.f32 0.0, %v486
      %v488 = vpop.f32.mrb[0].mxu0
      %v489 = vadd.f32 0.0, %v488
      %v490 = vpop.f32.mrb[0].mxu0
      %v491 = vadd.f32 0.0, %v490
      %v492 = vpop.f32.mrb[0].mxu0
      %v493 = vadd.f32 0.0, %v492
      %494 = vmatprep.mubr.bf16.mxu0 0
      %495 = vmatmul.mubr.bf16.gmra.mrb[0].mxu0 %v397
      %v496 = vpop.f32.mrb[0].mxu0
      %v497 = vadd.f32 0.0, %v496
      %v498 = vpop.f32.mrb[0].mxu0
      %v499 = vadd.f32 0.0, %v498
      %v500 = vpop.f32.mrb[0].mxu0
      %v501 = vadd.f32 0.0, %v500
      %v502 = vpop.f32.mrb[0].mxu0
      %v503 = vadd.f32 0.0, %v502
      %504 = vmatprep.mubr.bf16.mxu0 0
      %505 = vmatmul.mubr.bf16.gmra.mrb[0].mxu0 %v400
      %v506 = vpop.f32.mrb[0].mxu0
      %v507 = vadd.f32 0.0, %v506
      %v508 = vpop.f32.mrb[0].mxu0
      %v509 = vadd.f32 0.0, %v508
      %v510 = vpop.f32.mrb[0].mxu0
      %v511 = vadd.f32 0.0, %v510
      %v512 = vpop.f32.mrb[0].mxu0
      %v513 = vadd.f32 0.0, %v512
      %514 = vdwg.mxu0
      %515 = vst [vmem:[#allocation2] sm:$0xff] %v437
      %516 = vst [vmem:[#allocation2 + $0x8] sm:$0xff] %v439
      %517 = vst [vmem:[#allocation2 + $0x10] sm:$0xff] %v441
      %518 = vst [vmem:[#allocation2 + $0x18] sm:$0xff] %v443
      %519 = vst [vmem:[#allocation2 + $0x20] sm:$0xff] %v447
      %520 = vst [vmem:[#allocation2 + $0x28] sm:$0xff] %v449
      %521 = vst [vmem:[#allocation2 + $0x30] sm:$0xff] %v451
      %522 = vst [vmem:[#allocation2 + $0x38] sm:$0xff] %v453
      %523 = vst [vmem:[#allocation2 + $0x40] sm:$0xff] %v457
      %524 = vst [vmem:[#allocation2 + $0x48] sm:$0xff] %v459
      %525 = vst [vmem:[#allocation2 + $0x50] sm:$0xff] %v461
      %526 = vst [vmem:[#allocation2 + $0x58] sm:$0xff] %v463
      %527 = vst [vmem:[#allocation2 + $0x60] sm:$0xff] %v467
      %528 = vst [vmem:[#allocation2 + $0x68] sm:$0xff] %v469
      %529 = vst [vmem:[#allocation2 + $0x70] sm:$0xff] %v471
      %530 = vst [vmem:[#allocation2 + $0x78] sm:$0xff] %v473
      %531 = vst [vmem:[#allocation2 + $0x80] sm:$0xff] %v477
      %532 = vst [vmem:[#allocation2 + $0x88] sm:$0xff] %v479
      %533 = vst [vmem:[#allocation2 + $0x90] sm:$0xff] %v481
      %534 = vst [vmem:[#allocation2 + $0x98] sm:$0xff] %v483
      %535 = vst [vmem:[#allocation2 + $0xa0] sm:$0xff] %v487
      %536 = vst [vmem:[#allocation2 + $0xa8] sm:$0xff] %v489
      %537 = vst [vmem:[#allocation2 + $0xb0] sm:$0xff] %v491
      %538 = vst [vmem:[#allocation2 + $0xb8] sm:$0xff] %v493
      %539 = vst [vmem:[#allocation2 + $0xc0] sm:$0xff] %v497
      %540 = vst [vmem:[#allocation2 + $0xc8] sm:$0xff] %v499
      %541 = vst [vmem:[#allocation2 + $0xd0] sm:$0xff] %v501
      %542 = vst [vmem:[#allocation2 + $0xd8] sm:$0xff] %v503
      %543 = vst [vmem:[#allocation2 + $0xe0] sm:$0xff] %v507
      %544 = vst [vmem:[#allocation2 + $0xe8] sm:$0xff] %v509
      %545 = vst [vmem:[#allocation2 + $0xf0] sm:$0xff] %v511
      %546 = vst [vmem:[#allocation2 + $0xf8] sm:$0xff] %v513
      %v547 = vld [vmem:[%s2] sm:$0x3]
      %vm548 = vcmp.gt.f32.partialorder %v547, 0.5
      %v549 = vsel %vm548, 0.0, -1e+30
      %v550 = vsel %vm548, -1e+30, 0.0
      %v552 = vlaneseq
      %v553 = vshrl.u32 %v552, 7
      %v554 = vsub.s32 0, %v553
      %v555 = vrot.slane %v549, %v554
      %v556 = vlaneseq
      %v557 = vshrl.u32 %v556, 7
      %v558 = vsub.s32 1, %v557
      %v559 = vrot.slane %v549, %v558
      %v563 = vlaneseq
      %v564 = vshrl.u32 %v563, 7
      %v565 = vsub.s32 0, %v564
      %v566 = vrot.slane %v550, %v565
      %v567 = vlaneseq
      %v568 = vshrl.u32 %v567, 7
      %v569 = vsub.s32 1, %v568
      %v570 = vrot.slane %v550, %v569
      %s573 = smul.u32 %s16, 128
      %s574 = ssub.s32 256, %s573
      %p575 = scmp.lt.s32.totalorder %s574, 128
      %s576 = scalar_select %p575, %s574, 128
      loop: start=0, step=1, limit=8
      $region33: #{tpu_custom_call.1} parent=31 // loop_pre_header
        _
      $region34: #{tpu_custom_call.1} parent=31 // loop_header
        %s578 = sphi 0, %s582
        %p579 = scmp.ge.s32.totalorder %s578, 8
      $region35: #{tpu_custom_call.1} parent=31 // loop_header_branch
        %581 = sbr.rel (%p579) target = $region39
      $region36: #{tpu_custom_call.1} parent=31 // loop_body
        %s583 = smul.u32 %s578, 16
        %p584 = scmp.lt.s32.totalorder %s583, %s576
        // Predicated region
        $region40: #{tpu_custom_call.1} parent=36 // pred_check
          %p585 = pneg %p584
        $region41: #{tpu_custom_call.1} parent=36 // pred_check_branch
          %587 = sbr.rel (%p585) target = $region43
        $region42: #{tpu_custom_call.1} parent=36 // pred_region
          %s588 = sshra.s32 %s583, 3
          %s589 = sand.u32 %s583, 7
          %s590 = smul.u32 %s588, 2
          %s591 = smul.addr %s590, 8
          %s592 = scalar_lea.vmem [#allocation2], %s591
          %v593 = vld [vmem:[%s592] sm:$0xff]
          %v594 = vld [vmem:[%s592 + $0x8] sm:$0xff]
          %v595 = vld [vmem:[%s592 + $0x10] sm:$0xff]
          %v596 = vld [vmem:[%s592 + $0x18] sm:$0xff]
          %v597 = vadd.f32 %v593, %v555
          %v598 = vadd.f32 %v594, %v559
          %v599 = vadd.f32 %v595, %v555
          %v600 = vadd.f32 %v596, %v559
          %v601 = vadd.f32 %v593, %v566
          %v602 = vadd.f32 %v594, %v570
          %v603 = vadd.f32 %v595, %v566
          %v604 = vadd.f32 %v596, %v570
          %v605 = vmax.f32 %v597, %v598
          %606 = vmax.xlane.f32.xlu0 %v605
          %v607 = vpop.xlane.xlu0 %606
          %v608 = vmax.f32 %v599, %v600
          %609 = vmax.xlane.f32.xlu0 %v608
          %v610 = vpop.xlane.xlu0 %609
          %v611 = vmax.f32 %v601, %v602
          %612 = vmax.xlane.f32.xlu0 %v611
          %v613 = vpop.xlane.xlu0 %612
          %v614 = vmax.f32 %v603, %v604
          %615 = vmax.xlane.f32.xlu0 %v614
          %v616 = vpop.xlane.xlu0 %615
          %vm617 = vcmp.gt.f32.partialorder %v607, -1e+29
          %vm618 = vcmp.gt.f32.partialorder %v610, -1e+29
          %vm619 = vcmp.gt.f32.partialorder %v613, -1e+29
          %vm620 = vcmp.gt.f32.partialorder %v616, -1e+29
          %vm621 = vcmp.eq.f32.partialorder %v597, %v607
          %vm622 = vcmp.eq.f32.partialorder %v598, %v607
          %vm623 = vcmp.eq.f32.partialorder %v599, %v610
          %vm624 = vcmp.eq.f32.partialorder %v600, %v610
          %vm625 = vcmp.eq.f32.partialorder %v601, %v613
          %vm626 = vcmp.eq.f32.partialorder %v602, %v613
          %vm627 = vcmp.eq.f32.partialorder %v603, %v616
          %vm628 = vcmp.eq.f32.partialorder %v604, %v616
          %v629 = vsel %vm621, 1.0, 0.0
          %v630 = vsel %vm622, 1.0, 0.0
          %v631 = vsel %vm623, 1.0, 0.0
          %v632 = vsel %vm624, 1.0, 0.0
          %v633 = vsel %vm625, 1.0, 0.0
          %v634 = vsel %vm626, 1.0, 0.0
          %v635 = vsel %vm627, 1.0, 0.0
          %v636 = vsel %vm628, 1.0, 0.0
          %v637 = vpack.c.bf16 %v631, %v629
          %v638 = vpack.c.bf16 %v632, %v630
          %v639 = vpack.c.bf16 %v635, %v633
          %v640 = vpack.c.bf16 %v636, %v634
          %641 = vmatprep.subr.bf16.mxu0 0
          %642 = vmatpush1.bf16.msra.mxu0 1065369472
          %643 = vmatprep.subr.bf16.mxu0 0
          %644 = vmatpush1.bf16.msra.mxu0 1065369472
          %645 = vmatprep.subr.bf16.mxu0 0
          %646 = vmatpush1.bf16.msra.mxu0 1065369472
          %647 = vmatprep.subr.bf16.mxu0 0
          %648 = vmatpush1.bf16.msra.mxu0 1065369472
          %649 = vmatprep.subr.bf16.mxu0 0
          %650 = vmatpush1.bf16.msra.mxu0 1065369472
          %651 = vmatprep.subr.bf16.mxu0 0
          %652 = vmatpush1.bf16.msra.mxu0 1065369472
          %653 = vmatprep.subr.bf16.mxu0 0
          %654 = vmatpush1.bf16.msra.mxu0 1065369472
          %655 = vmatprep.subr.bf16.mxu0 0
          %656 = vmatpush1.bf16.msra.mxu0 1065369472
          %657 = vmatprep.subr.bf16.mxu0 0
          %658 = vmatpush1.bf16.msra.mxu0 1065369472
          %659 = vmatprep.subr.bf16.mxu0 0
          %660 = vmatpush1.bf16.msra.mxu0 1065369472
          %661 = vmatprep.subr.bf16.mxu0 0
          %662 = vmatpush1.bf16.msra.mxu0 1065369472
          %663 = vmatprep.subr.bf16.mxu0 0
          %664 = vmatpush1.bf16.msra.mxu0 1065369472
          %665 = vmatprep.subr.bf16.mxu0 0
          %666 = vmatpush1.bf16.msra.mxu0 1065369472
          %667 = vmatprep.subr.bf16.mxu0 0
          %668 = vmatpush1.bf16.msra.mxu0 1065369472
          %669 = vmatprep.subr.bf16.mxu0 0
          %670 = vmatpush1.bf16.msra.mxu0 1065369472
          %671 = vmatprep.subr.bf16.mxu0 0
          %672 = vmatpush1.bf16.msra.mxu0 1065369472
          %673 = vmatprep.mubr.bf16.mxu0 %v638
          %674 = vmatmul.mubr.bf16.gmra.mrb[0].mxu0 %v637
          %v675 = vpop.f32.mrb[0].mxu0
          %v676 = vadd.f32 0.0, %v675
          %v677 = vpop.f32.mrb[0].mxu0
          %v678 = vpop.f32.mrb[0].mxu0
          %v679 = vadd.f32 0.0, %v678
          %v680 = vpop.f32.mrb[0].mxu0
          %681 = vmatprep.mubr.bf16.mxu0 %v640
          %682 = vmatmul.mubr.bf16.gmra.mrb[0].mxu0 %v639
          %v683 = vpop.f32.mrb[0].mxu0
          %v684 = vadd.f32 0.0, %v683
          %v685 = vpop.f32.mrb[0].mxu0
          %v686 = vpop.f32.mrb[0].mxu0
          %v687 = vadd.f32 0.0, %v686
          %v688 = vpop.f32.mrb[0].mxu0
          %689 = vdwg.mxu0
          %v690 = vmin.f32 %v676, 20.0
          %v691 = vmin.f32 %v679, 20.0
          %v692 = vmin.f32 %v684, 20.0
          %v693 = vmin.f32 %v687, 20.0
          %v694 = vsel %vm617, 1, 0
          %v695 = vsel %vm618, 1, 0
          %v696 = vsel %vm619, 1, 0
          %v697 = vsel %vm620, 1, 0
          %vm698 = vcmp.eq.s32.totalorder %v694, 1
          %vm699 = vcmp.eq.s32.totalorder %v695, 1
          %vm700 = vcmp.eq.s32.totalorder %v696, 1
          %vm701 = vcmp.eq.s32.totalorder %v697, 1
          %v702 = vsel %vm698, %v690, 0.0
          %v703 = vsel %vm699, %v691, 0.0
          %v704 = vsel %vm700, %v692, 0.0
          %v705 = vsel %vm701, %v693, 0.0
          %v706 = vsel %vm617, %v607, 0.0
          %v707 = vsel %vm618, %v610, 0.0
          %v708 = vsel %vm619, %v613, 0.0
          %v709 = vsel %vm620, %v616, 0.0
          %v710 = vmul.f32 %v702, %v706
          %v711 = vmul.f32 %v703, %v707
          %v712 = vmul.f32 %v704, %v708
          %v713 = vmul.f32 %v705, %v709
          %v714 = vadd.f32 %v710, 0.0
          %v715 = vadd.f32 %v711, 0.0
          %v716 = vadd.f32 %v712, 0.0
          %v717 = vadd.f32 %v713, 0.0
          %v718 = vadd.f32 %v702, 0.0
          %v719 = vadd.f32 %v703, 0.0
          %v720 = vadd.f32 %v704, 0.0
          %v721 = vadd.f32 %v705, 0.0
          %v722 = vsub.f32 20.0, %v702
          %v723 = vsub.f32 20.0, %v703
          %v724 = vsub.f32 20.0, %v704
          %v725 = vsub.f32 20.0, %v705
          %v726 = vsel %vm621, -1e+30, %v597
          %v727 = vsel %vm622, -1e+30, %v598
          %v728 = vsel %vm623, -1e+30, %v599
          %v729 = vsel %vm624, -1e+30, %v600
          %v730 = vsel %vm625, -1e+30, %v601
          %v731 = vsel %vm626, -1e+30, %v602
          %v732 = vsel %vm627, -1e+30, %v603
          %v733 = vsel %vm628, -1e+30, %v604
          %v734 = vmax.f32 %v726, %v727
          %735 = vmax.xlane.f32.xlu0 %v734
          %v736 = vpop.xlane.xlu0 %735
          %v737 = vmax.f32 %v728, %v729
          %738 = vmax.xlane.f32.xlu0 %v737
          %v739 = vpop.xlane.xlu0 %738
          %v740 = vmax.f32 %v730, %v731
          %741 = vmax.xlane.f32.xlu0 %v740
          %v742 = vpop.xlane.xlu0 %741
          %v743 = vmax.f32 %v732, %v733
          %744 = vmax.xlane.f32.xlu0 %v743
          %v745 = vpop.xlane.xlu0 %744
          %vm746 = vcmp.gt.f32.partialorder %v736, -1e+29
          %vm747 = vcmp.gt.f32.partialorder %v739, -1e+29
          %vm748 = vcmp.gt.f32.partialorder %v742, -1e+29
          %vm749 = vcmp.gt.f32.partialorder %v745, -1e+29
          %vm750 = vcmp.eq.f32.partialorder %v726, %v736
          %vm751 = vcmp.eq.f32.partialorder %v727, %v736
          %vm752 = vcmp.eq.f32.partialorder %v728, %v739
          %vm753 = vcmp.eq.f32.partialorder %v729, %v739
          %vm754 = vcmp.eq.f32.partialorder %v730, %v742
          %vm755 = vcmp.eq.f32.partialorder %v731, %v742
          %vm756 = vcmp.eq.f32.partialorder %v732, %v745
          %vm757 = vcmp.eq.f32.partialorder %v733, %v745
          %v758 = vsel %vm750, 1.0, 0.0
          %v759 = vsel %vm751, 1.0, 0.0
          %v760 = vsel %vm752, 1.0, 0.0
          %v761 = vsel %vm753, 1.0, 0.0
          %v762 = vsel %vm754, 1.0, 0.0
          %v763 = vsel %vm755, 1.0, 0.0
          %v764 = vsel %vm756, 1.0, 0.0
          %v765 = vsel %vm757, 1.0, 0.0
          %v766 = vpack.c.bf16 %v760, %v758
          %v767 = vpack.c.bf16 %v761, %v759
          %v768 = vpack.c.bf16 %v764, %v762
          %v769 = vpack.c.bf16 %v765, %v763
          %770 = vmatprep.subr.bf16.mxu0 0
          %771 = vmatpush1.bf16.msra.mxu0 1065369472
          %772 = vmatprep.subr.bf16.mxu0 0
          %773 = vmatpush1.bf16.msra.mxu0 1065369472
          %774 = vmatprep.subr.bf16.mxu0 0
          %775 = vmatpush1.bf16.msra.mxu0 1065369472
          %776 = vmatprep.subr.bf16.mxu0 0
          %777 = vmatpush1.bf16.msra.mxu0 1065369472
          %778 = vmatprep.subr.bf16.mxu0 0
          %779 = vmatpush1.bf16.msra.mxu0 1065369472
          %780 = vmatprep.subr.bf16.mxu0 0
          %781 = vmatpush1.bf16.msra.mxu0 1065369472
          %782 = vmatprep.subr.bf16.mxu0 0
          %783 = vmatpush1.bf16.msra.mxu0 1065369472
          %784 = vmatprep.subr.bf16.mxu0 0
          %785 = vmatpush1.bf16.msra.mxu0 1065369472
          %786 = vmatprep.subr.bf16.mxu0 0
          %787 = vmatpush1.bf16.msra.mxu0 1065369472
          %788 = vmatprep.subr.bf16.mxu0 0
          %789 = vmatpush1.bf16.msra.mxu0 1065369472
          %790 = vmatprep.subr.bf16.mxu0 0
          %791 = vmatpush1.bf16.msra.mxu0 1065369472
          %792 = vmatprep.subr.bf16.mxu0 0
          %793 = vmatpush1.bf16.msra.mxu0 1065369472
          %794 = vmatprep.subr.bf16.mxu0 0
          %795 = vmatpush1.bf16.msra.mxu0 1065369472
          %796 = vmatprep.subr.bf16.mxu0 0
          %797 = vmatpush1.bf16.msra.mxu0 1065369472
          %798 = vmatprep.subr.bf16.mxu0 0
          %799 = vmatpush1.bf16.msra.mxu0 1065369472
          %800 = vmatprep.subr.bf16.mxu0 0
          %801 = vmatpush1.bf16.msra.mxu0 1065369472
          %802 = vmatprep.mubr.bf16.mxu0 %v767
          %803 = vmatmul.mubr.bf16.gmra.mrb[0].mxu0 %v766
          %v804 = vpop.f32.mrb[0].mxu0
          %v805 = vadd.f32 0.0, %v804
          %v806 = vpop.f32.mrb[0].mxu0
          %v807 = vpop.f32.mrb[0].mxu0
          %v808 = vadd.f32 0.0, %v807
          %v809 = vpop.f32.mrb[0].mxu0
          %810 = vmatprep.mubr.bf16.mxu0 %v769
          %811 = vmatmul.mubr.bf16.gmra.mrb[0].mxu0 %v768
          %v812 = vpop.f32.mrb[0].mxu0
          %v813 = vadd.f32 0.0, %v812
          %v814 = vpop.f32.mrb[0].mxu0
          %v815 = vpop.f32.mrb[0].mxu0
          %v816 = vadd.f32 0.0, %v815
          %v817 = vpop.f32.mrb[0].mxu0
          %818 = vdwg.mxu0
          %v819 = vmin.f32 %v805, %v722
          %v820 = vmin.f32 %v808, %v723
          %v821 = vmin.f32 %v813, %v724
          %v822 = vmin.f32 %v816, %v725
          %v823 = vsel %vm746, 1, 0
          %v824 = vsel %vm747, 1, 0
          %v825 = vsel %vm748, 1, 0
          %v826 = vsel %vm749, 1, 0
          %vm827 = vcmp.eq.s32.totalorder %v823, 1
          %vm828 = vcmp.eq.s32.totalorder %v824, 1
          %vm829 = vcmp.eq.s32.totalorder %v825, 1
          %vm830 = vcmp.eq.s32.totalorder %v826, 1
          %v831 = vsel %vm827, %v819, 0.0
          %v832 = vsel %vm828, %v820, 0.0
          %v833 = vsel %vm829, %v821, 0.0
          %v834 = vsel %vm830, %v822, 0.0
          %v835 = vsel %vm746, %v736, 0.0
          %v836 = vsel %vm747, %v739, 0.0
          %v837 = vsel %vm748, %v742, 0.0
          %v838 = vsel %vm749, %v745, 0.0
          %v839 = vmul.f32 %v831, %v835
          %v840 = vmul.f32 %v832, %v836
          %v841 = vmul.f32 %v833, %v837
          %v842 = vmul.f32 %v834, %v838
          %v843 = vadd.f32 %v714, %v839
          %v844 = vadd.f32 %v715, %v840
          %v845 = vadd.f32 %v716, %v841
          %v846 = vadd.f32 %v717, %v842
          %v847 = vadd.f32 %v718, %v831
          %v848 = vadd.f32 %v719, %v832
          %v849 = vadd.f32 %v720, %v833
          %v850 = vadd.f32 %v721, %v834
          %v851 = vsub.f32 %v722, %v831
          %v852 = vsub.f32 %v723, %v832
          %v853 = vsub.f32 %v724, %v833
          %v854 = vsub.f32 %v725, %v834
          %v855 = vsel %vm750, -1e+30, %v726
          %v856 = vsel %vm751, -1e+30, %v727
          %v857 = vsel %vm752, -1e+30, %v728
          %v858 = vsel %vm753, -1e+30, %v729
          %v859 = vsel %vm754, -1e+30, %v730
          %v860 = vsel %vm755, -1e+30, %v731
          %v861 = vsel %vm756, -1e+30, %v732
          %v862 = vsel %vm757, -1e+30, %v733
          %v863 = vmax.f32 %v855, %v856
          %864 = vmax.xlane.f32.xlu0 %v863
          %v865 = vpop.xlane.xlu0 %864
          %v866 = vmax.f32 %v857, %v858
          %867 = vmax.xlane.f32.xlu0 %v866
          %v868 = vpop.xlane.xlu0 %867
          %v869 = vmax.f32 %v859, %v860
          %870 = vmax.xlane.f32.xlu0 %v869
          %v871 = vpop.xlane.xlu0 %870
          %v872 = vmax.f32 %v861, %v862
          %873 = vmax.xlane.f32.xlu0 %v872
          %v874 = vpop.xlane.xlu0 %873
          %vm875 = vcmp.gt.f32.partialorder %v865, -1e+29
          %vm876 = vcmp.gt.f32.partialorder %v868, -1e+29
          %vm877 = vcmp.gt.f32.partialorder %v871, -1e+29
          %vm878 = vcmp.gt.f32.partialorder %v874, -1e+29
          %vm879 = vcmp.eq.f32.partialorder %v855, %v865
          %vm880 = vcmp.eq.f32.partialorder %v856, %v865
          %vm881 = vcmp.eq.f32.partialorder %v857, %v868
          %vm882 = vcmp.eq.f32.partialorder %v858, %v868
          %vm883 = vcmp.eq.f32.partialorder %v859, %v871
          %vm884 = vcmp.eq.f32.partialorder %v860, %v871
          %vm885 = vcmp.eq.f32.partialorder %v861, %v874
          %vm886 = vcmp.eq.f32.partialorder %v862, %v874
          %v887 = vsel %vm879, 1.0, 0.0
          %v888 = vsel %vm880, 1.0, 0.0
          %v889 = vsel %vm881, 1.0, 0.0
          %v890 = vsel %vm882, 1.0, 0.0
          %v891 = vsel %vm883, 1.0, 0.0
          %v892 = vsel %vm884, 1.0, 0.0
          %v893 = vsel %vm885, 1.0, 0.0
          %v894 = vsel %vm886, 1.0, 0.0
          %v895 = vpack.c.bf16 %v889, %v887
          %v896 = vpack.c.bf16 %v890, %v888
          %v897 = vpack.c.bf16 %v893, %v891
          %v898 = vpack.c.bf16 %v894, %v892
          %899 = vmatprep.subr.bf16.mxu0 0
          %900 = vmatpush1.bf16.msra.mxu0 1065369472
          %901 = vmatprep.subr.bf16.mxu0 0
          %902 = vmatpush1.bf16.msra.mxu0 1065369472
          %903 = vmatprep.subr.bf16.mxu0 0
          %904 = vmatpush1.bf16.msra.mxu0 1065369472
          %905 = vmatprep.subr.bf16.mxu0 0
          %906 = vmatpush1.bf16.msra.mxu0 1065369472
          %907 = vmatprep.subr.bf16.mxu0 0
          %908 = vmatpush1.bf16.msra.mxu0 1065369472
          %909 = vmatprep.subr.bf16.mxu0 0
          %910 = vmatpush1.bf16.msra.mxu0 1065369472
          %911 = vmatprep.subr.bf16.mxu0 0
          %912 = vmatpush1.bf16.msra.mxu0 1065369472
          %913 = vmatprep.subr.bf16.mxu0 0
          %914 = vmatpush1.bf16.msra.mxu0 1065369472
          %915 = vmatprep.subr.bf16.mxu0 0
          %916 = vmatpush1.bf16.msra.mxu0 1065369472
          %917 = vmatprep.subr.bf16.mxu0 0
          %918 = vmatpush1.bf16.msra.mxu0 1065369472
          %919 = vmatprep.subr.bf16.mxu0 0
          %920 = vmatpush1.bf16.msra.mxu0 1065369472
          %921 = vmatprep.subr.bf16.mxu0 0
          %922 = vmatpush1.bf16.msra.mxu0 1065369472
          %923 = vmatprep.subr.bf16.mxu0 0
          %924 = vmatpush1.bf16.msra.mxu0 1065369472
          %925 = vmatprep.subr.bf16.mxu0 0
          %926 = vmatpush1.bf16.msra.mxu0 1065369472
          %927 = vmatprep.subr.bf16.mxu0 0
          %928 = vmatpush1.bf16.msra.mxu0 1065369472
          %929 = vmatprep.subr.bf16.mxu0 0
          %930 = vmatpush1.bf16.msra.mxu0 1065369472
          %931 = vmatprep.mubr.bf16.mxu0 %v896
          %932 = vmatmul.mubr.bf16.gmra.mrb[0].mxu0 %v895
          %v933 = vpop.f32.mrb[0].mxu0
          %v934 = vadd.f32 0.0, %v933
          %v935 = vpop.f32.mrb[0].mxu0
          %v936 = vpop.f32.mrb[0].mxu0
          %v937 = vadd.f32 0.0, %v936
          %v938 = vpop.f32.mrb[0].mxu0
          %939 = vmatprep.mubr.bf16.mxu0 %v898
          %940 = vmatmul.mubr.bf16.gmra.mrb[0].mxu0 %v897
          %v941 = vpop.f32.mrb[0].mxu0
          %v942 = vadd.f32 0.0, %v941
          %v943 = vpop.f32.mrb[0].mxu0
          %v944 = vpop.f32.mrb[0].mxu0
          %v945 = vadd.f32 0.0, %v944
          %v946 = vpop.f32.mrb[0].mxu0
          %947 = vdwg.mxu0
          %v948 = vmin.f32 %v934, %v851
          %v949 = vmin.f32 %v937, %v852
          %v950 = vmin.f32 %v942, %v853
          %v951 = vmin.f32 %v945, %v854
          %v952 = vsel %vm875, 1, 0
          %v953 = vsel %vm876, 1, 0
          %v954 = vsel %vm877, 1, 0
          %v955 = vsel %vm878, 1, 0
          %vm956 = vcmp.eq.s32.totalorder %v952, 1
          %vm957 = vcmp.eq.s32.totalorder %v953, 1
          %vm958 = vcmp.eq.s32.totalorder %v954, 1
          %vm959 = vcmp.eq.s32.totalorder %v955, 1
          %v960 = vsel %vm956, %v948, 0.0
          %v961 = vsel %vm957, %v949, 0.0
          %v962 = vsel %vm958, %v950, 0.0
          %v963 = vsel %vm959, %v951, 0.0
          %v964 = vsel %vm875, %v865, 0.0
          %v965 = vsel %vm876, %v868, 0.0
          %v966 = vsel %vm877, %v871, 0.0
          %v967 = vsel %vm878, %v874, 0.0
          %v968 = vmul.f32 %v960, %v964
          %v969 = vmul.f32 %v961, %v965
          %v970 = vmul.f32 %v962, %v966
          %v971 = vmul.f32 %v963, %v967
          %v972 = vadd.f32 %v843, %v968
          %v973 = vadd.f32 %v844, %v969
          %v974 = vadd.f32 %v845, %v970
          %v975 = vadd.f32 %v846, %v971
          %v976 = vadd.f32 %v847, %v960
          %v977 = vadd.f32 %v848, %v961
          %v978 = vadd.f32 %v849, %v962
          %v979 = vadd.f32 %v850, %v963
          %v980 = vsub.f32 %v851, %v960
          %v981 = vsub.f32 %v852, %v961
          %v982 = vsub.f32 %v853, %v962
          %v983 = vsub.f32 %v854, %v963
          %v984 = vsel %vm879, -1e+30, %v855
          %v985 = vsel %vm880, -1e+30, %v856
          %v986 = vsel %vm881, -1e+30, %v857
          %v987 = vsel %vm882, -1e+30, %v858
          %v988 = vsel %vm883, -1e+30, %v859
          %v989 = vsel %vm884, -1e+30, %v860
          %v990 = vsel %vm885, -1e+30, %v861
          %v991 = vsel %vm886, -1e+30, %v862
          %v992 = vmax.f32 %v984, %v985
          %993 = vmax.xlane.f32.xlu0 %v992
          %v994 = vpop.xlane.xlu0 %993
          %v995 = vmax.f32 %v986, %v987
          %996 = vmax.xlane.f32.xlu0 %v995
          %v997 = vpop.xlane.xlu0 %996
          %v998 = vmax.f32 %v988, %v989
          %999 = vmax.xlane.f32.xlu0 %v998
          %v1000 = vpop.xlane.xlu0 %999
          %v1001 = vmax.f32 %v990, %v991
          %1002 = vmax.xlane.f32.xlu0 %v1001
          %v1003 = vpop.xlane.xlu0 %1002
          %vm1004 = vcmp.gt.f32.partialorder %v994, -1e+29
          %vm1005 = vcmp.gt.f32.partialorder %v997, -1e+29
          %vm1006 = vcmp.gt.f32.partialorder %v1000, -1e+29
          %vm1007 = vcmp.gt.f32.partialorder %v1003, -1e+29
          %vm1008 = vcmp.eq.f32.partialorder %v984, %v994
          %vm1009 = vcmp.eq.f32.partialorder %v985, %v994
          %vm1010 = vcmp.eq.f32.partialorder %v986, %v997
          %vm1011 = vcmp.eq.f32.partialorder %v987, %v997
          %vm1012 = vcmp.eq.f32.partialorder %v988, %v1000
          %vm1013 = vcmp.eq.f32.partialorder %v989, %v1000
          %vm1014 = vcmp.eq.f32.partialorder %v990, %v1003
          %vm1015 = vcmp.eq.f32.partialorder %v991, %v1003
          %v1016 = vsel %vm1008, 1.0, 0.0
          %v1017 = vsel %vm1009, 1.0, 0.0
          %v1018 = vsel %vm1010, 1.0, 0.0
          %v1019 = vsel %vm1011, 1.0, 0.0
          %v1020 = vsel %vm1012, 1.0, 0.0
          %v1021 = vsel %vm1013, 1.0, 0.0
          %v1022 = vsel %vm1014, 1.0, 0.0
          %v1023 = vsel %vm1015, 1.0, 0.0
          %v1024 = vpack.c.bf16 %v1018, %v1016
          %v1025 = vpack.c.bf16 %v1019, %v1017
          %v1026 = vpack.c.bf16 %v1022, %v1020
          %v1027 = vpack.c.bf16 %v1023, %v1021
          %1028 = vmatprep.subr.bf16.mxu0 0
          %1029 = vmatpush1.bf16.msra.mxu0 1065369472
          %1030 = vmatprep.subr.bf16.mxu0 0
          %1031 = vmatpush1.bf16.msra.mxu0 1065369472
          %1032 = vmatprep.subr.bf16.mxu0 0
          %1033 = vmatpush1.bf16.msra.mxu0 1065369472
          %1034 = vmatprep.subr.bf16.mxu0 0
          %1035 = vmatpush1.bf16.msra.mxu0 1065369472
          %1036 = vmatprep.subr.bf16.mxu0 0
          %1037 = vmatpush1.bf16.msra.mxu0 1065369472
          %1038 = vmatprep.subr.bf16.mxu0 0
          %1039 = vmatpush1.bf16.msra.mxu0 1065369472
          %1040 = vmatprep.subr.bf16.mxu0 0
          %1041 = vmatpush1.bf16.msra.mxu0 1065369472
          %1042 = vmatprep.subr.bf16.mxu0 0
          %1043 = vmatpush1.bf16.msra.mxu0 1065369472
          %1044 = vmatprep.subr.bf16.mxu0 0
          %1045 = vmatpush1.bf16.msra.mxu0 1065369472
          %1046 = vmatprep.subr.bf16.mxu0 0
          %1047 = vmatpush1.bf16.msra.mxu0 1065369472
          %1048 = vmatprep.subr.bf16.mxu0 0
          %1049 = vmatpush1.bf16.msra.mxu0 1065369472
          %1050 = vmatprep.subr.bf16.mxu0 0
          %1051 = vmatpush1.bf16.msra.mxu0 1065369472
          %1052 = vmatprep.subr.bf16.mxu0 0
          %1053 = vmatpush1.bf16.msra.mxu0 1065369472
          %1054 = vmatprep.subr.bf16.mxu0 0
          %1055 = vmatpush1.bf16.msra.mxu0 1065369472
          %1056 = vmatprep.subr.bf16.mxu0 0
          %1057 = vmatpush1.bf16.msra.mxu0 1065369472
          %1058 = vmatprep.subr.bf16.mxu0 0
          %1059 = vmatpush1.bf16.msra.mxu0 1065369472
          %1060 = vmatprep.mubr.bf16.mxu0 %v1025
          %1061 = vmatmul.mubr.bf16.gmra.mrb[0].mxu0 %v1024
          %v1062 = vpop.f32.mrb[0].mxu0
          %v1063 = vadd.f32 0.0, %v1062
          %v1064 = vpop.f32.mrb[0].mxu0
          %v1065 = vpop.f32.mrb[0].mxu0
          %v1066 = vadd.f32 0.0, %v1065
          %v1067 = vpop.f32.mrb[0].mxu0
          %1068 = vmatprep.mubr.bf16.mxu0 %v1027
          %1069 = vmatmul.mubr.bf16.gmra.mrb[0].mxu0 %v1026
          %v1070 = vpop.f32.mrb[0].mxu0
          %v1071 = vadd.f32 0.0, %v1070
          %v1072 = vpop.f32.mrb[0].mxu0
          %v1073 = vpop.f32.mrb[0].mxu0
          %v1074 = vadd.f32 0.0, %v1073
          %v1075 = vpop.f32.mrb[0].mxu0
          %1076 = vdwg.mxu0
          %v1077 = vmin.f32 %v1063, %v980
          %v1078 = vmin.f32 %v1066, %v981
          %v1079 = vmin.f32 %v1071, %v982
          %v1080 = vmin.f32 %v1074, %v983
          %v1081 = vsel %vm1004, 1, 0
          %v1082 = vsel %vm1005, 1, 0
          %v1083 = vsel %vm1006, 1, 0
          %v1084 = vsel %vm1007, 1, 0
          %vm1085 = vcmp.eq.s32.totalorder %v1081, 1
          %vm1086 = vcmp.eq.s32.totalorder %v1082, 1
          %vm1087 = vcmp.eq.s32.totalorder %v1083, 1
          %vm1088 = vcmp.eq.s32.totalorder %v1084, 1
          %v1089 = vsel %vm1085, %v1077, 0.0
          %v1090 = vsel %vm1086, %v1078, 0.0
          %v1091 = vsel %vm1087, %v1079, 0.0
          %v1092 = vsel %vm1088, %v1080, 0.0
          %v1093 = vsel %vm1004, %v994, 0.0
          %v1094 = vsel %vm1005, %v997, 0.0
          %v1095 = vsel %vm1006, %v1000, 0.0
          %v1096 = vsel %vm1007, %v1003, 0.0
          %v1097 = vmul.f32 %v1089, %v1093
          %v1098 = vmul.f32 %v1090, %v1094
          %v1099 = vmul.f32 %v1091, %v1095
          %v1100 = vmul.f32 %v1092, %v1096
          %v1101 = vadd.f32 %v972, %v1097
          %v1102 = vadd.f32 %v973, %v1098
          %v1103 = vadd.f32 %v974, %v1099
          %v1104 = vadd.f32 %v975, %v1100
          %v1105 = vadd.f32 %v976, %v1089
          %v1106 = vadd.f32 %v977, %v1090
          %v1107 = vadd.f32 %v978, %v1091
          %v1108 = vadd.f32 %v979, %v1092
          %v1109 = vsub.f32 %v980, %v1089
          %v1110 = vsub.f32 %v981, %v1090
          %v1111 = vsub.f32 %v982, %v1091
          %v1112 = vsub.f32 %v983, %v1092
          %v1113 = vsel %vm1008, -1e+30, %v984
          %v1114 = vsel %vm1009, -1e+30, %v985
          %v1115 = vsel %vm1010, -1e+30, %v986
          %v1116 = vsel %vm1011, -1e+30, %v987
          %v1117 = vsel %vm1012, -1e+30, %v988
          %v1118 = vsel %vm1013, -1e+30, %v989
          %v1119 = vsel %vm1014, -1e+30, %v990
          %v1120 = vsel %vm1015, -1e+30, %v991
          %v1121 = vmax.f32 %v1113, %v1114
          %1122 = vmax.xlane.f32.xlu0 %v1121
          %v1123 = vpop.xlane.xlu0 %1122
          %v1124 = vmax.f32 %v1115, %v1116
          %1125 = vmax.xlane.f32.xlu0 %v1124
          %v1126 = vpop.xlane.xlu0 %1125
          %v1127 = vmax.f32 %v1117, %v1118
          %1128 = vmax.xlane.f32.xlu0 %v1127
          %v1129 = vpop.xlane.xlu0 %1128
          %v1130 = vmax.f32 %v1119, %v1120
          %1131 = vmax.xlane.f32.xlu0 %v1130
          %v1132 = vpop.xlane.xlu0 %1131
          %vm1133 = vcmp.gt.f32.partialorder %v1123, -1e+29
          %vm1134 = vcmp.gt.f32.partialorder %v1126, -1e+29
          %vm1135 = vcmp.gt.f32.partialorder %v1129, -1e+29
          %vm1136 = vcmp.gt.f32.partialorder %v1132, -1e+29
          %vm1137 = vcmp.eq.f32.partialorder %v1113, %v1123
          %vm1138 = vcmp.eq.f32.partialorder %v1114, %v1123
          %vm1139 = vcmp.eq.f32.partialorder %v1115, %v1126
          %vm1140 = vcmp.eq.f32.partialorder %v1116, %v1126
          %vm1141 = vcmp.eq.f32.partialorder %v1117, %v1129
          %vm1142 = vcmp.eq.f32.partialorder %v1118, %v1129
          %vm1143 = vcmp.eq.f32.partialorder %v1119, %v1132
          %vm1144 = vcmp.eq.f32.partialorder %v1120, %v1132
          %v1145 = vsel %vm1137, 1.0, 0.0
          %v1146 = vsel %vm1138, 1.0, 0.0
          %v1147 = vsel %vm1139, 1.0, 0.0
          %v1148 = vsel %vm1140, 1.0, 0.0
          %v1149 = vsel %vm1141, 1.0, 0.0
          %v1150 = vsel %vm1142, 1.0, 0.0
          %v1151 = vsel %vm1143, 1.0, 0.0
          %v1152 = vsel %vm1144, 1.0, 0.0
          %v1153 = vpack.c.bf16 %v1147, %v1145
          %v1154 = vpack.c.bf16 %v1148, %v1146
          %v1155 = vpack.c.bf16 %v1151, %v1149
          %v1156 = vpack.c.bf16 %v1152, %v1150
          %1157 = vmatprep.subr.bf16.mxu0 0
          %1158 = vmatpush1.bf16.msra.mxu0 1065369472
          %1159 = vmatprep.subr.bf16.mxu0 0
          %1160 = vmatpush1.bf16.msra.mxu0 1065369472
          %1161 = vmatprep.subr.bf16.mxu0 0
          %1162 = vmatpush1.bf16.msra.mxu0 1065369472
          %1163 = vmatprep.subr.bf16.mxu0 0
          %1164 = vmatpush1.bf16.msra.mxu0 1065369472
          %1165 = vmatprep.subr.bf16.mxu0 0
          %1166 = vmatpush1.bf16.msra.mxu0 1065369472
          %1167 = vmatprep.subr.bf16.mxu0 0
          %1168 = vmatpush1.bf16.msra.mxu0 1065369472
          %1169 = vmatprep.subr.bf16.mxu0 0
          %1170 = vmatpush1.bf16.msra.mxu0 1065369472
          %1171 = vmatprep.subr.bf16.mxu0 0
          %1172 = vmatpush1.bf16.msra.mxu0 1065369472
          %1173 = vmatprep.subr.bf16.mxu0 0
          %1174 = vmatpush1.bf16.msra.mxu0 1065369472
          %1175 = vmatprep.subr.bf16.mxu0 0
          %1176 = vmatpush1.bf16.msra.mxu0 1065369472
          %1177 = vmatprep.subr.bf16.mxu0 0
          %1178 = vmatpush1.bf16.msra.mxu0 1065369472
          %1179 = vmatprep.subr.bf16.mxu0 0
          %1180 = vmatpush1.bf16.msra.mxu0 1065369472
          %1181 = vmatprep.subr.bf16.mxu0 0
          %1182 = vmatpush1.bf16.msra.mxu0 1065369472
          %1183 = vmatprep.subr.bf16.mxu0 0
          %1184 = vmatpush1.bf16.msra.mxu0 1065369472
          %1185 = vmatprep.subr.bf16.mxu0 0
          %1186 = vmatpush1.bf16.msra.mxu0 1065369472
          %1187 = vmatprep.subr.bf16.mxu0 0
          %1188 = vmatpush1.bf16.msra.mxu0 1065369472
          %1189 = vmatprep.mubr.bf16.mxu0 %v1154
          %1190 = vmatmul.mubr.bf16.gmra.mrb[0].mxu0 %v1153
          %v1191 = vpop.f32.mrb[0].mxu0
          %v1192 = vadd.f32 0.0, %v1191
          %v1193 = vpop.f32.mrb[0].mxu0
          %v1194 = vpop.f32.mrb[0].mxu0
          %v1195 = vadd.f32 0.0, %v1194
          %v1196 = vpop.f32.mrb[0].mxu0
          %1197 = vmatprep.mubr.bf16.mxu0 %v1156
          %1198 = vmatmul.mubr.bf16.gmra.mrb[0].mxu0 %v1155
          %v1199 = vpop.f32.mrb[0].mxu0
          %v1200 = vadd.f32 0.0, %v1199
          %v1201 = vpop.f32.mrb[0].mxu0
          %v1202 = vpop.f32.mrb[0].mxu0
          %v1203 = vadd.f32 0.0, %v1202
          %v1204 = vpop.f32.mrb[0].mxu0
          %1205 = vdwg.mxu0
          %v1206 = vmin.f32 %v1192, %v1109
          %v1207 = vmin.f32 %v1195, %v1110
          %v1208 = vmin.f32 %v1200, %v1111
          %v1209 = vmin.f32 %v1203, %v1112
          %v1210 = vsel %vm1133, 1, 0
          %v1211 = vsel %vm1134, 1, 0
          %v1212 = vsel %vm1135, 1, 0
          %v1213 = vsel %vm1136, 1, 0
          %vm1214 = vcmp.eq.s32.totalorder %v1210, 1
          %vm1215 = vcmp.eq.s32.totalorder %v1211, 1
          %vm1216 = vcmp.eq.s32.totalorder %v1212, 1
          %vm1217 = vcmp.eq.s32.totalorder %v1213, 1
          %v1218 = vsel %vm1214, %v1206, 0.0
          %v1219 = vsel %vm1215, %v1207, 0.0
          %v1220 = vsel %vm1216, %v1208, 0.0
          %v1221 = vsel %vm1217, %v1209, 0.0
          %v1222 = vsel %vm1133, %v1123, 0.0
          %v1223 = vsel %vm1134, %v1126, 0.0
          %v1224 = vsel %vm1135, %v1129, 0.0
          %v1225 = vsel %vm1136, %v1132, 0.0
          %v1226 = vmul.f32 %v1218, %v1222
          %v1227 = vmul.f32 %v1219, %v1223
          %v1228 = vmul.f32 %v1220, %v1224
          %v1229 = vmul.f32 %v1221, %v1225
          %v1230 = vadd.f32 %v1101, %v1226
          %v1231 = vadd.f32 %v1102, %v1227
          %v1232 = vadd.f32 %v1103, %v1228
          %v1233 = vadd.f32 %v1104, %v1229
          %v1234 = vadd.f32 %v1105, %v1218
          %v1235 = vadd.f32 %v1106, %v1219
          %v1236 = vadd.f32 %v1107, %v1220
          %v1237 = vadd.f32 %v1108, %v1221
          %v1238 = vsub.f32 %v1109, %v1218
          %v1239 = vsub.f32 %v1110, %v1219
          %v1240 = vsub.f32 %v1111, %v1220
          %v1241 = vsub.f32 %v1112, %v1221
          %v1242 = vsel %vm1137, -1e+30, %v1113
          %v1243 = vsel %vm1138, -1e+30, %v1114
          %v1244 = vsel %vm1139, -1e+30, %v1115
          %v1245 = vsel %vm1140, -1e+30, %v1116
          %v1246 = vsel %vm1141, -1e+30, %v1117
          %v1247 = vsel %vm1142, -1e+30, %v1118
          %v1248 = vsel %vm1143, -1e+30, %v1119
          %v1249 = vsel %vm1144, -1e+30, %v1120
          %v1250 = vmax.f32 %v1242, %v1243
          %1251 = vmax.xlane.f32.xlu0 %v1250
          %v1252 = vpop.xlane.xlu0 %1251
          %v1253 = vmax.f32 %v1244, %v1245
          %1254 = vmax.xlane.f32.xlu0 %v1253
          %v1255 = vpop.xlane.xlu0 %1254
          %v1256 = vmax.f32 %v1246, %v1247
          %1257 = vmax.xlane.f32.xlu0 %v1256
          %v1258 = vpop.xlane.xlu0 %1257
          %v1259 = vmax.f32 %v1248, %v1249
          %1260 = vmax.xlane.f32.xlu0 %v1259
          %v1261 = vpop.xlane.xlu0 %1260
          %vm1262 = vcmp.gt.f32.partialorder %v1252, -1e+29
          %vm1263 = vcmp.gt.f32.partialorder %v1255, -1e+29
          %vm1264 = vcmp.gt.f32.partialorder %v1258, -1e+29
          %vm1265 = vcmp.gt.f32.partialorder %v1261, -1e+29
          %vm1266 = vcmp.eq.f32.partialorder %v1242, %v1252
          %vm1267 = vcmp.eq.f32.partialorder %v1243, %v1252
          %vm1268 = vcmp.eq.f32.partialorder %v1244, %v1255
          %vm1269 = vcmp.eq.f32.partialorder %v1245, %v1255
          %vm1270 = vcmp.eq.f32.partialorder %v1246, %v1258
          %vm1271 = vcmp.eq.f32.partialorder %v1247, %v1258
          %vm1272 = vcmp.eq.f32.partialorder %v1248, %v1261
          %vm1273 = vcmp.eq.f32.partialorder %v1249, %v1261
          %v1274 = vsel %vm1266, 1.0, 0.0
          %v1275 = vsel %vm1267, 1.0, 0.0
          %v1276 = vsel %vm1268, 1.0, 0.0
          %v1277 = vsel %vm1269, 1.0, 0.0
          %v1278 = vsel %vm1270, 1.0, 0.0
          %v1279 = vsel %vm1271, 1.0, 0.0
          %v1280 = vsel %vm1272, 1.0, 0.0
          %v1281 = vsel %vm1273, 1.0, 0.0
          %v1282 = vpack.c.bf16 %v1276, %v1274
          %v1283 = vpack.c.bf16 %v1277, %v1275
          %v1284 = vpack.c.bf16 %v1280, %v1278
          %v1285 = vpack.c.bf16 %v1281, %v1279
          %1286 = vmatprep.subr.bf16.mxu0 0
          %1287 = vmatpush1.bf16.msra.mxu0 1065369472
          %1288 = vmatprep.subr.bf16.mxu0 0
          %1289 = vmatpush1.bf16.msra.mxu0 1065369472
          %1290 = vmatprep.subr.bf16.mxu0 0
          %1291 = vmatpush1.bf16.msra.mxu0 1065369472
          %1292 = vmatprep.subr.bf16.mxu0 0
          %1293 = vmatpush1.bf16.msra.mxu0 1065369472
          %1294 = vmatprep.subr.bf16.mxu0 0
          %1295 = vmatpush1.bf16.msra.mxu0 1065369472
          %1296 = vmatprep.subr.bf16.mxu0 0
          %1297 = vmatpush1.bf16.msra.mxu0 1065369472
          %1298 = vmatprep.subr.bf16.mxu0 0
          %1299 = vmatpush1.bf16.msra.mxu0 1065369472
          %1300 = vmatprep.subr.bf16.mxu0 0
          %1301 = vmatpush1.bf16.msra.mxu0 1065369472
          %1302 = vmatprep.subr.bf16.mxu0 0
          %1303 = vmatpush1.bf16.msra.mxu0 1065369472
          %1304 = vmatprep.subr.bf16.mxu0 0
          %1305 = vmatpush1.bf16.msra.mxu0 1065369472
          %1306 = vmatprep.subr.bf16.mxu0 0
          %1307 = vmatpush1.bf16.msra.mxu0 1065369472
          %1308 = vmatprep.subr.bf16.mxu0 0
          %1309 = vmatpush1.bf16.msra.mxu0 1065369472
          %1310 = vmatprep.subr.bf16.mxu0 0
          %1311 = vmatpush1.bf16.msra.mxu0 1065369472
          %1312 = vmatprep.subr.bf16.mxu0 0
          %1313 = vmatpush1.bf16.msra.mxu0 1065369472
          %1314 = vmatprep.subr.bf16.mxu0 0
          %1315 = vmatpush1.bf16.msra.mxu0 1065369472
          %1316 = vmatprep.subr.bf16.mxu0 0
          %1317 = vmatpush1.bf16.msra.mxu0 1065369472
          %1318 = vmatprep.mubr.bf16.mxu0 %v1283
          %1319 = vmatmul.mubr.bf16.gmra.mrb[0].mxu0 %v1282
          %v1320 = vpop.f32.mrb[0].mxu0
          %v1321 = vadd.f32 0.0, %v1320
          %v1322 = vpop.f32.mrb[0].mxu0
          %v1323 = vpop.f32.mrb[0].mxu0
          %v1324 = vadd.f32 0.0, %v1323
          %v1325 = vpop.f32.mrb[0].mxu0
          %1326 = vmatprep.mubr.bf16.mxu0 %v1285
          %1327 = vmatmul.mubr.bf16.gmra.mrb[0].mxu0 %v1284
          %v1328 = vpop.f32.mrb[0].mxu0
          %v1329 = vadd.f32 0.0, %v1328
          %v1330 = vpop.f32.mrb[0].mxu0
          %v1331 = vpop.f32.mrb[0].mxu0
          %v1332 = vadd.f32 0.0, %v1331
          %v1333 = vpop.f32.mrb[0].mxu0
          %1334 = vdwg.mxu0
          %v1335 = vmin.f32 %v1321, %v1238
          %v1336 = vmin.f32 %v1324, %v1239
          %v1337 = vmin.f32 %v1329, %v1240
          %v1338 = vmin.f32 %v1332, %v1241
          %v1339 = vsel %vm1262, 1, 0
          %v1340 = vsel %vm1263, 1, 0
          %v1341 = vsel %vm1264, 1, 0
          %v1342 = vsel %vm1265, 1, 0
          %vm1343 = vcmp.eq.s32.totalorder %v1339, 1
          %vm1344 = vcmp.eq.s32.totalorder %v1340, 1
          %vm1345 = vcmp.eq.s32.totalorder %v1341, 1
          %vm1346 = vcmp.eq.s32.totalorder %v1342, 1
          %v1347 = vsel %vm1343, %v1335, 0.0
          %v1348 = vsel %vm1344, %v1336, 0.0
          %v1349 = vsel %vm1345, %v1337, 0.0
          %v1350 = vsel %vm1346, %v1338, 0.0
          %v1351 = vsel %vm1262, %v1252, 0.0
          %v1352 = vsel %vm1263, %v1255, 0.0
          %v1353 = vsel %vm1264, %v1258, 0.0
          %v1354 = vsel %vm1265, %v1261, 0.0
          %v1355 = vmul.f32 %v1347, %v1351
          %v1356 = vmul.f32 %v1348, %v1352
          %v1357 = vmul.f32 %v1349, %v1353
          %v1358 = vmul.f32 %v1350, %v1354
          %v1359 = vadd.f32 %v1230, %v1355
          %v1360 = vadd.f32 %v1231, %v1356
          %v1361 = vadd.f32 %v1232, %v1357
          %v1362 = vadd.f32 %v1233, %v1358
          %v1363 = vadd.f32 %v1234, %v1347
          %v1364 = vadd.f32 %v1235, %v1348
          %v1365 = vadd.f32 %v1236, %v1349
          %v1366 = vadd.f32 %v1237, %v1350
          %v1367 = vsub.f32 %v1238, %v1347
          %v1368 = vsub.f32 %v1239, %v1348
          %v1369 = vsub.f32 %v1240, %v1349
          %v1370 = vsub.f32 %v1241, %v1350
          %v1371 = vsel %vm1266, -1e+30, %v1242
          %v1372 = vsel %vm1267, -1e+30, %v1243
          %v1373 = vsel %vm1268, -1e+30, %v1244
          %v1374 = vsel %vm1269, -1e+30, %v1245
          %v1375 = vsel %vm1270, -1e+30, %v1246
          %v1376 = vsel %vm1271, -1e+30, %v1247
          %v1377 = vsel %vm1272, -1e+30, %v1248
          %v1378 = vsel %vm1273, -1e+30, %v1249
          %v1379 = vmax.f32 %v1371, %v1372
          %1380 = vmax.xlane.f32.xlu0 %v1379
          %v1381 = vpop.xlane.xlu0 %1380
          %v1382 = vmax.f32 %v1373, %v1374
          %1383 = vmax.xlane.f32.xlu0 %v1382
          %v1384 = vpop.xlane.xlu0 %1383
          %v1385 = vmax.f32 %v1375, %v1376
          %1386 = vmax.xlane.f32.xlu0 %v1385
          %v1387 = vpop.xlane.xlu0 %1386
          %v1388 = vmax.f32 %v1377, %v1378
          %1389 = vmax.xlane.f32.xlu0 %v1388
          %v1390 = vpop.xlane.xlu0 %1389
          %vm1391 = vcmp.gt.f32.partialorder %v1381, -1e+29
          %vm1392 = vcmp.gt.f32.partialorder %v1384, -1e+29
          %vm1393 = vcmp.gt.f32.partialorder %v1387, -1e+29
          %vm1394 = vcmp.gt.f32.partialorder %v1390, -1e+29
          %vm1395 = vcmp.eq.f32.partialorder %v1371, %v1381
          %vm1396 = vcmp.eq.f32.partialorder %v1372, %v1381
          %vm1397 = vcmp.eq.f32.partialorder %v1373, %v1384
          %vm1398 = vcmp.eq.f32.partialorder %v1374, %v1384
          %vm1399 = vcmp.eq.f32.partialorder %v1375, %v1387
          %vm1400 = vcmp.eq.f32.partialorder %v1376, %v1387
          %vm1401 = vcmp.eq.f32.partialorder %v1377, %v1390
          %vm1402 = vcmp.eq.f32.partialorder %v1378, %v1390
          %v1403 = vsel %vm1395, 1.0, 0.0
          %v1404 = vsel %vm1396, 1.0, 0.0
          %v1405 = vsel %vm1397, 1.0, 0.0
          %v1406 = vsel %vm1398, 1.0, 0.0
          %v1407 = vsel %vm1399, 1.0, 0.0
          %v1408 = vsel %vm1400, 1.0, 0.0
          %v1409 = vsel %vm1401, 1.0, 0.0
          %v1410 = vsel %vm1402, 1.0, 0.0
          %v1411 = vpack.c.bf16 %v1405, %v1403
          %v1412 = vpack.c.bf16 %v1406, %v1404
          %v1413 = vpack.c.bf16 %v1409, %v1407
          %v1414 = vpack.c.bf16 %v1410, %v1408
          %1415 = vmatprep.subr.bf16.mxu0 0
          %1416 = vmatpush1.bf16.msra.mxu0 1065369472
          %1417 = vmatprep.subr.bf16.mxu0 0
          %1418 = vmatpush1.bf16.msra.mxu0 1065369472
          %1419 = vmatprep.subr.bf16.mxu0 0
          %1420 = vmatpush1.bf16.msra.mxu0 1065369472
          %1421 = vmatprep.subr.bf16.mxu0 0
          %1422 = vmatpush1.bf16.msra.mxu0 1065369472
          %1423 = vmatprep.subr.bf16.mxu0 0
          %1424 = vmatpush1.bf16.msra.mxu0 1065369472
          %1425 = vmatprep.subr.bf16.mxu0 0
          %1426 = vmatpush1.bf16.msra.mxu0 1065369472
          %1427 = vmatprep.subr.bf16.mxu0 0
          %1428 = vmatpush1.bf16.msra.mxu0 1065369472
          %1429 = vmatprep.subr.bf16.mxu0 0
          %1430 = vmatpush1.bf16.msra.mxu0 1065369472
          %1431 = vmatprep.subr.bf16.mxu0 0
          %1432 = vmatpush1.bf16.msra.mxu0 1065369472
          %1433 = vmatprep.subr.bf16.mxu0 0
          %1434 = vmatpush1.bf16.msra.mxu0 1065369472
          %1435 = vmatprep.subr.bf16.mxu0 0
          %1436 = vmatpush1.bf16.msra.mxu0 1065369472
          %1437 = vmatprep.subr.bf16.mxu0 0
          %1438 = vmatpush1.bf16.msra.mxu0 1065369472
          %1439 = vmatprep.subr.bf16.mxu0 0
          %1440 = vmatpush1.bf16.msra.mxu0 1065369472
          %1441 = vmatprep.subr.bf16.mxu0 0
          %1442 = vmatpush1.bf16.msra.mxu0 1065369472
          %1443 = vmatprep.subr.bf16.mxu0 0
          %1444 = vmatpush1.bf16.msra.mxu0 1065369472
          %1445 = vmatprep.subr.bf16.mxu0 0
          %1446 = vmatpush1.bf16.msra.mxu0 1065369472
          %1447 = vmatprep.mubr.bf16.mxu0 %v1412
          %1448 = vmatmul.mubr.bf16.gmra.mrb[0].mxu0 %v1411
          %v1449 = vpop.f32.mrb[0].mxu0
          %v1450 = vadd.f32 0.0, %v1449
          %v1451 = vpop.f32.mrb[0].mxu0
          %v1452 = vpop.f32.mrb[0].mxu0
          %v1453 = vadd.f32 0.0, %v1452
          %v1454 = vpop.f32.mrb[0].mxu0
          %1455 = vmatprep.mubr.bf16.mxu0 %v1414
          %1456 = vmatmul.mubr.bf16.gmra.mrb[0].mxu0 %v1413
          %v1457 = vpop.f32.mrb[0].mxu0
          %v1458 = vadd.f32 0.0, %v1457
          %v1459 = vpop.f32.mrb[0].mxu0
          %v1460 = vpop.f32.mrb[0].mxu0
          %v1461 = vadd.f32 0.0, %v1460
          %v1462 = vpop.f32.mrb[0].mxu0
          %1463 = vdwg.mxu0
          %v1464 = vmin.f32 %v1450, %v1367
          %v1465 = vmin.f32 %v1453, %v1368
          %v1466 = vmin.f32 %v1458, %v1369
          %v1467 = vmin.f32 %v1461, %v1370
          %v1468 = vsel %vm1391, 1, 0
          %v1469 = vsel %vm1392, 1, 0
          %v1470 = vsel %vm1393, 1, 0
          %v1471 = vsel %vm1394, 1, 0
          %vm1472 = vcmp.eq.s32.totalorder %v1468, 1
          %vm1473 = vcmp.eq.s32.totalorder %v1469, 1
          %vm1474 = vcmp.eq.s32.totalorder %v1470, 1
          %vm1475 = vcmp.eq.s32.totalorder %v1471, 1
          %v1476 = vsel %vm1472, %v1464, 0.0
          %v1477 = vsel %vm1473, %v1465, 0.0
          %v1478 = vsel %vm1474, %v1466, 0.0
          %v1479 = vsel %vm1475, %v1467, 0.0
          %v1480 = vsel %vm1391, %v1381, 0.0
          %v1481 = vsel %vm1392, %v1384, 0.0
          %v1482 = vsel %vm1393, %v1387, 0.0
          %v1483 = vsel %vm1394, %v1390, 0.0
          %v1484 = vmul.f32 %v1476, %v1480
          %v1485 = vmul.f32 %v1477, %v1481
          %v1486 = vmul.f32 %v1478, %v1482
          %v1487 = vmul.f32 %v1479, %v1483
          %v1488 = vadd.f32 %v1359, %v1484
          %v1489 = vadd.f32 %v1360, %v1485
          %v1490 = vadd.f32 %v1361, %v1486
          %v1491 = vadd.f32 %v1362, %v1487
          %v1492 = vadd.f32 %v1363, %v1476
          %v1493 = vadd.f32 %v1364, %v1477
          %v1494 = vadd.f32 %v1365, %v1478
          %v1495 = vadd.f32 %v1366, %v1479
          %v1496 = vsub.f32 %v1367, %v1476
          %v1497 = vsub.f32 %v1368, %v1477
          %v1498 = vsub.f32 %v1369, %v1478
          %v1499 = vsub.f32 %v1370, %v1479
          %v1500 = vsel %vm1395, -1e+30, %v1371
          %v1501 = vsel %vm1396, -1e+30, %v1372
          %v1502 = vsel %vm1397, -1e+30, %v1373
          %v1503 = vsel %vm1398, -1e+30, %v1374
          %v1504 = vsel %vm1399, -1e+30, %v1375
          %v1505 = vsel %vm1400, -1e+30, %v1376
          %v1506 = vsel %vm1401, -1e+30, %v1377
          %v1507 = vsel %vm1402, -1e+30, %v1378
          %v1508 = vmax.f32 %v1500, %v1501
          %1509 = vmax.xlane.f32.xlu0 %v1508
          %v1510 = vpop.xlane.xlu0 %1509
          %v1511 = vmax.f32 %v1502, %v1503
          %1512 = vmax.xlane.f32.xlu0 %v1511
          %v1513 = vpop.xlane.xlu0 %1512
          %v1514 = vmax.f32 %v1504, %v1505
          %1515 = vmax.xlane.f32.xlu0 %v1514
          %v1516 = vpop.xlane.xlu0 %1515
          %v1517 = vmax.f32 %v1506, %v1507
          %1518 = vmax.xlane.f32.xlu0 %v1517
          %v1519 = vpop.xlane.xlu0 %1518
          %vm1520 = vcmp.gt.f32.partialorder %v1510, -1e+29
          %vm1521 = vcmp.gt.f32.partialorder %v1513, -1e+29
          %vm1522 = vcmp.gt.f32.partialorder %v1516, -1e+29
          %vm1523 = vcmp.gt.f32.partialorder %v1519, -1e+29
          %vm1524 = vcmp.eq.f32.partialorder %v1500, %v1510
          %vm1525 = vcmp.eq.f32.partialorder %v1501, %v1510
          %vm1526 = vcmp.eq.f32.partialorder %v1502, %v1513
          %vm1527 = vcmp.eq.f32.partialorder %v1503, %v1513
          %vm1528 = vcmp.eq.f32.partialorder %v1504, %v1516
          %vm1529 = vcmp.eq.f32.partialorder %v1505, %v1516
          %vm1530 = vcmp.eq.f32.partialorder %v1506, %v1519
          %vm1531 = vcmp.eq.f32.partialorder %v1507, %v1519
          %v1532 = vsel %vm1524, 1.0, 0.0
          %v1533 = vsel %vm1525, 1.0, 0.0
          %v1534 = vsel %vm1526, 1.0, 0.0
          %v1535 = vsel %vm1527, 1.0, 0.0
          %v1536 = vsel %vm1528, 1.0, 0.0
          %v1537 = vsel %vm1529, 1.0, 0.0
          %v1538 = vsel %vm1530, 1.0, 0.0
          %v1539 = vsel %vm1531, 1.0, 0.0
          %v1540 = vpack.c.bf16 %v1534, %v1532
          %v1541 = vpack.c.bf16 %v1535, %v1533
          %v1542 = vpack.c.bf16 %v1538, %v1536
          %v1543 = vpack.c.bf16 %v1539, %v1537
          %1544 = vmatprep.subr.bf16.mxu0 0
          %1545 = vmatpush1.bf16.msra.mxu0 1065369472
          %1546 = vmatprep.subr.bf16.mxu0 0
          %1547 = vmatpush1.bf16.msra.mxu0 1065369472
          %1548 = vmatprep.subr.bf16.mxu0 0
          %1549 = vmatpush1.bf16.msra.mxu0 1065369472
          %1550 = vmatprep.subr.bf16.mxu0 0
          %1551 = vmatpush1.bf16.msra.mxu0 1065369472
          %1552 = vmatprep.subr.bf16.mxu0 0
          %1553 = vmatpush1.bf16.msra.mxu0 1065369472
          %1554 = vmatprep.subr.bf16.mxu0 0
          %1555 = vmatpush1.bf16.msra.mxu0 1065369472
          %1556 = vmatprep.subr.bf16.mxu0 0
          %1557 = vmatpush1.bf16.msra.mxu0 1065369472
          %1558 = vmatprep.subr.bf16.mxu0 0
          %1559 = vmatpush1.bf16.msra.mxu0 1065369472
          %1560 = vmatprep.subr.bf16.mxu0 0
          %1561 = vmatpush1.bf16.msra.mxu0 1065369472
          %1562 = vmatprep.subr.bf16.mxu0 0
          %1563 = vmatpush1.bf16.msra.mxu0 1065369472
          %1564 = vmatprep.subr.bf16.mxu0 0
          %1565 = vmatpush1.bf16.msra.mxu0 1065369472
          %1566 = vmatprep.subr.bf16.mxu0 0
          %1567 = vmatpush1.bf16.msra.mxu0 1065369472
          %1568 = vmatprep.subr.bf16.mxu0 0
          %1569 = vmatpush1.bf16.msra.mxu0 1065369472
          %1570 = vmatprep.subr.bf16.mxu0 0
          %1571 = vmatpush1.bf16.msra.mxu0 1065369472
          %1572 = vmatprep.subr.bf16.mxu0 0
          %1573 = vmatpush1.bf16.msra.mxu0 1065369472
          %1574 = vmatprep.subr.bf16.mxu0 0
          %1575 = vmatpush1.bf16.msra.mxu0 1065369472
          %1576 = vmatprep.mubr.bf16.mxu0 %v1541
          %1577 = vmatmul.mubr.bf16.gmra.mrb[0].mxu0 %v1540
          %v1578 = vpop.f32.mrb[0].mxu0
          %v1579 = vadd.f32 0.0, %v1578
          %v1580 = vpop.f32.mrb[0].mxu0
          %v1581 = vpop.f32.mrb[0].mxu0
          %v1582 = vadd.f32 0.0, %v1581
          %v1583 = vpop.f32.mrb[0].mxu0
          %1584 = vmatprep.mubr.bf16.mxu0 %v1543
          %1585 = vmatmul.mubr.bf16.gmra.mrb[0].mxu0 %v1542
          %v1586 = vpop.f32.mrb[0].mxu0
          %v1587 = vadd.f32 0.0, %v1586
          %v1588 = vpop.f32.mrb[0].mxu0
          %v1589 = vpop.f32.mrb[0].mxu0
          %v1590 = vadd.f32 0.0, %v1589
          %v1591 = vpop.f32.mrb[0].mxu0
          %1592 = vdwg.mxu0
          %v1593 = vmin.f32 %v1579, %v1496
          %v1594 = vmin.f32 %v1582, %v1497
          %v1595 = vmin.f32 %v1587, %v1498
          %v1596 = vmin.f32 %v1590, %v1499
          %v1597 = vsel %vm1520, 1, 0
          %v1598 = vsel %vm1521, 1, 0
          %v1599 = vsel %vm1522, 1, 0
          %v1600 = vsel %vm1523, 1, 0
          %vm1601 = vcmp.eq.s32.totalorder %v1597, 1
          %vm1602 = vcmp.eq.s32.totalorder %v1598, 1
          %vm1603 = vcmp.eq.s32.totalorder %v1599, 1
          %vm1604 = vcmp.eq.s32.totalorder %v1600, 1
          %v1605 = vsel %vm1601, %v1593, 0.0
          %v1606 = vsel %vm1602, %v1594, 0.0
          %v1607 = vsel %vm1603, %v1595, 0.0
          %v1608 = vsel %vm1604, %v1596, 0.0
          %v1609 = vsel %vm1520, %v1510, 0.0
          %v1610 = vsel %vm1521, %v1513, 0.0
          %v1611 = vsel %vm1522, %v1516, 0.0
          %v1612 = vsel %vm1523, %v1519, 0.0
          %v1613 = vmul.f32 %v1605, %v1609
          %v1614 = vmul.f32 %v1606, %v1610
          %v1615 = vmul.f32 %v1607, %v1611
          %v1616 = vmul.f32 %v1608, %v1612
          %v1617 = vadd.f32 %v1488, %v1613
          %v1618 = vadd.f32 %v1489, %v1614
          %v1619 = vadd.f32 %v1490, %v1615
          %v1620 = vadd.f32 %v1491, %v1616
          %v1621 = vadd.f32 %v1492, %v1605
          %v1622 = vadd.f32 %v1493, %v1606
          %v1623 = vadd.f32 %v1494, %v1607
          %v1624 = vadd.f32 %v1495, %v1608
          %v1625 = vsub.f32 %v1496, %v1605
          %v1626 = vsub.f32 %v1497, %v1606
          %v1627 = vsub.f32 %v1498, %v1607
          %v1628 = vsub.f32 %v1499, %v1608
          %v1629 = vsel %vm1524, -1e+30, %v1500
          %v1630 = vsel %vm1525, -1e+30, %v1501
          %v1631 = vsel %vm1526, -1e+30, %v1502
          %v1632 = vsel %vm1527, -1e+30, %v1503
          %v1633 = vsel %vm1528, -1e+30, %v1504
          %v1634 = vsel %vm1529, -1e+30, %v1505
          %v1635 = vsel %vm1530, -1e+30, %v1506
          %v1636 = vsel %vm1531, -1e+30, %v1507
          %v1637 = vmax.f32 %v1629, %v1630
          %1638 = vmax.xlane.f32.xlu0 %v1637
          %v1639 = vpop.xlane.xlu0 %1638
          %v1640 = vmax.f32 %v1631, %v1632
          %1641 = vmax.xlane.f32.xlu0 %v1640
          %v1642 = vpop.xlane.xlu0 %1641
          %v1643 = vmax.f32 %v1633, %v1634
          %1644 = vmax.xlane.f32.xlu0 %v1643
          %v1645 = vpop.xlane.xlu0 %1644
          %v1646 = vmax.f32 %v1635, %v1636
          %1647 = vmax.xlane.f32.xlu0 %v1646
          %v1648 = vpop.xlane.xlu0 %1647
          %vm1649 = vcmp.gt.f32.partialorder %v1639, -1e+29
          %vm1650 = vcmp.gt.f32.partialorder %v1642, -1e+29
          %vm1651 = vcmp.gt.f32.partialorder %v1645, -1e+29
          %vm1652 = vcmp.gt.f32.partialorder %v1648, -1e+29
          %vm1653 = vcmp.eq.f32.partialorder %v1629, %v1639
          %vm1654 = vcmp.eq.f32.partialorder %v1630, %v1639
          %vm1655 = vcmp.eq.f32.partialorder %v1631, %v1642
          %vm1656 = vcmp.eq.f32.partialorder %v1632, %v1642
          %vm1657 = vcmp.eq.f32.partialorder %v1633, %v1645
          %vm1658 = vcmp.eq.f32.partialorder %v1634, %v1645
          %vm1659 = vcmp.eq.f32.partialorder %v1635, %v1648
          %vm1660 = vcmp.eq.f32.partialorder %v1636, %v1648
          %v1661 = vsel %vm1653, 1.0, 0.0
          %v1662 = vsel %vm1654, 1.0, 0.0
          %v1663 = vsel %vm1655, 1.0, 0.0
          %v1664 = vsel %vm1656, 1.0, 0.0
          %v1665 = vsel %vm1657, 1.0, 0.0
          %v1666 = vsel %vm1658, 1.0, 0.0
          %v1667 = vsel %vm1659, 1.0, 0.0
          %v1668 = vsel %vm1660, 1.0, 0.0
          %v1669 = vpack.c.bf16 %v1663, %v1661
          %v1670 = vpack.c.bf16 %v1664, %v1662
          %v1671 = vpack.c.bf16 %v1667, %v1665
          %v1672 = vpack.c.bf16 %v1668, %v1666
          %1673 = vmatprep.subr.bf16.mxu0 0
          %1674 = vmatpush1.bf16.msra.mxu0 1065369472
          %1675 = vmatprep.subr.bf16.mxu0 0
          %1676 = vmatpush1.bf16.msra.mxu0 1065369472
          %1677 = vmatprep.subr.bf16.mxu0 0
          %1678 = vmatpush1.bf16.msra.mxu0 1065369472
          %1679 = vmatprep.subr.bf16.mxu0 0
          %1680 = vmatpush1.bf16.msra.mxu0 1065369472
          %1681 = vmatprep.subr.bf16.mxu0 0
          %1682 = vmatpush1.bf16.msra.mxu0 1065369472
          %1683 = vmatprep.subr.bf16.mxu0 0
          %1684 = vmatpush1.bf16.msra.mxu0 1065369472
          %1685 = vmatprep.subr.bf16.mxu0 0
          %1686 = vmatpush1.bf16.msra.mxu0 1065369472
          %1687 = vmatprep.subr.bf16.mxu0 0
          %1688 = vmatpush1.bf16.msra.mxu0 1065369472
          %1689 = vmatprep.subr.bf16.mxu0 0
          %1690 = vmatpush1.bf16.msra.mxu0 1065369472
          %1691 = vmatprep.subr.bf16.mxu0 0
          %1692 = vmatpush1.bf16.msra.mxu0 1065369472
          %1693 = vmatprep.subr.bf16.mxu0 0
          %1694 = vmatpush1.bf16.msra.mxu0 1065369472
          %1695 = vmatprep.subr.bf16.mxu0 0
          %1696 = vmatpush1.bf16.msra.mxu0 1065369472
          %1697 = vmatprep.subr.bf16.mxu0 0
          %1698 = vmatpush1.bf16.msra.mxu0 1065369472
          %1699 = vmatprep.subr.bf16.mxu0 0
          %1700 = vmatpush1.bf16.msra.mxu0 1065369472
          %1701 = vmatprep.subr.bf16.mxu0 0
          %1702 = vmatpush1.bf16.msra.mxu0 1065369472
          %1703 = vmatprep.subr.bf16.mxu0 0
          %1704 = vmatpush1.bf16.msra.mxu0 1065369472
          %1705 = vmatprep.mubr.bf16.mxu0 %v1670
          %1706 = vmatmul.mubr.bf16.gmra.mrb[0].mxu0 %v1669
          %v1707 = vpop.f32.mrb[0].mxu0
          %v1708 = vadd.f32 0.0, %v1707
          %v1709 = vpop.f32.mrb[0].mxu0
          %v1710 = vpop.f32.mrb[0].mxu0
          %v1711 = vadd.f32 0.0, %v1710
          %v1712 = vpop.f32.mrb[0].mxu0
          %1713 = vmatprep.mubr.bf16.mxu0 %v1672
          %1714 = vmatmul.mubr.bf16.gmra.mrb[0].mxu0 %v1671
          %v1715 = vpop.f32.mrb[0].mxu0
          %v1716 = vadd.f32 0.0, %v1715
          %v1717 = vpop.f32.mrb[0].mxu0
          %v1718 = vpop.f32.mrb[0].mxu0
          %v1719 = vadd.f32 0.0, %v1718
          %v1720 = vpop.f32.mrb[0].mxu0
          %1721 = vdwg.mxu0
          %v1722 = vmin.f32 %v1708, %v1625
          %v1723 = vmin.f32 %v1711, %v1626
          %v1724 = vmin.f32 %v1716, %v1627
          %v1725 = vmin.f32 %v1719, %v1628
          %v1726 = vsel %vm1649, 1, 0
          %v1727 = vsel %vm1650, 1, 0
          %v1728 = vsel %vm1651, 1, 0
          %v1729 = vsel %vm1652, 1, 0
          %vm1730 = vcmp.eq.s32.totalorder %v1726, 1
          %vm1731 = vcmp.eq.s32.totalorder %v1727, 1
          %vm1732 = vcmp.eq.s32.totalorder %v1728, 1
          %vm1733 = vcmp.eq.s32.totalorder %v1729, 1
          %v1734 = vsel %vm1730, %v1722, 0.0
          %v1735 = vsel %vm1731, %v1723, 0.0
          %v1736 = vsel %vm1732, %v1724, 0.0
          %v1737 = vsel %vm1733, %v1725, 0.0
          %v1738 = vsel %vm1649, %v1639, 0.0
          %v1739 = vsel %vm1650, %v1642, 0.0
          %v1740 = vsel %vm1651, %v1645, 0.0
          %v1741 = vsel %vm1652, %v1648, 0.0
          %v1742 = vmul.f32 %v1734, %v1738
          %v1743 = vmul.f32 %v1735, %v1739
          %v1744 = vmul.f32 %v1736, %v1740
          %v1745 = vmul.f32 %v1737, %v1741
          %v1746 = vadd.f32 %v1617, %v1742
          %v1747 = vadd.f32 %v1618, %v1743
          %v1748 = vadd.f32 %v1619, %v1744
          %v1749 = vadd.f32 %v1620, %v1745
          %v1750 = vadd.f32 %v1621, %v1734
          %v1751 = vadd.f32 %v1622, %v1735
          %v1752 = vadd.f32 %v1623, %v1736
          %v1753 = vadd.f32 %v1624, %v1737
          %v1754 = vsub.f32 %v1625, %v1734
          %v1755 = vsub.f32 %v1626, %v1735
          %v1756 = vsub.f32 %v1627, %v1736
          %v1757 = vsub.f32 %v1628, %v1737
          %v1758 = vsel %vm1653, -1e+30, %v1629
          %v1759 = vsel %vm1654, -1e+30, %v1630
          %v1760 = vsel %vm1655, -1e+30, %v1631
          %v1761 = vsel %vm1656, -1e+30, %v1632
          %v1762 = vsel %vm1657, -1e+30, %v1633
          %v1763 = vsel %vm1658, -1e+30, %v1634
          %v1764 = vsel %vm1659, -1e+30, %v1635
          %v1765 = vsel %vm1660, -1e+30, %v1636
          %v1766 = vmax.f32 %v1758, %v1759
          %1767 = vmax.xlane.f32.xlu0 %v1766
          %v1768 = vpop.xlane.xlu0 %1767
          %v1769 = vmax.f32 %v1760, %v1761
          %1770 = vmax.xlane.f32.xlu0 %v1769
          %v1771 = vpop.xlane.xlu0 %1770
          %v1772 = vmax.f32 %v1762, %v1763
          %1773 = vmax.xlane.f32.xlu0 %v1772
          %v1774 = vpop.xlane.xlu0 %1773
          %v1775 = vmax.f32 %v1764, %v1765
          %1776 = vmax.xlane.f32.xlu0 %v1775
          %v1777 = vpop.xlane.xlu0 %1776
          %vm1778 = vcmp.gt.f32.partialorder %v1768, -1e+29
          %vm1779 = vcmp.gt.f32.partialorder %v1771, -1e+29
          %vm1780 = vcmp.gt.f32.partialorder %v1774, -1e+29
          %vm1781 = vcmp.gt.f32.partialorder %v1777, -1e+29
          %vm1782 = vcmp.eq.f32.partialorder %v1758, %v1768
          %vm1783 = vcmp.eq.f32.partialorder %v1759, %v1768
          %vm1784 = vcmp.eq.f32.partialorder %v1760, %v1771
          %vm1785 = vcmp.eq.f32.partialorder %v1761, %v1771
          %vm1786 = vcmp.eq.f32.partialorder %v1762, %v1774
          %vm1787 = vcmp.eq.f32.partialorder %v1763, %v1774
          %vm1788 = vcmp.eq.f32.partialorder %v1764, %v1777
          %vm1789 = vcmp.eq.f32.partialorder %v1765, %v1777
          %v1790 = vsel %vm1782, 1.0, 0.0
          %v1791 = vsel %vm1783, 1.0, 0.0
          %v1792 = vsel %vm1784, 1.0, 0.0
          %v1793 = vsel %vm1785, 1.0, 0.0
          %v1794 = vsel %vm1786, 1.0, 0.0
          %v1795 = vsel %vm1787, 1.0, 0.0
          %v1796 = vsel %vm1788, 1.0, 0.0
          %v1797 = vsel %vm1789, 1.0, 0.0
          %v1798 = vpack.c.bf16 %v1792, %v1790
          %v1799 = vpack.c.bf16 %v1793, %v1791
          %v1800 = vpack.c.bf16 %v1796, %v1794
          %v1801 = vpack.c.bf16 %v1797, %v1795
          %1802 = vmatprep.subr.bf16.mxu0 0
          %1803 = vmatpush1.bf16.msra.mxu0 1065369472
          %1804 = vmatprep.subr.bf16.mxu0 0
          %1805 = vmatpush1.bf16.msra.mxu0 1065369472
          %1806 = vmatprep.subr.bf16.mxu0 0
          %1807 = vmatpush1.bf16.msra.mxu0 1065369472
          %1808 = vmatprep.subr.bf16.mxu0 0
          %1809 = vmatpush1.bf16.msra.mxu0 1065369472
          %1810 = vmatprep.subr.bf16.mxu0 0
          %1811 = vmatpush1.bf16.msra.mxu0 1065369472
          %1812 = vmatprep.subr.bf16.mxu0 0
          %1813 = vmatpush1.bf16.msra.mxu0 1065369472
          %1814 = vmatprep.subr.bf16.mxu0 0
          %1815 = vmatpush1.bf16.msra.mxu0 1065369472
          %1816 = vmatprep.subr.bf16.mxu0 0
          %1817 = vmatpush1.bf16.msra.mxu0 1065369472
          %1818 = vmatprep.subr.bf16.mxu0 0
          %1819 = vmatpush1.bf16.msra.mxu0 1065369472
          %1820 = vmatprep.subr.bf16.mxu0 0
          %1821 = vmatpush1.bf16.msra.mxu0 1065369472
          %1822 = vmatprep.subr.bf16.mxu0 0
          %1823 = vmatpush1.bf16.msra.mxu0 1065369472
          %1824 = vmatprep.subr.bf16.mxu0 0
          %1825 = vmatpush1.bf16.msra.mxu0 1065369472
          %1826 = vmatprep.subr.bf16.mxu0 0
          %1827 = vmatpush1.bf16.msra.mxu0 1065369472
          %1828 = vmatprep.subr.bf16.mxu0 0
          %1829 = vmatpush1.bf16.msra.mxu0 1065369472
          %1830 = vmatprep.subr.bf16.mxu0 0
          %1831 = vmatpush1.bf16.msra.mxu0 1065369472
          %1832 = vmatprep.subr.bf16.mxu0 0
          %1833 = vmatpush1.bf16.msra.mxu0 1065369472
          %1834 = vmatprep.mubr.bf16.mxu0 %v1799
          %1835 = vmatmul.mubr.bf16.gmra.mrb[0].mxu0 %v1798
          %v1836 = vpop.f32.mrb[0].mxu0
          %v1837 = vadd.f32 0.0, %v1836
          %v1838 = vpop.f32.mrb[0].mxu0
          %v1839 = vpop.f32.mrb[0].mxu0
          %v1840 = vadd.f32 0.0, %v1839
          %v1841 = vpop.f32.mrb[0].mxu0
          %1842 = vmatprep.mubr.bf16.mxu0 %v1801
          %1843 = vmatmul.mubr.bf16.gmra.mrb[0].mxu0 %v1800
          %v1844 = vpop.f32.mrb[0].mxu0
          %v1845 = vadd.f32 0.0, %v1844
          %v1846 = vpop.f32.mrb[0].mxu0
          %v1847 = vpop.f32.mrb[0].mxu0
          %v1848 = vadd.f32 0.0, %v1847
          %v1849 = vpop.f32.mrb[0].mxu0
          %1850 = vdwg.mxu0
          %v1851 = vmin.f32 %v1837, %v1754
          %v1852 = vmin.f32 %v1840, %v1755
          %v1853 = vmin.f32 %v1845, %v1756
          %v1854 = vmin.f32 %v1848, %v1757
          %v1855 = vsel %vm1778, 1, 0
          %v1856 = vsel %vm1779, 1, 0
          %v1857 = vsel %vm1780, 1, 0
          %v1858 = vsel %vm1781, 1, 0
          %vm1859 = vcmp.eq.s32.totalorder %v1855, 1
          %vm1860 = vcmp.eq.s32.totalorder %v1856, 1
          %vm1861 = vcmp.eq.s32.totalorder %v1857, 1
          %vm1862 = vcmp.eq.s32.totalorder %v1858, 1
          %v1863 = vsel %vm1859, %v1851, 0.0
          %v1864 = vsel %vm1860, %v1852, 0.0
          %v1865 = vsel %vm1861, %v1853, 0.0
          %v1866 = vsel %vm1862, %v1854, 0.0
          %v1867 = vsel %vm1778, %v1768, 0.0
          %v1868 = vsel %vm1779, %v1771, 0.0
          %v1869 = vsel %vm1780, %v1774, 0.0
          %v1870 = vsel %vm1781, %v1777, 0.0
          %v1871 = vmul.f32 %v1863, %v1867
          %v1872 = vmul.f32 %v1864, %v1868
          %v1873 = vmul.f32 %v1865, %v1869
          %v1874 = vmul.f32 %v1866, %v1870
          %v1875 = vadd.f32 %v1746, %v1871
          %v1876 = vadd.f32 %v1747, %v1872
          %v1877 = vadd.f32 %v1748, %v1873
          %v1878 = vadd.f32 %v1749, %v1874
          %v1879 = vadd.f32 %v1750, %v1863
          %v1880 = vadd.f32 %v1751, %v1864
          %v1881 = vadd.f32 %v1752, %v1865
          %v1882 = vadd.f32 %v1753, %v1866
          %v1883 = vsub.f32 %v1754, %v1863
          %v1884 = vsub.f32 %v1755, %v1864
          %v1885 = vsub.f32 %v1756, %v1865
          %v1886 = vsub.f32 %v1757, %v1866
          %v1887 = vsel %vm1782, -1e+30, %v1758
          %v1888 = vsel %vm1783, -1e+30, %v1759
          %v1889 = vsel %vm1784, -1e+30, %v1760
          %v1890 = vsel %vm1785, -1e+30, %v1761
          %v1891 = vsel %vm1786, -1e+30, %v1762
          %v1892 = vsel %vm1787, -1e+30, %v1763
          %v1893 = vsel %vm1788, -1e+30, %v1764
          %v1894 = vsel %vm1789, -1e+30, %v1765
          %v1895 = vmax.f32 %v1887, %v1888
          %1896 = vmax.xlane.f32.xlu0 %v1895
          %v1897 = vpop.xlane.xlu0 %1896
          %v1898 = vmax.f32 %v1889, %v1890
          %1899 = vmax.xlane.f32.xlu0 %v1898
          %v1900 = vpop.xlane.xlu0 %1899
          %v1901 = vmax.f32 %v1891, %v1892
          %1902 = vmax.xlane.f32.xlu0 %v1901
          %v1903 = vpop.xlane.xlu0 %1902
          %v1904 = vmax.f32 %v1893, %v1894
          %1905 = vmax.xlane.f32.xlu0 %v1904
          %v1906 = vpop.xlane.xlu0 %1905
          %vm1907 = vcmp.gt.f32.partialorder %v1897, -1e+29
          %vm1908 = vcmp.gt.f32.partialorder %v1900, -1e+29
          %vm1909 = vcmp.gt.f32.partialorder %v1903, -1e+29
          %vm1910 = vcmp.gt.f32.partialorder %v1906, -1e+29
          %vm1911 = vcmp.eq.f32.partialorder %v1887, %v1897
          %vm1912 = vcmp.eq.f32.partialorder %v1888, %v1897
          %vm1913 = vcmp.eq.f32.partialorder %v1889, %v1900
          %vm1914 = vcmp.eq.f32.partialorder %v1890, %v1900
          %vm1915 = vcmp.eq.f32.partialorder %v1891, %v1903
          %vm1916 = vcmp.eq.f32.partialorder %v1892, %v1903
          %vm1917 = vcmp.eq.f32.partialorder %v1893, %v1906
          %vm1918 = vcmp.eq.f32.partialorder %v1894, %v1906
          %v1919 = vsel %vm1911, 1.0, 0.0
          %v1920 = vsel %vm1912, 1.0, 0.0
          %v1921 = vsel %vm1913, 1.0, 0.0
          %v1922 = vsel %vm1914, 1.0, 0.0
          %v1923 = vsel %vm1915, 1.0, 0.0
          %v1924 = vsel %vm1916, 1.0, 0.0
          %v1925 = vsel %vm1917, 1.0, 0.0
          %v1926 = vsel %vm1918, 1.0, 0.0
          %v1927 = vpack.c.bf16 %v1921, %v1919
          %v1928 = vpack.c.bf16 %v1922, %v1920
          %v1929 = vpack.c.bf16 %v1925, %v1923
          %v1930 = vpack.c.bf16 %v1926, %v1924
          %1931 = vmatprep.subr.bf16.mxu0 0
          %1932 = vmatpush1.bf16.msra.mxu0 1065369472
          %1933 = vmatprep.subr.bf16.mxu0 0
          %1934 = vmatpush1.bf16.msra.mxu0 1065369472
          %1935 = vmatprep.subr.bf16.mxu0 0
          %1936 = vmatpush1.bf16.msra.mxu0 1065369472
          %1937 = vmatprep.subr.bf16.mxu0 0
          %1938 = vmatpush1.bf16.msra.mxu0 1065369472
          %1939 = vmatprep.subr.bf16.mxu0 0
          %1940 = vmatpush1.bf16.msra.mxu0 1065369472
          %1941 = vmatprep.subr.bf16.mxu0 0
          %1942 = vmatpush1.bf16.msra.mxu0 1065369472
          %1943 = vmatprep.subr.bf16.mxu0 0
          %1944 = vmatpush1.bf16.msra.mxu0 1065369472
          %1945 = vmatprep.subr.bf16.mxu0 0
          %1946 = vmatpush1.bf16.msra.mxu0 1065369472
          %1947 = vmatprep.subr.bf16.mxu0 0
          %1948 = vmatpush1.bf16.msra.mxu0 1065369472
          %1949 = vmatprep.subr.bf16.mxu0 0
          %1950 = vmatpush1.bf16.msra.mxu0 1065369472
          %1951 = vmatprep.subr.bf16.mxu0 0
          %1952 = vmatpush1.bf16.msra.mxu0 1065369472
          %1953 = vmatprep.subr.bf16.mxu0 0
          %1954 = vmatpush1.bf16.msra.mxu0 1065369472
          %1955 = vmatprep.subr.bf16.mxu0 0
          %1956 = vmatpush1.bf16.msra.mxu0 1065369472
          %1957 = vmatprep.subr.bf16.mxu0 0
          %1958 = vmatpush1.bf16.msra.mxu0 1065369472
          %1959 = vmatprep.subr.bf16.mxu0 0
          %1960 = vmatpush1.bf16.msra.mxu0 1065369472
          %1961 = vmatprep.subr.bf16.mxu0 0
          %1962 = vmatpush1.bf16.msra.mxu0 1065369472
          %1963 = vmatprep.mubr.bf16.mxu0 %v1928
          %1964 = vmatmul.mubr.bf16.gmra.mrb[0].mxu0 %v1927
          %v1965 = vpop.f32.mrb[0].mxu0
          %v1966 = vadd.f32 0.0, %v1965
          %v1967 = vpop.f32.mrb[0].mxu0
          %v1968 = vpop.f32.mrb[0].mxu0
          %v1969 = vadd.f32 0.0, %v1968
          %v1970 = vpop.f32.mrb[0].mxu0
          %1971 = vmatprep.mubr.bf16.mxu0 %v1930
          %1972 = vmatmul.mubr.bf16.gmra.mrb[0].mxu0 %v1929
          %v1973 = vpop.f32.mrb[0].mxu0
          %v1974 = vadd.f32 0.0, %v1973
          %v1975 = vpop.f32.mrb[0].mxu0
          %v1976 = vpop.f32.mrb[0].mxu0
          %v1977 = vadd.f32 0.0, %v1976
          %v1978 = vpop.f32.mrb[0].mxu0
          %1979 = vdwg.mxu0
          %v1980 = vmin.f32 %v1966, %v1883
          %v1981 = vmin.f32 %v1969, %v1884
          %v1982 = vmin.f32 %v1974, %v1885
          %v1983 = vmin.f32 %v1977, %v1886
          %v1984 = vsel %vm1907, 1, 0
          %v1985 = vsel %vm1908, 1, 0
          %v1986 = vsel %vm1909, 1, 0
          %v1987 = vsel %vm1910, 1, 0
          %vm1988 = vcmp.eq.s32.totalorder %v1984, 1
          %vm1989 = vcmp.eq.s32.totalorder %v1985, 1
          %vm1990 = vcmp.eq.s32.totalorder %v1986, 1
          %vm1991 = vcmp.eq.s32.totalorder %v1987, 1
          %v1992 = vsel %vm1988, %v1980, 0.0
          %v1993 = vsel %vm1989, %v1981, 0.0
          %v1994 = vsel %vm1990, %v1982, 0.0
          %v1995 = vsel %vm1991, %v1983, 0.0
          %v1996 = vsel %vm1907, %v1897, 0.0
          %v1997 = vsel %vm1908, %v1900, 0.0
          %v1998 = vsel %vm1909, %v1903, 0.0
          %v1999 = vsel %vm1910, %v1906, 0.0
          %v2000 = vmul.f32 %v1992, %v1996
          %v2001 = vmul.f32 %v1993, %v1997
          %v2002 = vmul.f32 %v1994, %v1998
          %v2003 = vmul.f32 %v1995, %v1999
          %v2004 = vadd.f32 %v1875, %v2000
          %v2005 = vadd.f32 %v1876, %v2001
          %v2006 = vadd.f32 %v1877, %v2002
          %v2007 = vadd.f32 %v1878, %v2003
          %v2008 = vadd.f32 %v1879, %v1992
          %v2009 = vadd.f32 %v1880, %v1993
          %v2010 = vadd.f32 %v1881, %v1994
          %v2011 = vadd.f32 %v1882, %v1995
          %v2012 = vsub.f32 %v1883, %v1992
          %v2013 = vsub.f32 %v1884, %v1993
          %v2014 = vsub.f32 %v1885, %v1994
          %v2015 = vsub.f32 %v1886, %v1995
          %v2016 = vsel %vm1911, -1e+30, %v1887
          %v2017 = vsel %vm1912, -1e+30, %v1888
          %v2018 = vsel %vm1913, -1e+30, %v1889
          %v2019 = vsel %vm1914, -1e+30, %v1890
          %v2020 = vsel %vm1915, -1e+30, %v1891
          %v2021 = vsel %vm1916, -1e+30, %v1892
          %v2022 = vsel %vm1917, -1e+30, %v1893
          %v2023 = vsel %vm1918, -1e+30, %v1894
          %v2024 = vmax.f32 %v2016, %v2017
          %2025 = vmax.xlane.f32.xlu0 %v2024
          %v2026 = vpop.xlane.xlu0 %2025
          %v2027 = vmax.f32 %v2018, %v2019
          %2028 = vmax.xlane.f32.xlu0 %v2027
          %v2029 = vpop.xlane.xlu0 %2028
          %v2030 = vmax.f32 %v2020, %v2021
          %2031 = vmax.xlane.f32.xlu0 %v2030
          %v2032 = vpop.xlane.xlu0 %2031
          %v2033 = vmax.f32 %v2022, %v2023
          %2034 = vmax.xlane.f32.xlu0 %v2033
          %v2035 = vpop.xlane.xlu0 %2034
          %vm2036 = vcmp.gt.f32.partialorder %v2026, -1e+29
          %vm2037 = vcmp.gt.f32.partialorder %v2029, -1e+29
          %vm2038 = vcmp.gt.f32.partialorder %v2032, -1e+29
          %vm2039 = vcmp.gt.f32.partialorder %v2035, -1e+29
          %vm2040 = vcmp.eq.f32.partialorder %v2016, %v2026
          %vm2041 = vcmp.eq.f32.partialorder %v2017, %v2026
          %vm2042 = vcmp.eq.f32.partialorder %v2018, %v2029
          %vm2043 = vcmp.eq.f32.partialorder %v2019, %v2029
          %vm2044 = vcmp.eq.f32.partialorder %v2020, %v2032
          %vm2045 = vcmp.eq.f32.partialorder %v2021, %v2032
          %vm2046 = vcmp.eq.f32.partialorder %v2022, %v2035
          %vm2047 = vcmp.eq.f32.partialorder %v2023, %v2035
          %v2048 = vsel %vm2040, 1.0, 0.0
          %v2049 = vsel %vm2041, 1.0, 0.0
          %v2050 = vsel %vm2042, 1.0, 0.0
          %v2051 = vsel %vm2043, 1.0, 0.0
          %v2052 = vsel %vm2044, 1.0, 0.0
          %v2053 = vsel %vm2045, 1.0, 0.0
          %v2054 = vsel %vm2046, 1.0, 0.0
          %v2055 = vsel %vm2047, 1.0, 0.0
          %v2056 = vpack.c.bf16 %v2050, %v2048
          %v2057 = vpack.c.bf16 %v2051, %v2049
          %v2058 = vpack.c.bf16 %v2054, %v2052
          %v2059 = vpack.c.bf16 %v2055, %v2053
          %2060 = vmatprep.subr.bf16.mxu0 0
          %2061 = vmatpush1.bf16.msra.mxu0 1065369472
          %2062 = vmatprep.subr.bf16.mxu0 0
          %2063 = vmatpush1.bf16.msra.mxu0 1065369472
          %2064 = vmatprep.subr.bf16.mxu0 0
          %2065 = vmatpush1.bf16.msra.mxu0 1065369472
          %2066 = vmatprep.subr.bf16.mxu0 0
          %2067 = vmatpush1.bf16.msra.mxu0 1065369472
          %2068 = vmatprep.subr.bf16.mxu0 0
          %2069 = vmatpush1.bf16.msra.mxu0 1065369472
          %2070 = vmatprep.subr.bf16.mxu0 0
          %2071 = vmatpush1.bf16.msra.mxu0 1065369472
          %2072 = vmatprep.subr.bf16.mxu0 0
          %2073 = vmatpush1.bf16.msra.mxu0 1065369472
          %2074 = vmatprep.subr.bf16.mxu0 0
          %2075 = vmatpush1.bf16.msra.mxu0 1065369472
          %2076 = vmatprep.subr.bf16.mxu0 0
          %2077 = vmatpush1.bf16.msra.mxu0 1065369472
          %2078 = vmatprep.subr.bf16.mxu0 0
          %2079 = vmatpush1.bf16.msra.mxu0 1065369472
          %2080 = vmatprep.subr.bf16.mxu0 0
          %2081 = vmatpush1.bf16.msra.mxu0 1065369472
          %2082 = vmatprep.subr.bf16.mxu0 0
          %2083 = vmatpush1.bf16.msra.mxu0 1065369472
          %2084 = vmatprep.subr.bf16.mxu0 0
          %2085 = vmatpush1.bf16.msra.mxu0 1065369472
          %2086 = vmatprep.subr.bf16.mxu0 0
          %2087 = vmatpush1.bf16.msra.mxu0 1065369472
          %2088 = vmatprep.subr.bf16.mxu0 0
          %2089 = vmatpush1.bf16.msra.mxu0 1065369472
          %2090 = vmatprep.subr.bf16.mxu0 0
          %2091 = vmatpush1.bf16.msra.mxu0 1065369472
          %2092 = vmatprep.mubr.bf16.mxu0 %v2057
          %2093 = vmatmul.mubr.bf16.gmra.mrb[0].mxu0 %v2056
          %v2094 = vpop.f32.mrb[0].mxu0
          %v2095 = vadd.f32 0.0, %v2094
          %v2096 = vpop.f32.mrb[0].mxu0
          %v2097 = vpop.f32.mrb[0].mxu0
          %v2098 = vadd.f32 0.0, %v2097
          %v2099 = vpop.f32.mrb[0].mxu0
          %2100 = vmatprep.mubr.bf16.mxu0 %v2059
          %2101 = vmatmul.mubr.bf16.gmra.mrb[0].mxu0 %v2058
          %v2102 = vpop.f32.mrb[0].mxu0
          %v2103 = vadd.f32 0.0, %v2102
          %v2104 = vpop.f32.mrb[0].mxu0
          %v2105 = vpop.f32.mrb[0].mxu0
          %v2106 = vadd.f32 0.0, %v2105
          %v2107 = vpop.f32.mrb[0].mxu0
          %2108 = vdwg.mxu0
          %v2109 = vmin.f32 %v2095, %v2012
          %v2110 = vmin.f32 %v2098, %v2013
          %v2111 = vmin.f32 %v2103, %v2014
          %v2112 = vmin.f32 %v2106, %v2015
          %v2113 = vsel %vm2036, 1, 0
          %v2114 = vsel %vm2037, 1, 0
          %v2115 = vsel %vm2038, 1, 0
          %v2116 = vsel %vm2039, 1, 0
          %vm2117 = vcmp.eq.s32.totalorder %v2113, 1
          %vm2118 = vcmp.eq.s32.totalorder %v2114, 1
          %vm2119 = vcmp.eq.s32.totalorder %v2115, 1
          %vm2120 = vcmp.eq.s32.totalorder %v2116, 1
          %v2121 = vsel %vm2117, %v2109, 0.0
          %v2122 = vsel %vm2118, %v2110, 0.0
          %v2123 = vsel %vm2119, %v2111, 0.0
          %v2124 = vsel %vm2120, %v2112, 0.0
          %v2125 = vsel %vm2036, %v2026, 0.0
          %v2126 = vsel %vm2037, %v2029, 0.0
          %v2127 = vsel %vm2038, %v2032, 0.0
          %v2128 = vsel %vm2039, %v2035, 0.0
          %v2129 = vmul.f32 %v2121, %v2125
          %v2130 = vmul.f32 %v2122, %v2126
          %v2131 = vmul.f32 %v2123, %v2127
          %v2132 = vmul.f32 %v2124, %v2128
          %v2133 = vadd.f32 %v2004, %v2129
          %v2134 = vadd.f32 %v2005, %v2130
          %v2135 = vadd.f32 %v2006, %v2131
          %v2136 = vadd.f32 %v2007, %v2132
          %v2137 = vadd.f32 %v2008, %v2121
          %v2138 = vadd.f32 %v2009, %v2122
          %v2139 = vadd.f32 %v2010, %v2123
          %v2140 = vadd.f32 %v2011, %v2124
          %v2141 = vsub.f32 %v2012, %v2121
          %v2142 = vsub.f32 %v2013, %v2122
          %v2143 = vsub.f32 %v2014, %v2123
          %v2144 = vsub.f32 %v2015, %v2124
          %v2145 = vsel %vm2040, -1e+30, %v2016
          %v2146 = vsel %vm2041, -1e+30, %v2017
          %v2147 = vsel %vm2042, -1e+30, %v2018
          %v2148 = vsel %vm2043, -1e+30, %v2019
          %v2149 = vsel %vm2044, -1e+30, %v2020
          %v2150 = vsel %vm2045, -1e+30, %v2021
          %v2151 = vsel %vm2046, -1e+30, %v2022
          %v2152 = vsel %vm2047, -1e+30, %v2023
          %v2153 = vmax.f32 %v2145, %v2146
          %2154 = vmax.xlane.f32.xlu0 %v2153
          %v2155 = vpop.xlane.xlu0 %2154
          %v2156 = vmax.f32 %v2147, %v2148
          %2157 = vmax.xlane.f32.xlu0 %v2156
          %v2158 = vpop.xlane.xlu0 %2157
          %v2159 = vmax.f32 %v2149, %v2150
          %2160 = vmax.xlane.f32.xlu0 %v2159
          %v2161 = vpop.xlane.xlu0 %2160
          %v2162 = vmax.f32 %v2151, %v2152
          %2163 = vmax.xlane.f32.xlu0 %v2162
          %v2164 = vpop.xlane.xlu0 %2163
          %vm2165 = vcmp.gt.f32.partialorder %v2155, -1e+29
          %vm2166 = vcmp.gt.f32.partialorder %v2158, -1e+29
          %vm2167 = vcmp.gt.f32.partialorder %v2161, -1e+29
          %vm2168 = vcmp.gt.f32.partialorder %v2164, -1e+29
          %vm2169 = vcmp.eq.f32.partialorder %v2145, %v2155
          %vm2170 = vcmp.eq.f32.partialorder %v2146, %v2155
          %vm2171 = vcmp.eq.f32.partialorder %v2147, %v2158
          %vm2172 = vcmp.eq.f32.partialorder %v2148, %v2158
          %vm2173 = vcmp.eq.f32.partialorder %v2149, %v2161
          %vm2174 = vcmp.eq.f32.partialorder %v2150, %v2161
          %vm2175 = vcmp.eq.f32.partialorder %v2151, %v2164
          %vm2176 = vcmp.eq.f32.partialorder %v2152, %v2164
          %v2177 = vsel %vm2169, 1.0, 0.0
          %v2178 = vsel %vm2170, 1.0, 0.0
          %v2179 = vsel %vm2171, 1.0, 0.0
          %v2180 = vsel %vm2172, 1.0, 0.0
          %v2181 = vsel %vm2173, 1.0, 0.0
          %v2182 = vsel %vm2174, 1.0, 0.0
          %v2183 = vsel %vm2175, 1.0, 0.0
          %v2184 = vsel %vm2176, 1.0, 0.0
          %v2185 = vpack.c.bf16 %v2179, %v2177
          %v2186 = vpack.c.bf16 %v2180, %v2178
          %v2187 = vpack.c.bf16 %v2183, %v2181
          %v2188 = vpack.c.bf16 %v2184, %v2182
          %2189 = vmatprep.subr.bf16.mxu0 0
          %2190 = vmatpush1.bf16.msra.mxu0 1065369472
          %2191 = vmatprep.subr.bf16.mxu0 0
          %2192 = vmatpush1.bf16.msra.mxu0 1065369472
          %2193 = vmatprep.subr.bf16.mxu0 0
          %2194 = vmatpush1.bf16.msra.mxu0 1065369472
          %2195 = vmatprep.subr.bf16.mxu0 0
          %2196 = vmatpush1.bf16.msra.mxu0 1065369472
          %2197 = vmatprep.subr.bf16.mxu0 0
          %2198 = vmatpush1.bf16.msra.mxu0 1065369472
          %2199 = vmatprep.subr.bf16.mxu0 0
          %2200 = vmatpush1.bf16.msra.mxu0 1065369472
          %2201 = vmatprep.subr.bf16.mxu0 0
          %2202 = vmatpush1.bf16.msra.mxu0 1065369472
          %2203 = vmatprep.subr.bf16.mxu0 0
          %2204 = vmatpush1.bf16.msra.mxu0 1065369472
          %2205 = vmatprep.subr.bf16.mxu0 0
          %2206 = vmatpush1.bf16.msra.mxu0 1065369472
          %2207 = vmatprep.subr.bf16.mxu0 0
          %2208 = vmatpush1.bf16.msra.mxu0 1065369472
          %2209 = vmatprep.subr.bf16.mxu0 0
          %2210 = vmatpush1.bf16.msra.mxu0 1065369472
          %2211 = vmatprep.subr.bf16.mxu0 0
          %2212 = vmatpush1.bf16.msra.mxu0 1065369472
          %2213 = vmatprep.subr.bf16.mxu0 0
          %2214 = vmatpush1.bf16.msra.mxu0 1065369472
          %2215 = vmatprep.subr.bf16.mxu0 0
          %2216 = vmatpush1.bf16.msra.mxu0 1065369472
          %2217 = vmatprep.subr.bf16.mxu0 0
          %2218 = vmatpush1.bf16.msra.mxu0 1065369472
          %2219 = vmatprep.subr.bf16.mxu0 0
          %2220 = vmatpush1.bf16.msra.mxu0 1065369472
          %2221 = vmatprep.mubr.bf16.mxu0 %v2186
          %2222 = vmatmul.mubr.bf16.gmra.mrb[0].mxu0 %v2185
          %v2223 = vpop.f32.mrb[0].mxu0
          %v2224 = vadd.f32 0.0, %v2223
          %v2225 = vpop.f32.mrb[0].mxu0
          %v2226 = vpop.f32.mrb[0].mxu0
          %v2227 = vadd.f32 0.0, %v2226
          %v2228 = vpop.f32.mrb[0].mxu0
          %2229 = vmatprep.mubr.bf16.mxu0 %v2188
          %2230 = vmatmul.mubr.bf16.gmra.mrb[0].mxu0 %v2187
          %v2231 = vpop.f32.mrb[0].mxu0
          %v2232 = vadd.f32 0.0, %v2231
          %v2233 = vpop.f32.mrb[0].mxu0
          %v2234 = vpop.f32.mrb[0].mxu0
          %v2235 = vadd.f32 0.0, %v2234
          %v2236 = vpop.f32.mrb[0].mxu0
          %2237 = vdwg.mxu0
          %v2238 = vmin.f32 %v2224, %v2141
          %v2239 = vmin.f32 %v2227, %v2142
          %v2240 = vmin.f32 %v2232, %v2143
          %v2241 = vmin.f32 %v2235, %v2144
          %v2242 = vsel %vm2165, 1, 0
          %v2243 = vsel %vm2166, 1, 0
          %v2244 = vsel %vm2167, 1, 0
          %v2245 = vsel %vm2168, 1, 0
          %vm2246 = vcmp.eq.s32.totalorder %v2242, 1
          %vm2247 = vcmp.eq.s32.totalorder %v2243, 1
          %vm2248 = vcmp.eq.s32.totalorder %v2244, 1
          %vm2249 = vcmp.eq.s32.totalorder %v2245, 1
          %v2250 = vsel %vm2246, %v2238, 0.0
          %v2251 = vsel %vm2247, %v2239, 0.0
          %v2252 = vsel %vm2248, %v2240, 0.0
          %v2253 = vsel %vm2249, %v2241, 0.0
          %v2254 = vsel %vm2165, %v2155, 0.0
          %v2255 = vsel %vm2166, %v2158, 0.0
          %v2256 = vsel %vm2167, %v2161, 0.0
          %v2257 = vsel %vm2168, %v2164, 0.0
          %v2258 = vmul.f32 %v2250, %v2254
          %v2259 = vmul.f32 %v2251, %v2255
          %v2260 = vmul.f32 %v2252, %v2256
          %v2261 = vmul.f32 %v2253, %v2257
          %v2262 = vadd.f32 %v2133, %v2258
          %v2263 = vadd.f32 %v2134, %v2259
          %v2264 = vadd.f32 %v2135, %v2260
          %v2265 = vadd.f32 %v2136, %v2261
          %v2266 = vadd.f32 %v2137, %v2250
          %v2267 = vadd.f32 %v2138, %v2251
          %v2268 = vadd.f32 %v2139, %v2252
          %v2269 = vadd.f32 %v2140, %v2253
          %v2270 = vsub.f32 %v2141, %v2250
          %v2271 = vsub.f32 %v2142, %v2251
          %v2272 = vsub.f32 %v2143, %v2252
          %v2273 = vsub.f32 %v2144, %v2253
          %v2274 = vsel %vm2169, -1e+30, %v2145
          %v2275 = vsel %vm2170, -1e+30, %v2146
          %v2276 = vsel %vm2171, -1e+30, %v2147
          %v2277 = vsel %vm2172, -1e+30, %v2148
          %v2278 = vsel %vm2173, -1e+30, %v2149
          %v2279 = vsel %vm2174, -1e+30, %v2150
          %v2280 = vsel %vm2175, -1e+30, %v2151
          %v2281 = vsel %vm2176, -1e+30, %v2152
          %v2282 = vmax.f32 %v2274, %v2275
          %2283 = vmax.xlane.f32.xlu0 %v2282
          %v2284 = vpop.xlane.xlu0 %2283
          %v2285 = vmax.f32 %v2276, %v2277
          %2286 = vmax.xlane.f32.xlu0 %v2285
          %v2287 = vpop.xlane.xlu0 %2286
          %v2288 = vmax.f32 %v2278, %v2279
          %2289 = vmax.xlane.f32.xlu0 %v2288
          %v2290 = vpop.xlane.xlu0 %2289
          %v2291 = vmax.f32 %v2280, %v2281
          %2292 = vmax.xlane.f32.xlu0 %v2291
          %v2293 = vpop.xlane.xlu0 %2292
          %vm2294 = vcmp.gt.f32.partialorder %v2284, -1e+29
          %vm2295 = vcmp.gt.f32.partialorder %v2287, -1e+29
          %vm2296 = vcmp.gt.f32.partialorder %v2290, -1e+29
          %vm2297 = vcmp.gt.f32.partialorder %v2293, -1e+29
          %vm2298 = vcmp.eq.f32.partialorder %v2274, %v2284
          %vm2299 = vcmp.eq.f32.partialorder %v2275, %v2284
          %vm2300 = vcmp.eq.f32.partialorder %v2276, %v2287
          %vm2301 = vcmp.eq.f32.partialorder %v2277, %v2287
          %vm2302 = vcmp.eq.f32.partialorder %v2278, %v2290
          %vm2303 = vcmp.eq.f32.partialorder %v2279, %v2290
          %vm2304 = vcmp.eq.f32.partialorder %v2280, %v2293
          %vm2305 = vcmp.eq.f32.partialorder %v2281, %v2293
          %v2306 = vsel %vm2298, 1.0, 0.0
          %v2307 = vsel %vm2299, 1.0, 0.0
          %v2308 = vsel %vm2300, 1.0, 0.0
          %v2309 = vsel %vm2301, 1.0, 0.0
          %v2310 = vsel %vm2302, 1.0, 0.0
          %v2311 = vsel %vm2303, 1.0, 0.0
          %v2312 = vsel %vm2304, 1.0, 0.0
          %v2313 = vsel %vm2305, 1.0, 0.0
          %v2314 = vpack.c.bf16 %v2308, %v2306
          %v2315 = vpack.c.bf16 %v2309, %v2307
          %v2316 = vpack.c.bf16 %v2312, %v2310
          %v2317 = vpack.c.bf16 %v2313, %v2311
          %2318 = vmatprep.subr.bf16.mxu0 0
          %2319 = vmatpush1.bf16.msra.mxu0 1065369472
          %2320 = vmatprep.subr.bf16.mxu0 0
          %2321 = vmatpush1.bf16.msra.mxu0 1065369472
          %2322 = vmatprep.subr.bf16.mxu0 0
          %2323 = vmatpush1.bf16.msra.mxu0 1065369472
          %2324 = vmatprep.subr.bf16.mxu0 0
          %2325 = vmatpush1.bf16.msra.mxu0 1065369472
          %2326 = vmatprep.subr.bf16.mxu0 0
          %2327 = vmatpush1.bf16.msra.mxu0 1065369472
          %2328 = vmatprep.subr.bf16.mxu0 0
          %2329 = vmatpush1.bf16.msra.mxu0 1065369472
          %2330 = vmatprep.subr.bf16.mxu0 0
          %2331 = vmatpush1.bf16.msra.mxu0 1065369472
          %2332 = vmatprep.subr.bf16.mxu0 0
          %2333 = vmatpush1.bf16.msra.mxu0 1065369472
          %2334 = vmatprep.subr.bf16.mxu0 0
          %2335 = vmatpush1.bf16.msra.mxu0 1065369472
          %2336 = vmatprep.subr.bf16.mxu0 0
          %2337 = vmatpush1.bf16.msra.mxu0 1065369472
          %2338 = vmatprep.subr.bf16.mxu0 0
          %2339 = vmatpush1.bf16.msra.mxu0 1065369472
          %2340 = vmatprep.subr.bf16.mxu0 0
          %2341 = vmatpush1.bf16.msra.mxu0 1065369472
          %2342 = vmatprep.subr.bf16.mxu0 0
          %2343 = vmatpush1.bf16.msra.mxu0 1065369472
          %2344 = vmatprep.subr.bf16.mxu0 0
          %2345 = vmatpush1.bf16.msra.mxu0 1065369472
          %2346 = vmatprep.subr.bf16.mxu0 0
          %2347 = vmatpush1.bf16.msra.mxu0 1065369472
          %2348 = vmatprep.subr.bf16.mxu0 0
          %2349 = vmatpush1.bf16.msra.mxu0 1065369472
          %2350 = vmatprep.mubr.bf16.mxu0 %v2315
          %2351 = vmatmul.mubr.bf16.gmra.mrb[0].mxu0 %v2314
          %v2352 = vpop.f32.mrb[0].mxu0
          %v2353 = vadd.f32 0.0, %v2352
          %v2354 = vpop.f32.mrb[0].mxu0
          %v2355 = vpop.f32.mrb[0].mxu0
          %v2356 = vadd.f32 0.0, %v2355
          %v2357 = vpop.f32.mrb[0].mxu0
          %2358 = vmatprep.mubr.bf16.mxu0 %v2317
          %2359 = vmatmul.mubr.bf16.gmra.mrb[0].mxu0 %v2316
          %v2360 = vpop.f32.mrb[0].mxu0
          %v2361 = vadd.f32 0.0, %v2360
          %v2362 = vpop.f32.mrb[0].mxu0
          %v2363 = vpop.f32.mrb[0].mxu0
          %v2364 = vadd.f32 0.0, %v2363
          %v2365 = vpop.f32.mrb[0].mxu0
          %2366 = vdwg.mxu0
          %v2367 = vmin.f32 %v2353, %v2270
          %v2368 = vmin.f32 %v2356, %v2271
          %v2369 = vmin.f32 %v2361, %v2272
          %v2370 = vmin.f32 %v2364, %v2273
          %v2371 = vsel %vm2294, 1, 0
          %v2372 = vsel %vm2295, 1, 0
          %v2373 = vsel %vm2296, 1, 0
          %v2374 = vsel %vm2297, 1, 0
          %vm2375 = vcmp.eq.s32.totalorder %v2371, 1
          %vm2376 = vcmp.eq.s32.totalorder %v2372, 1
          %vm2377 = vcmp.eq.s32.totalorder %v2373, 1
          %vm2378 = vcmp.eq.s32.totalorder %v2374, 1
          %v2379 = vsel %vm2375, %v2367, 0.0
          %v2380 = vsel %vm2376, %v2368, 0.0
          %v2381 = vsel %vm2377, %v2369, 0.0
          %v2382 = vsel %vm2378, %v2370, 0.0
          %v2383 = vsel %vm2294, %v2284, 0.0
          %v2384 = vsel %vm2295, %v2287, 0.0
          %v2385 = vsel %vm2296, %v2290, 0.0
          %v2386 = vsel %vm2297, %v2293, 0.0
          %v2387 = vmul.f32 %v2379, %v2383
          %v2388 = vmul.f32 %v2380, %v2384
          %v2389 = vmul.f32 %v2381, %v2385
          %v2390 = vmul.f32 %v2382, %v2386
          %v2391 = vadd.f32 %v2262, %v2387
          %v2392 = vadd.f32 %v2263, %v2388
          %v2393 = vadd.f32 %v2264, %v2389
          %v2394 = vadd.f32 %v2265, %v2390
          %v2395 = vadd.f32 %v2266, %v2379
          %v2396 = vadd.f32 %v2267, %v2380
          %v2397 = vadd.f32 %v2268, %v2381
          %v2398 = vadd.f32 %v2269, %v2382
          %v2399 = vsub.f32 %v2270, %v2379
          %v2400 = vsub.f32 %v2271, %v2380
          %v2401 = vsub.f32 %v2272, %v2381
          %v2402 = vsub.f32 %v2273, %v2382
          %v2403 = vsel %vm2298, -1e+30, %v2274
          %v2404 = vsel %vm2299, -1e+30, %v2275
          %v2405 = vsel %vm2300, -1e+30, %v2276
          %v2406 = vsel %vm2301, -1e+30, %v2277
          %v2407 = vsel %vm2302, -1e+30, %v2278
          %v2408 = vsel %vm2303, -1e+30, %v2279
          %v2409 = vsel %vm2304, -1e+30, %v2280
          %v2410 = vsel %vm2305, -1e+30, %v2281
          %v2411 = vmax.f32 %v2403, %v2404
          %2412 = vmax.xlane.f32.xlu0 %v2411
          %v2413 = vpop.xlane.xlu0 %2412
          %v2414 = vmax.f32 %v2405, %v2406
          %2415 = vmax.xlane.f32.xlu0 %v2414
          %v2416 = vpop.xlane.xlu0 %2415
          %v2417 = vmax.f32 %v2407, %v2408
          %2418 = vmax.xlane.f32.xlu0 %v2417
          %v2419 = vpop.xlane.xlu0 %2418
          %v2420 = vmax.f32 %v2409, %v2410
          %2421 = vmax.xlane.f32.xlu0 %v2420
          %v2422 = vpop.xlane.xlu0 %2421
          %vm2423 = vcmp.gt.f32.partialorder %v2413, -1e+29
          %vm2424 = vcmp.gt.f32.partialorder %v2416, -1e+29
          %vm2425 = vcmp.gt.f32.partialorder %v2419, -1e+29
          %vm2426 = vcmp.gt.f32.partialorder %v2422, -1e+29
          %vm2427 = vcmp.eq.f32.partialorder %v2403, %v2413
          %vm2428 = vcmp.eq.f32.partialorder %v2404, %v2413
          %vm2429 = vcmp.eq.f32.partialorder %v2405, %v2416
          %vm2430 = vcmp.eq.f32.partialorder %v2406, %v2416
          %vm2431 = vcmp.eq.f32.partialorder %v2407, %v2419
          %vm2432 = vcmp.eq.f32.partialorder %v2408, %v2419
          %vm2433 = vcmp.eq.f32.partialorder %v2409, %v2422
          %vm2434 = vcmp.eq.f32.partialorder %v2410, %v2422
          %v2435 = vsel %vm2427, 1.0, 0.0
          %v2436 = vsel %vm2428, 1.0, 0.0
          %v2437 = vsel %vm2429, 1.0, 0.0
          %v2438 = vsel %vm2430, 1.0, 0.0
          %v2439 = vsel %vm2431, 1.0, 0.0
          %v2440 = vsel %vm2432, 1.0, 0.0
          %v2441 = vsel %vm2433, 1.0, 0.0
          %v2442 = vsel %vm2434, 1.0, 0.0
          %v2443 = vpack.c.bf16 %v2437, %v2435
          %v2444 = vpack.c.bf16 %v2438, %v2436
          %v2445 = vpack.c.bf16 %v2441, %v2439
          %v2446 = vpack.c.bf16 %v2442, %v2440
          %2447 = vmatprep.subr.bf16.mxu0 0
          %2448 = vmatpush1.bf16.msra.mxu0 1065369472
          %2449 = vmatprep.subr.bf16.mxu0 0
          %2450 = vmatpush1.bf16.msra.mxu0 1065369472
          %2451 = vmatprep.subr.bf16.mxu0 0
          %2452 = vmatpush1.bf16.msra.mxu0 1065369472
          %2453 = vmatprep.subr.bf16.mxu0 0
          %2454 = vmatpush1.bf16.msra.mxu0 1065369472
          %2455 = vmatprep.subr.bf16.mxu0 0
          %2456 = vmatpush1.bf16.msra.mxu0 1065369472
          %2457 = vmatprep.subr.bf16.mxu0 0
          %2458 = vmatpush1.bf16.msra.mxu0 1065369472
          %2459 = vmatprep.subr.bf16.mxu0 0
          %2460 = vmatpush1.bf16.msra.mxu0 1065369472
          %2461 = vmatprep.subr.bf16.mxu0 0
          %2462 = vmatpush1.bf16.msra.mxu0 1065369472
          %2463 = vmatprep.subr.bf16.mxu0 0
          %2464 = vmatpush1.bf16.msra.mxu0 1065369472
          %2465 = vmatprep.subr.bf16.mxu0 0
          %2466 = vmatpush1.bf16.msra.mxu0 1065369472
          %2467 = vmatprep.subr.bf16.mxu0 0
          %2468 = vmatpush1.bf16.msra.mxu0 1065369472
          %2469 = vmatprep.subr.bf16.mxu0 0
          %2470 = vmatpush1.bf16.msra.mxu0 1065369472
          %2471 = vmatprep.subr.bf16.mxu0 0
          %2472 = vmatpush1.bf16.msra.mxu0 1065369472
          %2473 = vmatprep.subr.bf16.mxu0 0
          %2474 = vmatpush1.bf16.msra.mxu0 1065369472
          %2475 = vmatprep.subr.bf16.mxu0 0
          %2476 = vmatpush1.bf16.msra.mxu0 1065369472
          %2477 = vmatprep.subr.bf16.mxu0 0
          %2478 = vmatpush1.bf16.msra.mxu0 1065369472
          %2479 = vmatprep.mubr.bf16.mxu0 %v2444
          %2480 = vmatmul.mubr.bf16.gmra.mrb[0].mxu0 %v2443
          %v2481 = vpop.f32.mrb[0].mxu0
          %v2482 = vadd.f32 0.0, %v2481
          %v2483 = vpop.f32.mrb[0].mxu0
          %v2484 = vpop.f32.mrb[0].mxu0
          %v2485 = vadd.f32 0.0, %v2484
          %v2486 = vpop.f32.mrb[0].mxu0
          %2487 = vmatprep.mubr.bf16.mxu0 %v2446
          %2488 = vmatmul.mubr.bf16.gmra.mrb[0].mxu0 %v2445
          %v2489 = vpop.f32.mrb[0].mxu0
          %v2490 = vadd.f32 0.0, %v2489
          %v2491 = vpop.f32.mrb[0].mxu0
          %v2492 = vpop.f32.mrb[0].mxu0
          %v2493 = vadd.f32 0.0, %v2492
          %v2494 = vpop.f32.mrb[0].mxu0
          %2495 = vdwg.mxu0
          %v2496 = vmin.f32 %v2482, %v2399
          %v2497 = vmin.f32 %v2485, %v2400
          %v2498 = vmin.f32 %v2490, %v2401
          %v2499 = vmin.f32 %v2493, %v2402
          %v2500 = vsel %vm2423, 1, 0
          %v2501 = vsel %vm2424, 1, 0
          %v2502 = vsel %vm2425, 1, 0
          %v2503 = vsel %vm2426, 1, 0
          %vm2504 = vcmp.eq.s32.totalorder %v2500, 1
          %vm2505 = vcmp.eq.s32.totalorder %v2501, 1
          %vm2506 = vcmp.eq.s32.totalorder %v2502, 1
          %vm2507 = vcmp.eq.s32.totalorder %v2503, 1
          %v2508 = vsel %vm2504, %v2496, 0.0
          %v2509 = vsel %vm2505, %v2497, 0.0
          %v2510 = vsel %vm2506, %v2498, 0.0
          %v2511 = vsel %vm2507, %v2499, 0.0
          %v2512 = vsel %vm2423, %v2413, 0.0
          %v2513 = vsel %vm2424, %v2416, 0.0
          %v2514 = vsel %vm2425, %v2419, 0.0
          %v2515 = vsel %vm2426, %v2422, 0.0
          %v2516 = vmul.f32 %v2508, %v2512
          %v2517 = vmul.f32 %v2509, %v2513
          %v2518 = vmul.f32 %v2510, %v2514
          %v2519 = vmul.f32 %v2511, %v2515
          %v2520 = vadd.f32 %v2391, %v2516
          %v2521 = vadd.f32 %v2392, %v2517
          %v2522 = vadd.f32 %v2393, %v2518
          %v2523 = vadd.f32 %v2394, %v2519
          %v2524 = vadd.f32 %v2395, %v2508
          %v2525 = vadd.f32 %v2396, %v2509
          %v2526 = vadd.f32 %v2397, %v2510
          %v2527 = vadd.f32 %v2398, %v2511
          %v2528 = vsub.f32 %v2399, %v2508
          %v2529 = vsub.f32 %v2400, %v2509
          %v2530 = vsub.f32 %v2401, %v2510
          %v2531 = vsub.f32 %v2402, %v2511
          %v2532 = vsel %vm2427, -1e+30, %v2403
          %v2533 = vsel %vm2428, -1e+30, %v2404
          %v2534 = vsel %vm2429, -1e+30, %v2405
          %v2535 = vsel %vm2430, -1e+30, %v2406
          %v2536 = vsel %vm2431, -1e+30, %v2407
          %v2537 = vsel %vm2432, -1e+30, %v2408
          %v2538 = vsel %vm2433, -1e+30, %v2409
          %v2539 = vsel %vm2434, -1e+30, %v2410
          %v2540 = vmax.f32 %v2532, %v2533
          %2541 = vmax.xlane.f32.xlu0 %v2540
          %v2542 = vpop.xlane.xlu0 %2541
          %v2543 = vmax.f32 %v2534, %v2535
          %2544 = vmax.xlane.f32.xlu0 %v2543
          %v2545 = vpop.xlane.xlu0 %2544
          %v2546 = vmax.f32 %v2536, %v2537
          %2547 = vmax.xlane.f32.xlu0 %v2546
          %v2548 = vpop.xlane.xlu0 %2547
          %v2549 = vmax.f32 %v2538, %v2539
          %2550 = vmax.xlane.f32.xlu0 %v2549
          %v2551 = vpop.xlane.xlu0 %2550
          %vm2552 = vcmp.gt.f32.partialorder %v2542, -1e+29
          %vm2553 = vcmp.gt.f32.partialorder %v2545, -1e+29
          %vm2554 = vcmp.gt.f32.partialorder %v2548, -1e+29
          %vm2555 = vcmp.gt.f32.partialorder %v2551, -1e+29
          %vm2556 = vcmp.eq.f32.partialorder %v2532, %v2542
          %vm2557 = vcmp.eq.f32.partialorder %v2533, %v2542
          %vm2558 = vcmp.eq.f32.partialorder %v2534, %v2545
          %vm2559 = vcmp.eq.f32.partialorder %v2535, %v2545
          %vm2560 = vcmp.eq.f32.partialorder %v2536, %v2548
          %vm2561 = vcmp.eq.f32.partialorder %v2537, %v2548
          %vm2562 = vcmp.eq.f32.partialorder %v2538, %v2551
          %vm2563 = vcmp.eq.f32.partialorder %v2539, %v2551
          %v2564 = vsel %vm2556, 1.0, 0.0
          %v2565 = vsel %vm2557, 1.0, 0.0
          %v2566 = vsel %vm2558, 1.0, 0.0
          %v2567 = vsel %vm2559, 1.0, 0.0
          %v2568 = vsel %vm2560, 1.0, 0.0
          %v2569 = vsel %vm2561, 1.0, 0.0
          %v2570 = vsel %vm2562, 1.0, 0.0
          %v2571 = vsel %vm2563, 1.0, 0.0
          %v2572 = vpack.c.bf16 %v2566, %v2564
          %v2573 = vpack.c.bf16 %v2567, %v2565
          %v2574 = vpack.c.bf16 %v2570, %v2568
          %v2575 = vpack.c.bf16 %v2571, %v2569
          %2576 = vmatprep.subr.bf16.mxu0 0
          %2577 = vmatpush1.bf16.msra.mxu0 1065369472
          %2578 = vmatprep.subr.bf16.mxu0 0
          %2579 = vmatpush1.bf16.msra.mxu0 1065369472
          %2580 = vmatprep.subr.bf16.mxu0 0
          %2581 = vmatpush1.bf16.msra.mxu0 1065369472
          %2582 = vmatprep.subr.bf16.mxu0 0
          %2583 = vmatpush1.bf16.msra.mxu0 1065369472
          %2584 = vmatprep.subr.bf16.mxu0 0
          %2585 = vmatpush1.bf16.msra.mxu0 1065369472
          %2586 = vmatprep.subr.bf16.mxu0 0
          %2587 = vmatpush1.bf16.msra.mxu0 1065369472
          %2588 = vmatprep.subr.bf16.mxu0 0
          %2589 = vmatpush1.bf16.msra.mxu0 1065369472
          %2590 = vmatprep.subr.bf16.mxu0 0
          %2591 = vmatpush1.bf16.msra.mxu0 1065369472
          %2592 = vmatprep.subr.bf16.mxu0 0
          %2593 = vmatpush1.bf16.msra.mxu0 1065369472
          %2594 = vmatprep.subr.bf16.mxu0 0
          %2595 = vmatpush1.bf16.msra.mxu0 1065369472
          %2596 = vmatprep.subr.bf16.mxu0 0
          %2597 = vmatpush1.bf16.msra.mxu0 1065369472
          %2598 = vmatprep.subr.bf16.mxu0 0
          %2599 = vmatpush1.bf16.msra.mxu0 1065369472
          %2600 = vmatprep.subr.bf16.mxu0 0
          %2601 = vmatpush1.bf16.msra.mxu0 1065369472
          %2602 = vmatprep.subr.bf16.mxu0 0
          %2603 = vmatpush1.bf16.msra.mxu0 1065369472
          %2604 = vmatprep.subr.bf16.mxu0 0
          %2605 = vmatpush1.bf16.msra.mxu0 1065369472
          %2606 = vmatprep.subr.bf16.mxu0 0
          %2607 = vmatpush1.bf16.msra.mxu0 1065369472
          %2608 = vmatprep.mubr.bf16.mxu0 %v2573
          %2609 = vmatmul.mubr.bf16.gmra.mrb[0].mxu0 %v2572
          %v2610 = vpop.f32.mrb[0].mxu0
          %v2611 = vadd.f32 0.0, %v2610
          %v2612 = vpop.f32.mrb[0].mxu0
          %v2613 = vpop.f32.mrb[0].mxu0
          %v2614 = vadd.f32 0.0, %v2613
          %v2615 = vpop.f32.mrb[0].mxu0
          %2616 = vmatprep.mubr.bf16.mxu0 %v2575
          %2617 = vmatmul.mubr.bf16.gmra.mrb[0].mxu0 %v2574
          %v2618 = vpop.f32.mrb[0].mxu0
          %v2619 = vadd.f32 0.0, %v2618
          %v2620 = vpop.f32.mrb[0].mxu0
          %v2621 = vpop.f32.mrb[0].mxu0
          %v2622 = vadd.f32 0.0, %v2621
          %v2623 = vpop.f32.mrb[0].mxu0
          %2624 = vdwg.mxu0
          %v2625 = vmin.f32 %v2611, %v2528
          %v2626 = vmin.f32 %v2614, %v2529
          %v2627 = vmin.f32 %v2619, %v2530
          %v2628 = vmin.f32 %v2622, %v2531
          %v2629 = vsel %vm2552, 1, 0
          %v2630 = vsel %vm2553, 1, 0
          %v2631 = vsel %vm2554, 1, 0
          %v2632 = vsel %vm2555, 1, 0
          %vm2633 = vcmp.eq.s32.totalorder %v2629, 1
          %vm2634 = vcmp.eq.s32.totalorder %v2630, 1
          %vm2635 = vcmp.eq.s32.totalorder %v2631, 1
          %vm2636 = vcmp.eq.s32.totalorder %v2632, 1
          %v2637 = vsel %vm2633, %v2625, 0.0
          %v2638 = vsel %vm2634, %v2626, 0.0
          %v2639 = vsel %vm2635, %v2627, 0.0
          %v2640 = vsel %vm2636, %v2628, 0.0
          %v2641 = vsel %vm2552, %v2542, 0.0
          %v2642 = vsel %vm2553, %v2545, 0.0
          %v2643 = vsel %vm2554, %v2548, 0.0
          %v2644 = vsel %vm2555, %v2551, 0.0
          %v2645 = vmul.f32 %v2637, %v2641
          %v2646 = vmul.f32 %v2638, %v2642
          %v2647 = vmul.f32 %v2639, %v2643
          %v2648 = vmul.f32 %v2640, %v2644
          %v2649 = vadd.f32 %v2520, %v2645
          %v2650 = vadd.f32 %v2521, %v2646
          %v2651 = vadd.f32 %v2522, %v2647
          %v2652 = vadd.f32 %v2523, %v2648
          %v2653 = vadd.f32 %v2524, %v2637
          %v2654 = vadd.f32 %v2525, %v2638
          %v2655 = vadd.f32 %v2526, %v2639
          %v2656 = vadd.f32 %v2527, %v2640
          %v2657 = vsub.f32 %v2528, %v2637
          %v2658 = vsub.f32 %v2529, %v2638
          %v2659 = vsub.f32 %v2530, %v2639
          %v2660 = vsub.f32 %v2531, %v2640
          %v2661 = vsel %vm2556, -1e+30, %v2532
          %v2662 = vsel %vm2557, -1e+30, %v2533
          %v2663 = vsel %vm2558, -1e+30, %v2534
          %v2664 = vsel %vm2559, -1e+30, %v2535
          %v2665 = vsel %vm2560, -1e+30, %v2536
          %v2666 = vsel %vm2561, -1e+30, %v2537
          %v2667 = vsel %vm2562, -1e+30, %v2538
          %v2668 = vsel %vm2563, -1e+30, %v2539
          %v2669 = vmax.f32 %v2661, %v2662
          %2670 = vmax.xlane.f32.xlu0 %v2669
          %v2671 = vpop.xlane.xlu0 %2670
          %v2672 = vmax.f32 %v2663, %v2664
          %2673 = vmax.xlane.f32.xlu0 %v2672
          %v2674 = vpop.xlane.xlu0 %2673
          %v2675 = vmax.f32 %v2665, %v2666
          %2676 = vmax.xlane.f32.xlu0 %v2675
          %v2677 = vpop.xlane.xlu0 %2676
          %v2678 = vmax.f32 %v2667, %v2668
          %2679 = vmax.xlane.f32.xlu0 %v2678
          %v2680 = vpop.xlane.xlu0 %2679
          %vm2681 = vcmp.gt.f32.partialorder %v2671, -1e+29
          %vm2682 = vcmp.gt.f32.partialorder %v2674, -1e+29
          %vm2683 = vcmp.gt.f32.partialorder %v2677, -1e+29
          %vm2684 = vcmp.gt.f32.partialorder %v2680, -1e+29
          %vm2685 = vcmp.eq.f32.partialorder %v2661, %v2671
          %vm2686 = vcmp.eq.f32.partialorder %v2662, %v2671
          %vm2687 = vcmp.eq.f32.partialorder %v2663, %v2674
          %vm2688 = vcmp.eq.f32.partialorder %v2664, %v2674
          %vm2689 = vcmp.eq.f32.partialorder %v2665, %v2677
          %vm2690 = vcmp.eq.f32.partialorder %v2666, %v2677
          %vm2691 = vcmp.eq.f32.partialorder %v2667, %v2680
          %vm2692 = vcmp.eq.f32.partialorder %v2668, %v2680
          %v2693 = vsel %vm2685, 1.0, 0.0
          %v2694 = vsel %vm2686, 1.0, 0.0
          %v2695 = vsel %vm2687, 1.0, 0.0
          %v2696 = vsel %vm2688, 1.0, 0.0
          %v2697 = vsel %vm2689, 1.0, 0.0
          %v2698 = vsel %vm2690, 1.0, 0.0
          %v2699 = vsel %vm2691, 1.0, 0.0
          %v2700 = vsel %vm2692, 1.0, 0.0
          %v2701 = vpack.c.bf16 %v2695, %v2693
          %v2702 = vpack.c.bf16 %v2696, %v2694
          %v2703 = vpack.c.bf16 %v2699, %v2697
          %v2704 = vpack.c.bf16 %v2700, %v2698
          %2705 = vmatprep.subr.bf16.mxu0 0
          %2706 = vmatpush1.bf16.msra.mxu0 1065369472
          %2707 = vmatprep.subr.bf16.mxu0 0
          %2708 = vmatpush1.bf16.msra.mxu0 1065369472
          %2709 = vmatprep.subr.bf16.mxu0 0
          %2710 = vmatpush1.bf16.msra.mxu0 1065369472
          %2711 = vmatprep.subr.bf16.mxu0 0
          %2712 = vmatpush1.bf16.msra.mxu0 1065369472
          %2713 = vmatprep.subr.bf16.mxu0 0
          %2714 = vmatpush1.bf16.msra.mxu0 1065369472
          %2715 = vmatprep.subr.bf16.mxu0 0
          %2716 = vmatpush1.bf16.msra.mxu0 1065369472
          %2717 = vmatprep.subr.bf16.mxu0 0
          %2718 = vmatpush1.bf16.msra.mxu0 1065369472
          %2719 = vmatprep.subr.bf16.mxu0 0
          %2720 = vmatpush1.bf16.msra.mxu0 1065369472
          %2721 = vmatprep.subr.bf16.mxu0 0
          %2722 = vmatpush1.bf16.msra.mxu0 1065369472
          %2723 = vmatprep.subr.bf16.mxu0 0
          %2724 = vmatpush1.bf16.msra.mxu0 1065369472
          %2725 = vmatprep.subr.bf16.mxu0 0
          %2726 = vmatpush1.bf16.msra.mxu0 1065369472
          %2727 = vmatprep.subr.bf16.mxu0 0
          %2728 = vmatpush1.bf16.msra.mxu0 1065369472
          %2729 = vmatprep.subr.bf16.mxu0 0
          %2730 = vmatpush1.bf16.msra.mxu0 1065369472
          %2731 = vmatprep.subr.bf16.mxu0 0
          %2732 = vmatpush1.bf16.msra.mxu0 1065369472
          %2733 = vmatprep.subr.bf16.mxu0 0
          %2734 = vmatpush1.bf16.msra.mxu0 1065369472
          %2735 = vmatprep.subr.bf16.mxu0 0
          %2736 = vmatpush1.bf16.msra.mxu0 1065369472
          %2737 = vmatprep.mubr.bf16.mxu0 %v2702
          %2738 = vmatmul.mubr.bf16.gmra.mrb[0].mxu0 %v2701
          %v2739 = vpop.f32.mrb[0].mxu0
          %v2740 = vadd.f32 0.0, %v2739
          %v2741 = vpop.f32.mrb[0].mxu0
          %v2742 = vpop.f32.mrb[0].mxu0
          %v2743 = vadd.f32 0.0, %v2742
          %v2744 = vpop.f32.mrb[0].mxu0
          %2745 = vmatprep.mubr.bf16.mxu0 %v2704
          %2746 = vmatmul.mubr.bf16.gmra.mrb[0].mxu0 %v2703
          %v2747 = vpop.f32.mrb[0].mxu0
          %v2748 = vadd.f32 0.0, %v2747
          %v2749 = vpop.f32.mrb[0].mxu0
          %v2750 = vpop.f32.mrb[0].mxu0
          %v2751 = vadd.f32 0.0, %v2750
          %v2752 = vpop.f32.mrb[0].mxu0
          %2753 = vdwg.mxu0
          %v2754 = vmin.f32 %v2740, %v2657
          %v2755 = vmin.f32 %v2743, %v2658
          %v2756 = vmin.f32 %v2748, %v2659
          %v2757 = vmin.f32 %v2751, %v2660
          %v2758 = vsel %vm2681, 1, 0
          %v2759 = vsel %vm2682, 1, 0
          %v2760 = vsel %vm2683, 1, 0
          %v2761 = vsel %vm2684, 1, 0
          %vm2762 = vcmp.eq.s32.totalorder %v2758, 1
          %vm2763 = vcmp.eq.s32.totalorder %v2759, 1
          %vm2764 = vcmp.eq.s32.totalorder %v2760, 1
          %vm2765 = vcmp.eq.s32.totalorder %v2761, 1
          %v2766 = vsel %vm2762, %v2754, 0.0
          %v2767 = vsel %vm2763, %v2755, 0.0
          %v2768 = vsel %vm2764, %v2756, 0.0
          %v2769 = vsel %vm2765, %v2757, 0.0
          %v2770 = vsel %vm2681, %v2671, 0.0
          %v2771 = vsel %vm2682, %v2674, 0.0
          %v2772 = vsel %vm2683, %v2677, 0.0
          %v2773 = vsel %vm2684, %v2680, 0.0
          %v2774 = vmul.f32 %v2766, %v2770
          %v2775 = vmul.f32 %v2767, %v2771
          %v2776 = vmul.f32 %v2768, %v2772
          %v2777 = vmul.f32 %v2769, %v2773
          %v2778 = vadd.f32 %v2649, %v2774
          %v2779 = vadd.f32 %v2650, %v2775
          %v2780 = vadd.f32 %v2651, %v2776
          %v2781 = vadd.f32 %v2652, %v2777
          %v2782 = vadd.f32 %v2653, %v2766
          %v2783 = vadd.f32 %v2654, %v2767
          %v2784 = vadd.f32 %v2655, %v2768
          %v2785 = vadd.f32 %v2656, %v2769
          %v2786 = vsub.f32 %v2657, %v2766
          %v2787 = vsub.f32 %v2658, %v2767
          %v2788 = vsub.f32 %v2659, %v2768
          %v2789 = vsub.f32 %v2660, %v2769
          %v2790 = vsel %vm2685, -1e+30, %v2661
          %v2791 = vsel %vm2686, -1e+30, %v2662
          %v2792 = vsel %vm2687, -1e+30, %v2663
          %v2793 = vsel %vm2688, -1e+30, %v2664
          %v2794 = vsel %vm2689, -1e+30, %v2665
          %v2795 = vsel %vm2690, -1e+30, %v2666
          %v2796 = vsel %vm2691, -1e+30, %v2667
          %v2797 = vsel %vm2692, -1e+30, %v2668
          %v2798 = vmax.f32 %v2790, %v2791
          %2799 = vmax.xlane.f32.xlu0 %v2798
          %v2800 = vpop.xlane.xlu0 %2799
          %v2801 = vmax.f32 %v2792, %v2793
          %2802 = vmax.xlane.f32.xlu0 %v2801
          %v2803 = vpop.xlane.xlu0 %2802
          %v2804 = vmax.f32 %v2794, %v2795
          %2805 = vmax.xlane.f32.xlu0 %v2804
          %v2806 = vpop.xlane.xlu0 %2805
          %v2807 = vmax.f32 %v2796, %v2797
          %2808 = vmax.xlane.f32.xlu0 %v2807
          %v2809 = vpop.xlane.xlu0 %2808
          %vm2810 = vcmp.gt.f32.partialorder %v2800, -1e+29
          %vm2811 = vcmp.gt.f32.partialorder %v2803, -1e+29
          %vm2812 = vcmp.gt.f32.partialorder %v2806, -1e+29
          %vm2813 = vcmp.gt.f32.partialorder %v2809, -1e+29
          %vm2814 = vcmp.eq.f32.partialorder %v2790, %v2800
          %vm2815 = vcmp.eq.f32.partialorder %v2791, %v2800
          %vm2816 = vcmp.eq.f32.partialorder %v2792, %v2803
          %vm2817 = vcmp.eq.f32.partialorder %v2793, %v2803
          %vm2818 = vcmp.eq.f32.partialorder %v2794, %v2806
          %vm2819 = vcmp.eq.f32.partialorder %v2795, %v2806
          %vm2820 = vcmp.eq.f32.partialorder %v2796, %v2809
          %vm2821 = vcmp.eq.f32.partialorder %v2797, %v2809
          %v2822 = vsel %vm2814, 1.0, 0.0
          %v2823 = vsel %vm2815, 1.0, 0.0
          %v2824 = vsel %vm2816, 1.0, 0.0
          %v2825 = vsel %vm2817, 1.0, 0.0
          %v2826 = vsel %vm2818, 1.0, 0.0
          %v2827 = vsel %vm2819, 1.0, 0.0
          %v2828 = vsel %vm2820, 1.0, 0.0
          %v2829 = vsel %vm2821, 1.0, 0.0
          %v2830 = vpack.c.bf16 %v2824, %v2822
          %v2831 = vpack.c.bf16 %v2825, %v2823
          %v2832 = vpack.c.bf16 %v2828, %v2826
          %v2833 = vpack.c.bf16 %v2829, %v2827
          %2834 = vmatprep.subr.bf16.mxu0 0
          %2835 = vmatpush1.bf16.msra.mxu0 1065369472
          %2836 = vmatprep.subr.bf16.mxu0 0
          %2837 = vmatpush1.bf16.msra.mxu0 1065369472
          %2838 = vmatprep.subr.bf16.mxu0 0
          %2839 = vmatpush1.bf16.msra.mxu0 1065369472
          %2840 = vmatprep.subr.bf16.mxu0 0
          %2841 = vmatpush1.bf16.msra.mxu0 1065369472
          %2842 = vmatprep.subr.bf16.mxu0 0
          %2843 = vmatpush1.bf16.msra.mxu0 1065369472
          %2844 = vmatprep.subr.bf16.mxu0 0
          %2845 = vmatpush1.bf16.msra.mxu0 1065369472
          %2846 = vmatprep.subr.bf16.mxu0 0
          %2847 = vmatpush1.bf16.msra.mxu0 1065369472
          %2848 = vmatprep.subr.bf16.mxu0 0
          %2849 = vmatpush1.bf16.msra.mxu0 1065369472
          %2850 = vmatprep.subr.bf16.mxu0 0
          %2851 = vmatpush1.bf16.msra.mxu0 1065369472
          %2852 = vmatprep.subr.bf16.mxu0 0
          %2853 = vmatpush1.bf16.msra.mxu0 1065369472
          %2854 = vmatprep.subr.bf16.mxu0 0
          %2855 = vmatpush1.bf16.msra.mxu0 1065369472
          %2856 = vmatprep.subr.bf16.mxu0 0
          %2857 = vmatpush1.bf16.msra.mxu0 1065369472
          %2858 = vmatprep.subr.bf16.mxu0 0
          %2859 = vmatpush1.bf16.msra.mxu0 1065369472
          %2860 = vmatprep.subr.bf16.mxu0 0
          %2861 = vmatpush1.bf16.msra.mxu0 1065369472
          %2862 = vmatprep.subr.bf16.mxu0 0
          %2863 = vmatpush1.bf16.msra.mxu0 1065369472
          %2864 = vmatprep.subr.bf16.mxu0 0
          %2865 = vmatpush1.bf16.msra.mxu0 1065369472
          %2866 = vmatprep.mubr.bf16.mxu0 %v2831
          %2867 = vmatmul.mubr.bf16.gmra.mrb[0].mxu0 %v2830
          %v2868 = vpop.f32.mrb[0].mxu0
          %v2869 = vadd.f32 0.0, %v2868
          %v2870 = vpop.f32.mrb[0].mxu0
          %v2871 = vpop.f32.mrb[0].mxu0
          %v2872 = vadd.f32 0.0, %v2871
          %v2873 = vpop.f32.mrb[0].mxu0
          %2874 = vmatprep.mubr.bf16.mxu0 %v2833
          %2875 = vmatmul.mubr.bf16.gmra.mrb[0].mxu0 %v2832
          %v2876 = vpop.f32.mrb[0].mxu0
          %v2877 = vadd.f32 0.0, %v2876
          %v2878 = vpop.f32.mrb[0].mxu0
          %v2879 = vpop.f32.mrb[0].mxu0
          %v2880 = vadd.f32 0.0, %v2879
          %v2881 = vpop.f32.mrb[0].mxu0
          %2882 = vdwg.mxu0
          %v2883 = vmin.f32 %v2869, %v2786
          %v2884 = vmin.f32 %v2872, %v2787
          %v2885 = vmin.f32 %v2877, %v2788
          %v2886 = vmin.f32 %v2880, %v2789
          %v2887 = vsel %vm2810, 1, 0
          %v2888 = vsel %vm2811, 1, 0
          %v2889 = vsel %vm2812, 1, 0
          %v2890 = vsel %vm2813, 1, 0
          %vm2891 = vcmp.eq.s32.totalorder %v2887, 1
          %vm2892 = vcmp.eq.s32.totalorder %v2888, 1
          %vm2893 = vcmp.eq.s32.totalorder %v2889, 1
          %vm2894 = vcmp.eq.s32.totalorder %v2890, 1
          %v2895 = vsel %vm2891, %v2883, 0.0
          %v2896 = vsel %vm2892, %v2884, 0.0
          %v2897 = vsel %vm2893, %v2885, 0.0
          %v2898 = vsel %vm2894, %v2886, 0.0
          %v2899 = vsel %vm2810, %v2800, 0.0
          %v2900 = vsel %vm2811, %v2803, 0.0
          %v2901 = vsel %vm2812, %v2806, 0.0
          %v2902 = vsel %vm2813, %v2809, 0.0
          %v2903 = vmul.f32 %v2895, %v2899
          %v2904 = vmul.f32 %v2896, %v2900
          %v2905 = vmul.f32 %v2897, %v2901
          %v2906 = vmul.f32 %v2898, %v2902
          %v2907 = vadd.f32 %v2778, %v2903
          %v2908 = vadd.f32 %v2779, %v2904
          %v2909 = vadd.f32 %v2780, %v2905
          %v2910 = vadd.f32 %v2781, %v2906
          %v2911 = vadd.f32 %v2782, %v2895
          %v2912 = vadd.f32 %v2783, %v2896
          %v2913 = vadd.f32 %v2784, %v2897
          %v2914 = vadd.f32 %v2785, %v2898
          %v2915 = vsub.f32 %v2786, %v2895
          %v2916 = vsub.f32 %v2787, %v2896
          %v2917 = vsub.f32 %v2788, %v2897
          %v2918 = vsub.f32 %v2789, %v2898
          %v2919 = vsel %vm2814, -1e+30, %v2790
          %v2920 = vsel %vm2815, -1e+30, %v2791
          %v2921 = vsel %vm2816, -1e+30, %v2792
          %v2922 = vsel %vm2817, -1e+30, %v2793
          %v2923 = vsel %vm2818, -1e+30, %v2794
          %v2924 = vsel %vm2819, -1e+30, %v2795
          %v2925 = vsel %vm2820, -1e+30, %v2796
          %v2926 = vsel %vm2821, -1e+30, %v2797
          %v2927 = vmax.f32 %v2919, %v2920
          %2928 = vmax.xlane.f32.xlu0 %v2927
          %v2929 = vpop.xlane.xlu0 %2928
          %v2930 = vmax.f32 %v2921, %v2922
          %2931 = vmax.xlane.f32.xlu0 %v2930
          %v2932 = vpop.xlane.xlu0 %2931
          %v2933 = vmax.f32 %v2923, %v2924
          %2934 = vmax.xlane.f32.xlu0 %v2933
          %v2935 = vpop.xlane.xlu0 %2934
          %v2936 = vmax.f32 %v2925, %v2926
          %2937 = vmax.xlane.f32.xlu0 %v2936
          %v2938 = vpop.xlane.xlu0 %2937
          %vm2939 = vcmp.gt.f32.partialorder %v2929, -1e+29
          %vm2940 = vcmp.gt.f32.partialorder %v2932, -1e+29
          %vm2941 = vcmp.gt.f32.partialorder %v2935, -1e+29
          %vm2942 = vcmp.gt.f32.partialorder %v2938, -1e+29
          %vm2943 = vcmp.eq.f32.partialorder %v2919, %v2929
          %vm2944 = vcmp.eq.f32.partialorder %v2920, %v2929
          %vm2945 = vcmp.eq.f32.partialorder %v2921, %v2932
          %vm2946 = vcmp.eq.f32.partialorder %v2922, %v2932
          %vm2947 = vcmp.eq.f32.partialorder %v2923, %v2935
          %vm2948 = vcmp.eq.f32.partialorder %v2924, %v2935
          %vm2949 = vcmp.eq.f32.partialorder %v2925, %v2938
          %vm2950 = vcmp.eq.f32.partialorder %v2926, %v2938
          %v2951 = vsel %vm2943, 1.0, 0.0
          %v2952 = vsel %vm2944, 1.0, 0.0
          %v2953 = vsel %vm2945, 1.0, 0.0
          %v2954 = vsel %vm2946, 1.0, 0.0
          %v2955 = vsel %vm2947, 1.0, 0.0
          %v2956 = vsel %vm2948, 1.0, 0.0
          %v2957 = vsel %vm2949, 1.0, 0.0
          %v2958 = vsel %vm2950, 1.0, 0.0
          %v2959 = vpack.c.bf16 %v2953, %v2951
          %v2960 = vpack.c.bf16 %v2954, %v2952
          %v2961 = vpack.c.bf16 %v2957, %v2955
          %v2962 = vpack.c.bf16 %v2958, %v2956
          %2963 = vmatprep.subr.bf16.mxu0 0
          %2964 = vmatpush1.bf16.msra.mxu0 1065369472
          %2965 = vmatprep.subr.bf16.mxu0 0
          %2966 = vmatpush1.bf16.msra.mxu0 1065369472
          %2967 = vmatprep.subr.bf16.mxu0 0
          %2968 = vmatpush1.bf16.msra.mxu0 1065369472
          %2969 = vmatprep.subr.bf16.mxu0 0
          %2970 = vmatpush1.bf16.msra.mxu0 1065369472
          %2971 = vmatprep.subr.bf16.mxu0 0
          %2972 = vmatpush1.bf16.msra.mxu0 1065369472
          %2973 = vmatprep.subr.bf16.mxu0 0
          %2974 = vmatpush1.bf16.msra.mxu0 1065369472
          %2975 = vmatprep.subr.bf16.mxu0 0
          %2976 = vmatpush1.bf16.msra.mxu0 1065369472
          %2977 = vmatprep.subr.bf16.mxu0 0
          %2978 = vmatpush1.bf16.msra.mxu0 1065369472
          %2979 = vmatprep.subr.bf16.mxu0 0
          %2980 = vmatpush1.bf16.msra.mxu0 1065369472
          %2981 = vmatprep.subr.bf16.mxu0 0
          %2982 = vmatpush1.bf16.msra.mxu0 1065369472
          %2983 = vmatprep.subr.bf16.mxu0 0
          %2984 = vmatpush1.bf16.msra.mxu0 1065369472
          %2985 = vmatprep.subr.bf16.mxu0 0
          %2986 = vmatpush1.bf16.msra.mxu0 1065369472
          %2987 = vmatprep.subr.bf16.mxu0 0
          %2988 = vmatpush1.bf16.msra.mxu0 1065369472
          %2989 = vmatprep.subr.bf16.mxu0 0
          %2990 = vmatpush1.bf16.msra.mxu0 1065369472
          %2991 = vmatprep.subr.bf16.mxu0 0
          %2992 = vmatpush1.bf16.msra.mxu0 1065369472
          %2993 = vmatprep.subr.bf16.mxu0 0
          %2994 = vmatpush1.bf16.msra.mxu0 1065369472
          %2995 = vmatprep.mubr.bf16.mxu0 %v2960
          %2996 = vmatmul.mubr.bf16.gmra.mrb[0].mxu0 %v2959
          %v2997 = vpop.f32.mrb[0].mxu0
          %v2998 = vadd.f32 0.0, %v2997
          %v2999 = vpop.f32.mrb[0].mxu0
          %v3000 = vpop.f32.mrb[0].mxu0
          %v3001 = vadd.f32 0.0, %v3000
          %v3002 = vpop.f32.mrb[0].mxu0
          %3003 = vmatprep.mubr.bf16.mxu0 %v2962
          %3004 = vmatmul.mubr.bf16.gmra.mrb[0].mxu0 %v2961
          %v3005 = vpop.f32.mrb[0].mxu0
          %v3006 = vadd.f32 0.0, %v3005
          %v3007 = vpop.f32.mrb[0].mxu0
          %v3008 = vpop.f32.mrb[0].mxu0
          %v3009 = vadd.f32 0.0, %v3008
          %v3010 = vpop.f32.mrb[0].mxu0
          %3011 = vdwg.mxu0
          %v3012 = vmin.f32 %v2998, %v2915
          %v3013 = vmin.f32 %v3001, %v2916
          %v3014 = vmin.f32 %v3006, %v2917
          %v3015 = vmin.f32 %v3009, %v2918
          %v3016 = vsel %vm2939, 1, 0
          %v3017 = vsel %vm2940, 1, 0
          %v3018 = vsel %vm2941, 1, 0
          %v3019 = vsel %vm2942, 1, 0
          %vm3020 = vcmp.eq.s32.totalorder %v3016, 1
          %vm3021 = vcmp.eq.s32.totalorder %v3017, 1
          %vm3022 = vcmp.eq.s32.totalorder %v3018, 1
          %vm3023 = vcmp.eq.s32.totalorder %v3019, 1
          %v3024 = vsel %vm3020, %v3012, 0.0
          %v3025 = vsel %vm3021, %v3013, 0.0
          %v3026 = vsel %vm3022, %v3014, 0.0
          %v3027 = vsel %vm3023, %v3015, 0.0
          %v3028 = vsel %vm2939, %v2929, 0.0
          %v3029 = vsel %vm2940, %v2932, 0.0
          %v3030 = vsel %vm2941, %v2935, 0.0
          %v3031 = vsel %vm2942, %v2938, 0.0
          %v3032 = vmul.f32 %v3024, %v3028
          %v3033 = vmul.f32 %v3025, %v3029
          %v3034 = vmul.f32 %v3026, %v3030
          %v3035 = vmul.f32 %v3027, %v3031
          %v3036 = vadd.f32 %v2907, %v3032
          %v3037 = vadd.f32 %v2908, %v3033
          %v3038 = vadd.f32 %v2909, %v3034
          %v3039 = vadd.f32 %v2910, %v3035
          %v3040 = vadd.f32 %v2911, %v3024
          %v3041 = vadd.f32 %v2912, %v3025
          %v3042 = vadd.f32 %v2913, %v3026
          %v3043 = vadd.f32 %v2914, %v3027
          %v3044 = vsub.f32 %v2915, %v3024
          %v3045 = vsub.f32 %v2916, %v3025
          %v3046 = vsub.f32 %v2917, %v3026
          %v3047 = vsub.f32 %v2918, %v3027
          %v3048 = vsel %vm2943, -1e+30, %v2919
          %v3049 = vsel %vm2944, -1e+30, %v2920
          %v3050 = vsel %vm2945, -1e+30, %v2921
          %v3051 = vsel %vm2946, -1e+30, %v2922
          %v3052 = vsel %vm2947, -1e+30, %v2923
          %v3053 = vsel %vm2948, -1e+30, %v2924
          %v3054 = vsel %vm2949, -1e+30, %v2925
          %v3055 = vsel %vm2950, -1e+30, %v2926
          %v3056 = vmax.f32 %v3048, %v3049
          %3057 = vmax.xlane.f32.xlu0 %v3056
          %v3058 = vpop.xlane.xlu0 %3057
          %v3059 = vmax.f32 %v3050, %v3051
          %3060 = vmax.xlane.f32.xlu0 %v3059
          %v3061 = vpop.xlane.xlu0 %3060
          %v3062 = vmax.f32 %v3052, %v3053
          %3063 = vmax.xlane.f32.xlu0 %v3062
          %v3064 = vpop.xlane.xlu0 %3063
          %v3065 = vmax.f32 %v3054, %v3055
          %3066 = vmax.xlane.f32.xlu0 %v3065
          %v3067 = vpop.xlane.xlu0 %3066
          %vm3068 = vcmp.gt.f32.partialorder %v3058, -1e+29
          %vm3069 = vcmp.gt.f32.partialorder %v3061, -1e+29
          %vm3070 = vcmp.gt.f32.partialorder %v3064, -1e+29
          %vm3071 = vcmp.gt.f32.partialorder %v3067, -1e+29
          %vm3072 = vcmp.eq.f32.partialorder %v3048, %v3058
          %vm3073 = vcmp.eq.f32.partialorder %v3049, %v3058
          %vm3074 = vcmp.eq.f32.partialorder %v3050, %v3061
          %vm3075 = vcmp.eq.f32.partialorder %v3051, %v3061
          %vm3076 = vcmp.eq.f32.partialorder %v3052, %v3064
          %vm3077 = vcmp.eq.f32.partialorder %v3053, %v3064
          %vm3078 = vcmp.eq.f32.partialorder %v3054, %v3067
          %vm3079 = vcmp.eq.f32.partialorder %v3055, %v3067
          %v3080 = vsel %vm3072, 1.0, 0.0
          %v3081 = vsel %vm3073, 1.0, 0.0
          %v3082 = vsel %vm3074, 1.0, 0.0
          %v3083 = vsel %vm3075, 1.0, 0.0
          %v3084 = vsel %vm3076, 1.0, 0.0
          %v3085 = vsel %vm3077, 1.0, 0.0
          %v3086 = vsel %vm3078, 1.0, 0.0
          %v3087 = vsel %vm3079, 1.0, 0.0
          %v3088 = vpack.c.bf16 %v3082, %v3080
          %v3089 = vpack.c.bf16 %v3083, %v3081
          %v3090 = vpack.c.bf16 %v3086, %v3084
          %v3091 = vpack.c.bf16 %v3087, %v3085
          %3092 = vmatprep.subr.bf16.mxu0 0
          %3093 = vmatpush1.bf16.msra.mxu0 1065369472
          %3094 = vmatprep.subr.bf16.mxu0 0
          %3095 = vmatpush1.bf16.msra.mxu0 1065369472
          %3096 = vmatprep.subr.bf16.mxu0 0
          %3097 = vmatpush1.bf16.msra.mxu0 1065369472
          %3098 = vmatprep.subr.bf16.mxu0 0
          %3099 = vmatpush1.bf16.msra.mxu0 1065369472
          %3100 = vmatprep.subr.bf16.mxu0 0
          %3101 = vmatpush1.bf16.msra.mxu0 1065369472
          %3102 = vmatprep.subr.bf16.mxu0 0
          %3103 = vmatpush1.bf16.msra.mxu0 1065369472
          %3104 = vmatprep.subr.bf16.mxu0 0
          %3105 = vmatpush1.bf16.msra.mxu0 1065369472
          %3106 = vmatprep.subr.bf16.mxu0 0
          %3107 = vmatpush1.bf16.msra.mxu0 1065369472
          %3108 = vmatprep.subr.bf16.mxu0 0
          %3109 = vmatpush1.bf16.msra.mxu0 1065369472
          %3110 = vmatprep.subr.bf16.mxu0 0
          %3111 = vmatpush1.bf16.msra.mxu0 1065369472
          %3112 = vmatprep.subr.bf16.mxu0 0
          %3113 = vmatpush1.bf16.msra.mxu0 1065369472
          %3114 = vmatprep.subr.bf16.mxu0 0
          %3115 = vmatpush1.bf16.msra.mxu0 1065369472
          %3116 = vmatprep.subr.bf16.mxu0 0
          %3117 = vmatpush1.bf16.msra.mxu0 1065369472
          %3118 = vmatprep.subr.bf16.mxu0 0
          %3119 = vmatpush1.bf16.msra.mxu0 1065369472
          %3120 = vmatprep.subr.bf16.mxu0 0
          %3121 = vmatpush1.bf16.msra.mxu0 1065369472
          %3122 = vmatprep.subr.bf16.mxu0 0
          %3123 = vmatpush1.bf16.msra.mxu0 1065369472
          %3124 = vmatprep.mubr.bf16.mxu0 %v3089
          %3125 = vmatmul.mubr.bf16.gmra.mrb[0].mxu0 %v3088
          %v3126 = vpop.f32.mrb[0].mxu0
          %v3127 = vadd.f32 0.0, %v3126
          %v3128 = vpop.f32.mrb[0].mxu0
          %v3129 = vpop.f32.mrb[0].mxu0
          %v3130 = vadd.f32 0.0, %v3129
          %v3131 = vpop.f32.mrb[0].mxu0
          %3132 = vmatprep.mubr.bf16.mxu0 %v3091
          %3133 = vmatmul.mubr.bf16.gmra.mrb[0].mxu0 %v3090
          %v3134 = vpop.f32.mrb[0].mxu0
          %v3135 = vadd.f32 0.0, %v3134
          %v3136 = vpop.f32.mrb[0].mxu0
          %v3137 = vpop.f32.mrb[0].mxu0
          %v3138 = vadd.f32 0.0, %v3137
          %v3139 = vpop.f32.mrb[0].mxu0
          %3140 = vdwg.mxu0
          %v3141 = vmin.f32 %v3127, %v3044
          %v3142 = vmin.f32 %v3130, %v3045
          %v3143 = vmin.f32 %v3135, %v3046
          %v3144 = vmin.f32 %v3138, %v3047
          %v3145 = vsel %vm3068, 1, 0
          %v3146 = vsel %vm3069, 1, 0
          %v3147 = vsel %vm3070, 1, 0
          %v3148 = vsel %vm3071, 1, 0
          %vm3149 = vcmp.eq.s32.totalorder %v3145, 1
          %vm3150 = vcmp.eq.s32.totalorder %v3146, 1
          %vm3151 = vcmp.eq.s32.totalorder %v3147, 1
          %vm3152 = vcmp.eq.s32.totalorder %v3148, 1
          %v3153 = vsel %vm3149, %v3141, 0.0
          %v3154 = vsel %vm3150, %v3142, 0.0
          %v3155 = vsel %vm3151, %v3143, 0.0
          %v3156 = vsel %vm3152, %v3144, 0.0
          %v3157 = vsel %vm3068, %v3058, 0.0
          %v3158 = vsel %vm3069, %v3061, 0.0
          %v3159 = vsel %vm3070, %v3064, 0.0
          %v3160 = vsel %vm3071, %v3067, 0.0
          %v3161 = vmul.f32 %v3153, %v3157
          %v3162 = vmul.f32 %v3154, %v3158
          %v3163 = vmul.f32 %v3155, %v3159
          %v3164 = vmul.f32 %v3156, %v3160
          %v3165 = vadd.f32 %v3036, %v3161
          %v3166 = vadd.f32 %v3037, %v3162
          %v3167 = vadd.f32 %v3038, %v3163
          %v3168 = vadd.f32 %v3039, %v3164
          %v3169 = vadd.f32 %v3040, %v3153
          %v3170 = vadd.f32 %v3041, %v3154
          %v3171 = vadd.f32 %v3042, %v3155
          %v3172 = vadd.f32 %v3043, %v3156
          %vm3173 = vcmp.gt.f32.partialorder %v3169, 0.0
          %vm3174 = vcmp.gt.f32.partialorder %v3170, 0.0
          %vm3175 = vcmp.gt.f32.partialorder %v3171, 0.0
          %vm3176 = vcmp.gt.f32.partialorder %v3172, 0.0
          %v3177 = vrcp.pop %v3169
          %v3178 = vmul.f32 %v3165, %v3177
          %v3179 = vrcp.pop %v3170
          %v3180 = vmul.f32 %v3166, %v3179
          %v3181 = vrcp.pop %v3171
          %v3182 = vmul.f32 %v3167, %v3181
          %v3183 = vrcp.pop %v3172
          %v3184 = vmul.f32 %v3168, %v3183
          %v3185 = vsel %vm3173, %v3178, 0.0
          %v3186 = vsel %vm3174, %v3180, 0.0
          %v3187 = vsel %vm3175, %v3182, 0.0
          %v3188 = vsel %vm3176, %v3184, 0.0
          %s3189 = scalar_lea.vmem %s207, %s583
          %vm3190 = vcmask 7168
          %3191 = vst.msk [vmem:[%s3189] sm:$0xff] %vm3190, %v3185
          %3192 = vst.msk [vmem:[%s3189 + $0x8] sm:$0xff] %vm3190, %v3186
          %s3193 = scalar_lea.vmem %s213, %s583
          %3194 = vst.msk [vmem:[%s3193] sm:$0xff] %vm3190, %v3187
          %3195 = vst.msk [vmem:[%s3193 + $0x8] sm:$0xff] %vm3190, %v3188
        $region43: #{tpu_custom_call.1} parent=36 // pred_fallthru
          _
      $region37: #{tpu_custom_call.1} parent=31 // loop_footer
        %s582 = sadd.s32 1, %s578
      $region38: #{tpu_custom_call.1} parent=31 // loop_footer_branch
        %577 = sbr.rel target = $region34
      $region39: #{tpu_custom_call.1} parent=31 // loop_exit
        _
      %s3196 = smul.u32 16, %s16
      %p3197 = scmp.lt.s32.totalorder %s3196, 31
      %s3198 = scalar_select %p3197, %s3196, 31
      %s3199 = smul.addr %s3198, 8
      %s3200 = scalar_lea.vmem %s3, %s3199
      %s3201 = smul.u32 16, %s16
      %p3202 = scmp.lt.s32.totalorder %s3201, 31
      %s3203 = scalar_select %p3202, %s3201, 31
      %s3204 = smul.addr %s3203, 8
      %s3205 = scalar_lea.vmem %s4, %s3204
      // Predicated region
      $region44: #{tpu_custom_call.1} parent=31 // pred_check
        %p3206 = pneg %p102
      $region45: #{tpu_custom_call.1} parent=31 // pred_check_branch
        %3208 = sbr.rel (%p3206) target = $region47
      $region46: #{tpu_custom_call.1} parent=31 // pred_region
        %s3209 = smul.u32 16, %s16
      $region47: #{tpu_custom_call.1} parent=31 // pred_fallthru
        _
      // Predicated region
      $region48: #{tpu_custom_call.1} parent=31 // pred_check
        %p3210 = pneg %p128
      $region49: #{tpu_custom_call.1} parent=31 // pred_check_branch
        %3212 = sbr.rel (%p3210) target = $region51
      $region50: #{tpu_custom_call.1} parent=31 // pred_region
        %s3213 = smul.u32 16, %s16
      $region51: #{tpu_custom_call.1} parent=31 // pred_fallthru
        _
    $region32: #{tpu_custom_call.1} parent=5 // pred_fallthru
      _
    %p3214 = scmp.le.s32.totalorder 2, %s11
    // Predicated region
    $region52: #{tpu_custom_call.1} parent=5 // pred_check
      %p3215 = pneg %p3214
    $region53: #{tpu_custom_call.1} parent=5 // pred_check_branch
      %3217 = sbr.rel (%p3215) target = $region55
    $region54: #{tpu_custom_call.1} parent=5 // pred_region
      %s3218 = ssub.s32 %s11, 2
      // Predicated region
      $region56: #{tpu_custom_call.1} parent=54 // pred_check
        %p3219 = pneg %p108
      $region57: #{tpu_custom_call.1} parent=54 // pred_check_branch
        %3221 = sbr.rel (%p3219) target = $region59
      $region58: #{tpu_custom_call.1} parent=54 // pred_region
        %s3222 = smul.u32 16, %s17
        %p3223 = scmp.lt.s32.totalorder %s3222, 31
        %s3224 = scalar_select %p3223, %s3222, 31
        %s3225 = smul.addr %s3224, 8
        %s3226 = scalar_lea.vmem %s3, %s3225
      $region59: #{tpu_custom_call.1} parent=54 // pred_fallthru
        _
      // Predicated region
      $region60: #{tpu_custom_call.1} parent=54 // pred_check
        %p3227 = pneg %p134
      $region61: #{tpu_custom_call.1} parent=54 // pred_check_branch
        %3229 = sbr.rel (%p3227) target = $region63
      $region62: #{tpu_custom_call.1} parent=54 // pred_region
        %s3230 = smul.u32 16, %s17
        %p3231 = scmp.lt.s32.totalorder %s3230, 31
        %s3232 = scalar_select %p3231, %s3230, 31
        %s3233 = smul.addr %s3232, 8
        %s3234 = scalar_lea.vmem %s4, %s3233
      $region63: #{tpu_custom_call.1} parent=54 // pred_fallthru
        _
    $region55: #{tpu_custom_call.1} parent=5 // pred_fallthru
      _
  $region6: #{tpu_custom_call.1} parent=0 // loop_footer
    %s15 = sadd.s32 1, %s11
  $region7: #{tpu_custom_call.1} parent=0 // loop_footer_branch
    %10 = sbr.rel target = $region3
  $region8: #{tpu_custom_call.1} parent=0 // loop_exit
    _

</llo_original>
